<compile_context>
chip_gen: v5e
topology: v5e:2x2
jax: 0.10.0
libtpu: 0.0.40
codegen_flags: <defaults>
</compile_context>

<pallas_src>
import jax
import jax.numpy as jnp
from jax.experimental import pallas as pl
from jax.experimental.pallas import tpu as pltpu

INPUT_DIM = 784
HIDDEN_DIM = 400
LATENT_DIM = 20
NUM_CLASSES = 10
LEAKY_SLOPE = 0.2          # matches nn.LeakyReLU(0.2) in the reference module


def _leaky_relu(x, slope=LEAKY_SLOPE):
    return jnp.where(x > 0, x, slope * x)


def _round_up(v, m):
    return (v + m - 1) // m * m


def _pick_vmem_limit_bytes():
    """Per-generation scoped-VMEM budget: half of physical, clamped 32..64 MiB.

    v7x (64 MiB physical) -> 32 MiB; v5e/v6e (128 MiB physical) -> 64 MiB.
    """
    try:
        cap = int(pltpu.get_tpu_info().vmem_capacity_bytes)
    except Exception:
        cap = 64 * 1024 * 1024
    return int(min(max(cap // 2, 32 * 1024 * 1024), 64 * 1024 * 1024))


def cvae_fwd_kernel(x_ref, oh_ref, eps_ref,
                    w1x_ref, w1c_ref, b1_ref,
                    w2_ref, b2_ref,
                    w3z_ref, w3c_ref, b3_ref,
                    w4_ref, b4_ref,
                    recon_ref, mulv_ref):
    """One batch tile of the CVAE forward: encode -> reparameterize -> decode."""
    x = x_ref[...]                                   # (T, 784) f32
    oh = oh_ref[...].astype(jnp.bfloat16)            # (T, 10) exact in bf16 (0/1)

    # ---- encoder: h = LeakyReLU([x, onehot] @ W1 + b1) --------------------
    h = jnp.dot(x.astype(jnp.bfloat16), w1x_ref[...],
                preferred_element_type=jnp.float32)
    h = h + jnp.dot(oh, w1c_ref[...], preferred_element_type=jnp.float32)
    h = _leaky_relu(h + b1_ref[...])                 # (T, 400) f32
    h_bf = h.astype(jnp.bfloat16)

    # ---- fused mu / log_var head: single (400, 40) matmul -----------------
    stats = jnp.dot(h_bf, w2_ref[...],
                    preferred_element_type=jnp.float32) + b2_ref[...]   # (T, 40)
    mulv_ref[...] = stats                            # packed [mu | log_var]
    mu = stats[:, :LATENT_DIM]
    lv = stats[:, LATENT_DIM:]

    # ---- reparameterize: z = mu + eps * exp(0.5 * log_var) ----------------
    z = mu + eps_ref[...] * jnp.exp(0.5 * lv)        # (T, 20) f32

    # ---- decoder: h2 = LeakyReLU([z, onehot] @ W3 + b3) -------------------
    h2 = jnp.dot(z.astype(jnp.bfloat16), w3z_ref[...],
                 preferred_element_type=jnp.float32)
    h2 = h2 + jnp.dot(oh, w3c_ref[...], preferred_element_type=jnp.float32)
    h2 = _leaky_relu(h2 + b3_ref[...])               # (T, 400) f32

    # ---- output: sigmoid( h2 @ W4 + b4 ), stored as bf16 -------------------
    logits = jnp.dot(h2.astype(jnp.bfloat16), w4_ref[...],
                     preferred_element_type=jnp.float32) + b4_ref[...]
    # sigmoid = 1 / (1 + exp(-x)): exp on EUP, approx reciprocal on EUP -> the
    # whole nonlinearity stays off the VPU/VALU path.
    recon = pl.reciprocal(1.0 + jnp.exp(-logits), approx=True)
    recon_ref[...] = recon.astype(recon_ref.dtype)   # (T, 784) bf16 store


def init_params(key):
    ks = jax.random.split(key, 10)

    def lin(kw, kb, fan_in, fan_out):
        # deterministic small-scale init (torch-like uniform bound)
        bound = 1.0 / jnp.sqrt(fan_in)
        w = jax.random.uniform(kw, (fan_in, fan_out), jnp.float32, -bound, bound)
        b = jax.random.uniform(kb, (1, fan_out), jnp.float32, -bound, bound)
        return w, b

    w1, b1 = lin(ks[0], ks[1], INPUT_DIM + NUM_CLASSES, HIDDEN_DIM)
    w2mu, b2mu = lin(ks[2], ks[3], HIDDEN_DIM, LATENT_DIM)
    w2lv, b2lv = lin(ks[4], ks[5], HIDDEN_DIM, LATENT_DIM)
    w3, b3 = lin(ks[6], ks[7], LATENT_DIM + NUM_CLASSES, HIDDEN_DIM)
    w4, b4 = lin(ks[8], ks[9], HIDDEN_DIM, INPUT_DIM)

    bf = jnp.bfloat16
    return dict(
        # all MXU weights stored bf16 (native MXU dtype; halves resident VMEM
        # and the one-time weight DMA); biases stay f32.
        w1x=w1[:INPUT_DIM].astype(bf),
        w1c=w1[INPUT_DIM:].astype(bf), b1=b1,
        # fused mu / log_var head (400, 40)
        w2=jnp.concatenate([w2mu, w2lv], axis=1).astype(bf),
        b2=jnp.concatenate([b2mu, b2lv], axis=1),
        w3z=w3[:LATENT_DIM].astype(bf), w3c=w3[LATENT_DIM:].astype(bf), b3=b3,
        w4=w4.astype(bf), b4=b4,
    )


def gen_model_forward(params, x, labels, eps, *, tile_b=512):
    """x: (B, 28, 28) f32, labels: (B,) int32, eps: (B, LATENT_DIM) f32."""
    B = x.shape[0]
    x_flat = x.reshape(B, INPUT_DIM).astype(jnp.float32)
    onehot = jax.nn.one_hot(labels, NUM_CLASSES, dtype=jnp.float32)
    eps = eps.astype(jnp.float32)

    # Pick the grid first (bounds padding waste to <8 rows per step), and
    # guarantee >=2 steps when there is enough work so v7x megacore sharding
    # across the "parallel" batch axis actually engages both TensorCores.
    n_steps = pl.cdiv(B, tile_b)
    if n_steps < 2 and B > 8:
        n_steps = 2
    n_steps = max(int(n_steps), 1)
    tb = _round_up(pl.cdiv(B, n_steps), 8)
    b_pad = tb * n_steps
    if b_pad != B:
        pad = b_pad - B
        x_flat = jnp.pad(x_flat, ((0, pad), (0, 0)))
        onehot = jnp.pad(onehot, ((0, pad), (0, 0)))
        eps = jnp.pad(eps, ((0, pad), (0, 0)))

    grid = (n_steps,)

    def tiled(feat):
        return pl.BlockSpec((tb, feat), lambda i: (i, 0))

    def resident(arr):
        # full block, constant index_map -> no re-DMA across grid steps
        return pl.BlockSpec(arr.shape, lambda i: (0, 0))

    in_specs = [
        tiled(INPUT_DIM), tiled(NUM_CLASSES), tiled(LATENT_DIM),
        resident(params["w1x"]), resident(params["w1c"]), resident(params["b1"]),
        resident(params["w2"]), resident(params["b2"]),
        resident(params["w3z"]), resident(params["w3c"]), resident(params["b3"]),
        resident(params["w4"]), resident(params["b4"]),
    ]
    out_specs = (tiled(INPUT_DIM), tiled(2 * LATENT_DIM))

    weight_bytes = sum(int(v.size) * v.dtype.itemsize for v in params.values())
    flops = 2 * b_pad * (INPUT_DIM * HIDDEN_DIM
                         + NUM_CLASSES * HIDDEN_DIM
                         + HIDDEN_DIM * 2 * LATENT_DIM
                         + LATENT_DIM * HIDDEN_DIM
                         + NUM_CLASSES * HIDDEN_DIM
                         + HIDDEN_DIM * INPUT_DIM)
    bytes_accessed = (b_pad * (INPUT_DIM + NUM_CLASSES + LATENT_DIM) * 4   # inputs f32
                      + b_pad * INPUT_DIM * 2                              # recon bf16
                      + b_pad * 2 * LATENT_DIM * 4                         # mu|logvar f32
                      + weight_bytes)

    recon_flat, mulv = pl.pallas_call(
        cvae_fwd_kernel,
        grid=grid,
        in_specs=in_specs,
        out_specs=out_specs,
        out_shape=(
            jax.ShapeDtypeStruct((b_pad, INPUT_DIM), jnp.bfloat16),
            jax.ShapeDtypeStruct((b_pad, 2 * LATENT_DIM), jnp.float32),
        ),
        compiler_params=pltpu.CompilerParams(
            dimension_semantics=("parallel",),
            vmem_limit_bytes=_pick_vmem_limit_bytes(),
        ),
        cost_estimate=pl.CostEstimate(
            flops=flops,
            transcendentals=b_pad * (LATENT_DIM + 2 * INPUT_DIM),
            bytes_accessed=bytes_accessed,
        ),
    )(x_flat, onehot, eps,
      params["w1x"], params["w1c"], params["b1"],
      params["w2"], params["b2"],
      params["w3z"], params["w3c"], params["b3"],
      params["w4"], params["b4"])

    # Downstream consumers that accept bf16 can take recon_flat directly; the
    # PyTorch module returns f32, so cast back here for parity.
    recon = recon_flat[:B].astype(jnp.float32).reshape(B, 28, 28)
    mu = mulv[:B, :LATENT_DIM]
    log_var = mulv[:B, LATENT_DIM:]
    return recon, mu, log_var


def gen_model_forward_ref(params, x, labels, eps):
    """Pure-JAX f32 reference mirroring the PyTorch module (same eps)."""
    B = x.shape[0]
    xf = x.reshape(B, INPUT_DIM).astype(jnp.float32)
    oh = jax.nn.one_hot(labels, NUM_CLASSES, dtype=jnp.float32)
    f32 = lambda a: a.astype(jnp.float32)
    h = _leaky_relu(xf @ f32(params["w1x"]) + oh @ f32(params["w1c"]) + params["b1"])
    stats = h @ f32(params["w2"]) + params["b2"]
    mu = stats[:, :LATENT_DIM]
    lv = stats[:, LATENT_DIM:]
    z = mu + eps * jnp.exp(0.5 * lv)
    h2 = _leaky_relu(z @ f32(params["w3z"]) + oh @ f32(params["w3c"]) + params["b3"])
    recon = jax.nn.sigmoid(h2 @ f32(params["w4"]) + params["b4"])
    return recon.reshape(B, 28, 28), mu, lv


if __name__ == "__main__":
    key = jax.random.PRNGKey(0)
    k_param, k_x, k_lab, k_eps = jax.random.split(key, 4)

    B = 2
    params = init_params(k_param)
    x = jax.random.uniform(k_x, (B, 28, 28), jnp.float32)          # image input
    labels = jax.random.randint(k_lab, (B,), 0, NUM_CLASSES)       # class labels
    # eps is the randn_like noise of reparameterize(); passed in for determinism.
    eps = jax.random.normal(k_eps, (B, LATENT_DIM), jnp.float32)

    recon, mu, log_var = gen_model_forward(params, x, labels, eps)
    jax.block_until_ready((recon, mu, log_var))

    recon_r, mu_r, lv_r = gen_model_forward_ref(params, x, labels, eps)
    assert recon.shape == (B, 28, 28)
    assert mu.shape == (B, LATENT_DIM) and log_var.shape == (B, LATENT_DIM)
    # bf16 MXU inputs / bf16 recon store with f32 accumulation -> small tolerance
    assert jnp.allclose(recon, recon_r, atol=2e-2)
    assert jnp.allclose(mu, mu_r, atol=2e-2)
    assert jnp.allclose(log_var, lv_r, atol=2e-2)

    print("KERNEL_OK")
</pallas_src>

<mosaic_0001>
module attributes {stable_mosaic.version = 11 : i64} {
  func.func @cvae_fwd_kernel(%arg0: i32, %arg1: memref<8x784xf32, #tpu.memory_space<vmem>>, %arg2: memref<8x10xf32, #tpu.memory_space<vmem>>, %arg3: memref<8x20xf32, #tpu.memory_space<vmem>>, %arg4: memref<784x400xbf16, #tpu.memory_space<vmem>>, %arg5: memref<10x400xbf16, #tpu.memory_space<vmem>>, %arg6: memref<1x400xf32, #tpu.memory_space<vmem>>, %arg7: memref<400x40xbf16, #tpu.memory_space<vmem>>, %arg8: memref<1x40xf32, #tpu.memory_space<vmem>>, %arg9: memref<20x400xbf16, #tpu.memory_space<vmem>>, %arg10: memref<10x400xbf16, #tpu.memory_space<vmem>>, %arg11: memref<1x400xf32, #tpu.memory_space<vmem>>, %arg12: memref<400x784xbf16, #tpu.memory_space<vmem>>, %arg13: memref<1x784xf32, #tpu.memory_space<vmem>>, %arg14: memref<8x784xbf16, #tpu.memory_space<vmem>>, %arg15: memref<8x40xf32, #tpu.memory_space<vmem>>) attributes {dimension_semantics = [#tpu.dimension_semantics<parallel>], iteration_bounds = array<i64: 1>, scalar_prefetch = 0 : i64, scratch_operands = 0 : i64, tpu.core_type = #tpu.core_type<tc>, window_params = [{transform_indices = @transform_0, window_bounds = array<i64: 8, 784>}, {transform_indices = @transform_1, window_bounds = array<i64: 8, 10>}, {transform_indices = @transform_2, window_bounds = array<i64: 8, 20>}, {pipeline_mode = #tpu.pipeline_mode<synchronous>, transform_indices = @transform_3, window_bounds = array<i64: 784, 400>}, {pipeline_mode = #tpu.pipeline_mode<synchronous>, transform_indices = @transform_4, window_bounds = array<i64: 10, 400>}, {pipeline_mode = #tpu.pipeline_mode<synchronous>, transform_indices = @transform_5, window_bounds = array<i64: 1, 400>}, {pipeline_mode = #tpu.pipeline_mode<synchronous>, transform_indices = @transform_6, window_bounds = array<i64: 400, 40>}, {pipeline_mode = #tpu.pipeline_mode<synchronous>, transform_indices = @transform_7, window_bounds = array<i64: 1, 40>}, {pipeline_mode = #tpu.pipeline_mode<synchronous>, transform_indices = @transform_8, window_bounds = array<i64: 20, 400>}, {pipeline_mode = #tpu.pipeline_mode<synchronous>, transform_indices = @transform_9, window_bounds = array<i64: 10, 400>}, {pipeline_mode = #tpu.pipeline_mode<synchronous>, transform_indices = @transform_10, window_bounds = array<i64: 1, 400>}, {pipeline_mode = #tpu.pipeline_mode<synchronous>, transform_indices = @transform_11, window_bounds = array<i64: 400, 784>}, {pipeline_mode = #tpu.pipeline_mode<synchronous>, transform_indices = @transform_12, window_bounds = array<i64: 1, 784>}, {transform_indices = @transform_13, window_bounds = array<i64: 8, 784>}, {transform_indices = @transform_14, window_bounds = array<i64: 8, 40>}]} {
    %c0 = arith.constant 0 : index
    %c0_0 = arith.constant 0 : index
    %0 = vector.load %arg1[%c0, %c0_0] : memref<8x784xf32, #tpu.memory_space<vmem>>, vector<8x784xf32>
    %c0_1 = arith.constant 0 : index
    %c0_2 = arith.constant 0 : index
    %1 = vector.load %arg2[%c0_1, %c0_2] : memref<8x10xf32, #tpu.memory_space<vmem>>, vector<8x10xf32>
    %2 = arith.truncf %1 : vector<8x10xf32> to vector<8x10xbf16>
    %3 = arith.truncf %0 : vector<8x784xf32> to vector<8x784xbf16>
    %c0_3 = arith.constant 0 : index
    %c0_4 = arith.constant 0 : index
    %4 = vector.load %arg4[%c0_3, %c0_4] : memref<784x400xbf16, #tpu.memory_space<vmem>>, vector<784x400xbf16>
    %cst = arith.constant dense<0.000000e+00> : vector<8x400xf32>
    %5 = tpu.matmul %3, %4, %cst {dimension_numbers = #tpu.dot_dimension_numbers<[1], [0], [0], [1], [0, 0, 1, 1], [], []>} : vector<8x784xbf16>, vector<784x400xbf16>, vector<8x400xf32> -> vector<8x400xf32>
    %c0_5 = arith.constant 0 : index
    %c0_6 = arith.constant 0 : index
    %6 = vector.load %arg5[%c0_5, %c0_6] : memref<10x400xbf16, #tpu.memory_space<vmem>>, vector<10x400xbf16>
    %cst_7 = arith.constant dense<0.000000e+00> : vector<8x400xf32>
    %7 = tpu.matmul %2, %6, %cst_7 {dimension_numbers = #tpu.dot_dimension_numbers<[1], [0], [0], [1], [0, 0, 1, 1], [], []>} : vector<8x10xbf16>, vector<10x400xbf16>, vector<8x400xf32> -> vector<8x400xf32>
    %8 = arith.addf %5, %7 : vector<8x400xf32>
    %c0_8 = arith.constant 0 : index
    %c0_9 = arith.constant 0 : index
    %9 = vector.load %arg6[%c0_8, %c0_9] : memref<1x400xf32, #tpu.memory_space<vmem>>, vector<1x400xf32>
    %10 = vector.broadcast %9 : vector<1x400xf32> to vector<8x400xf32>
    %11 = arith.addf %8, %10 : vector<8x400xf32>
    %cst_10 = arith.constant 0.000000e+00 : f32
    %12 = vector.broadcast %cst_10 : f32 to vector<8x400xf32>
    %13 = arith.cmpf ogt, %11, %12 : vector<8x400xf32>
    %cst_11 = arith.constant 2.000000e-01 : f32
    %14 = vector.broadcast %cst_11 : f32 to vector<8x400xf32>
    %15 = arith.mulf %14, %11 : vector<8x400xf32>
    %16 = arith.select %13, %11, %15 : vector<8x400xi1>, vector<8x400xf32>
    %17 = arith.truncf %16 : vector<8x400xf32> to vector<8x400xbf16>
    %c0_12 = arith.constant 0 : index
    %c0_13 = arith.constant 0 : index
    %18 = vector.load %arg7[%c0_12, %c0_13] : memref<400x40xbf16, #tpu.memory_space<vmem>>, vector<400x40xbf16>
    %cst_14 = arith.constant dense<0.000000e+00> : vector<8x40xf32>
    %19 = tpu.matmul %17, %18, %cst_14 {dimension_numbers = #tpu.dot_dimension_numbers<[1], [0], [0], [1], [0, 0, 1, 1], [], []>} : vector<8x400xbf16>, vector<400x40xbf16>, vector<8x40xf32> -> vector<8x40xf32>
    %c0_15 = arith.constant 0 : index
    %c0_16 = arith.constant 0 : index
    %20 = vector.load %arg8[%c0_15, %c0_16] : memref<1x40xf32, #tpu.memory_space<vmem>>, vector<1x40xf32>
    %21 = vector.broadcast %20 : vector<1x40xf32> to vector<8x40xf32>
    %22 = arith.addf %19, %21 : vector<8x40xf32>
    %c0_17 = arith.constant 0 : index
    %c0_18 = arith.constant 0 : index
    %23 = vector.load %arg15[%c0_17, %c0_18] : memref<8x40xf32, #tpu.memory_space<vmem>>, vector<8x40xf32>
    tpu.vector_store %arg15[%c0_17, %c0_18], %22 {strides = array<i32>} : memref<8x40xf32, #tpu.memory_space<vmem>>, vector<8x40xf32>,
    %24 = vector.extract_strided_slice %22 {offsets = [0, 0], sizes = [8, 20], strides = [1, 1]} : vector<8x40xf32> to vector<8x20xf32>
    %25 = vector.extract_strided_slice %22 {offsets = [0, 20], sizes = [8, 20], strides = [1, 1]} : vector<8x40xf32> to vector<8x20xf32>
    %c0_19 = arith.constant 0 : index
    %c0_20 = arith.constant 0 : index
    %26 = vector.load %arg3[%c0_19, %c0_20] : memref<8x20xf32, #tpu.memory_space<vmem>>, vector<8x20xf32>
    %cst_21 = arith.constant 5.000000e-01 : f32
    %27 = vector.broadcast %cst_21 : f32 to vector<8x20xf32>
    %28 = arith.mulf %27, %25 : vector<8x20xf32>
    %29 = math.exp %28 : vector<8x20xf32>
    %30 = arith.mulf %26, %29 : vector<8x20xf32>
    %31 = arith.addf %24, %30 : vector<8x20xf32>
    %32 = arith.truncf %31 : vector<8x20xf32> to vector<8x20xbf16>
    %c0_22 = arith.constant 0 : index
    %c0_23 = arith.constant 0 : index
    %33 = vector.load %arg9[%c0_22, %c0_23] : memref<20x400xbf16, #tpu.memory_space<vmem>>, vector<20x400xbf16>
    %cst_24 = arith.constant dense<0.000000e+00> : vector<8x400xf32>
    %34 = tpu.matmul %32, %33, %cst_24 {dimension_numbers = #tpu.dot_dimension_numbers<[1], [0], [0], [1], [0, 0, 1, 1], [], []>} : vector<8x20xbf16>, vector<20x400xbf16>, vector<8x400xf32> -> vector<8x400xf32>
    %c0_25 = arith.constant 0 : index
    %c0_26 = arith.constant 0 : index
    %35 = vector.load %arg10[%c0_25, %c0_26] : memref<10x400xbf16, #tpu.memory_space<vmem>>, vector<10x400xbf16>
    %cst_27 = arith.constant dense<0.000000e+00> : vector<8x400xf32>
    %36 = tpu.matmul %2, %35, %cst_27 {dimension_numbers = #tpu.dot_dimension_numbers<[1], [0], [0], [1], [0, 0, 1, 1], [], []>} : vector<8x10xbf16>, vector<10x400xbf16>, vector<8x400xf32> -> vector<8x400xf32>
    %37 = arith.addf %34, %36 : vector<8x400xf32>
    %c0_28 = arith.constant 0 : index
    %c0_29 = arith.constant 0 : index
    %38 = vector.load %arg11[%c0_28, %c0_29] : memref<1x400xf32, #tpu.memory_space<vmem>>, vector<1x400xf32>
    %39 = vector.broadcast %38 : vector<1x400xf32> to vector<8x400xf32>
    %40 = arith.addf %37, %39 : vector<8x400xf32>
    %cst_30 = arith.constant 0.000000e+00 : f32
    %41 = vector.broadcast %cst_30 : f32 to vector<8x400xf32>
    %42 = arith.cmpf ogt, %40, %41 : vector<8x400xf32>
    %cst_31 = arith.constant 2.000000e-01 : f32
    %43 = vector.broadcast %cst_31 : f32 to vector<8x400xf32>
    %44 = arith.mulf %43, %40 : vector<8x400xf32>
    %45 = arith.select %42, %40, %44 : vector<8x400xi1>, vector<8x400xf32>
    %46 = arith.truncf %45 : vector<8x400xf32> to vector<8x400xbf16>
    %c0_32 = arith.constant 0 : index
    %c0_33 = arith.constant 0 : index
    %47 = vector.load %arg12[%c0_32, %c0_33] : memref<400x784xbf16, #tpu.memory_space<vmem>>, vector<400x784xbf16>
    %cst_34 = arith.constant dense<0.000000e+00> : vector<8x784xf32>
    %48 = tpu.matmul %46, %47, %cst_34 {dimension_numbers = #tpu.dot_dimension_numbers<[1], [0], [0], [1], [0, 0, 1, 1], [], []>} : vector<8x400xbf16>, vector<400x784xbf16>, vector<8x784xf32> -> vector<8x784xf32>
    %c0_35 = arith.constant 0 : index
    %c0_36 = arith.constant 0 : index
    %49 = vector.load %arg13[%c0_35, %c0_36] : memref<1x784xf32, #tpu.memory_space<vmem>>, vector<1x784xf32>
    %50 = vector.broadcast %49 : vector<1x784xf32> to vector<8x784xf32>
    %51 = arith.addf %48, %50 : vector<8x784xf32>
    %cst_37 = arith.constant 0.000000e+00 : f32
    %52 = vector.broadcast %cst_37 : f32 to vector<8x784xf32>
    %53 = arith.subf %52, %51 : vector<8x784xf32>
    %54 = math.exp %53 : vector<8x784xf32>
    %cst_38 = arith.constant 1.000000e+00 : f32
    %55 = vector.broadcast %cst_38 : f32 to vector<8x784xf32>
    %56 = arith.addf %55, %54 : vector<8x784xf32>
    %57 = tpu.reciprocal %56 {approx = true} : vector<8x784xf32> -> vector<8x784xf32>
    %58 = arith.truncf %57 : vector<8x784xf32> to vector<8x784xbf16>
    %c0_39 = arith.constant 0 : index
    %c0_40 = arith.constant 0 : index
    %59 = vector.load %arg14[%c0_39, %c0_40] : memref<8x784xbf16, #tpu.memory_space<vmem>>, vector<8x784xbf16>
    tpu.vector_store %arg14[%c0_39, %c0_40], %58 {strides = array<i32>} : memref<8x784xbf16, #tpu.memory_space<vmem>>, vector<8x784xbf16>,
    return
  }
  func.func @transform_0(%arg0: i32) -> (i32, i32) {
    %c0_i32 = arith.constant 0 : i32
    %c0_i32_0 = arith.constant 0 : i32
    return %arg0, %c0_i32 : i32, i32
  }
  func.func @transform_1(%arg0: i32) -> (i32, i32) {
    %c0_i32 = arith.constant 0 : i32
    %c0_i32_0 = arith.constant 0 : i32
    return %arg0, %c0_i32 : i32, i32
  }
  func.func @transform_2(%arg0: i32) -> (i32, i32) {
    %c0_i32 = arith.constant 0 : i32
    %c0_i32_0 = arith.constant 0 : i32
    return %arg0, %c0_i32 : i32, i32
  }
  func.func @transform_3(%arg0: i32) -> (i32, i32) {
    %c0_i32 = arith.constant 0 : i32
    %c0_i32_0 = arith.constant 0 : i32
    %c0_i32_1 = arith.constant 0 : i32
    return %c0_i32, %c0_i32_0 : i32, i32
  }
  func.func @transform_4(%arg0: i32) -> (i32, i32) {
    %c0_i32 = arith.constant 0 : i32
    %c0_i32_0 = arith.constant 0 : i32
    %c0_i32_1 = arith.constant 0 : i32
    return %c0_i32, %c0_i32_0 : i32, i32
  }
  func.func @transform_5(%arg0: i32) -> (i32, i32) {
    %c0_i32 = arith.constant 0 : i32
    %c0_i32_0 = arith.constant 0 : i32
    %c0_i32_1 = arith.constant 0 : i32
    return %c0_i32, %c0_i32_0 : i32, i32
  }
  func.func @transform_6(%arg0: i32) -> (i32, i32) {
    %c0_i32 = arith.constant 0 : i32
    %c0_i32_0 = arith.constant 0 : i32
    %c0_i32_1 = arith.constant 0 : i32
    return %c0_i32, %c0_i32_0 : i32, i32
  }
  func.func @transform_7(%arg0: i32) -> (i32, i32) {
    %c0_i32 = arith.constant 0 : i32
    %c0_i32_0 = arith.constant 0 : i32
    %c0_i32_1 = arith.constant 0 : i32
    return %c0_i32, %c0_i32_0 : i32, i32
  }
  func.func @transform_8(%arg0: i32) -> (i32, i32) {
    %c0_i32 = arith.constant 0 : i32
    %c0_i32_0 = arith.constant 0 : i32
    %c0_i32_1 = arith.constant 0 : i32
    return %c0_i32, %c0_i32_0 : i32, i32
  }
  func.func @transform_9(%arg0: i32) -> (i32, i32) {
    %c0_i32 = arith.constant 0 : i32
    %c0_i32_0 = arith.constant 0 : i32
    %c0_i32_1 = arith.constant 0 : i32
    return %c0_i32, %c0_i32_0 : i32, i32
  }
  func.func @transform_10(%arg0: i32) -> (i32, i32) {
    %c0_i32 = arith.constant 0 : i32
    %c0_i32_0 = arith.constant 0 : i32
    %c0_i32_1 = arith.constant 0 : i32
    return %c0_i32, %c0_i32_0 : i32, i32
  }
  func.func @transform_11(%arg0: i32) -> (i32, i32) {
    %c0_i32 = arith.constant 0 : i32
    %c0_i32_0 = arith.constant 0 : i32
    %c0_i32_1 = arith.constant 0 : i32
    return %c0_i32, %c0_i32_0 : i32, i32
  }
  func.func @transform_12(%arg0: i32) -> (i32, i32) {
    %c0_i32 = arith.constant 0 : i32
    %c0_i32_0 = arith.constant 0 : i32
    %c0_i32_1 = arith.constant 0 : i32
    return %c0_i32, %c0_i32_0 : i32, i32
  }
  func.func @transform_13(%arg0: i32) -> (i32, i32) {
    %c0_i32 = arith.constant 0 : i32
    %c0_i32_0 = arith.constant 0 : i32
    return %arg0, %c0_i32 : i32, i32
  }
  func.func @transform_14(%arg0: i32) -> (i32, i32) {
    %c0_i32 = arith.constant 0 : i32
    %c0_i32_0 = arith.constant 0 : i32
    return %arg0, %c0_i32 : i32, i32
  }
}

</mosaic_0001>

<llo_original>
// kernel: tpu_custom_call.1
$region0: #{tpu_custom_call.1}
  #allocation0 [shape = 'u32[]', space=smem, size = 0x4, offset = 0x4, fixed_abs, tag = 'smem constant byte address 0x4 - core index']
  #allocation1 [shape = 'u32[72,128]{1,0:T(1,128)}', space=vmem, size = 0x9000, scoped, tag = 'internal scratch']
  %s0 = inlined_call_operand.vmem [shape: f32[8,784], index: 0, kind: input, shape index: {}]
  %s1 = inlined_call_operand.vmem [shape: f32[8,10], index: 1, kind: input, shape index: {}]
  %s2 = inlined_call_operand.vmem [shape: f32[8,20], index: 2, kind: input, shape index: {}]
  %s3 = inlined_call_operand.vmem [shape: bf16[784,400], index: 3, kind: input, shape index: {}]
  %s4 = inlined_call_operand.vmem [shape: bf16[10,400], index: 4, kind: input, shape index: {}]
  %s5 = inlined_call_operand.vmem [shape: f32[1,400], index: 5, kind: input, shape index: {}]
  %s6 = inlined_call_operand.vmem [shape: bf16[400,40], index: 6, kind: input, shape index: {}]
  %s7 = inlined_call_operand.vmem [shape: f32[1,40], index: 7, kind: input, shape index: {}]
  %s8 = inlined_call_operand.vmem [shape: bf16[20,400], index: 8, kind: input, shape index: {}]
  %s9 = inlined_call_operand.vmem [shape: bf16[10,400], index: 9, kind: input, shape index: {}]
  %s10 = inlined_call_operand.vmem [shape: f32[1,400], index: 10, kind: input, shape index: {}]
  %s11 = inlined_call_operand.vmem [shape: bf16[400,784], index: 11, kind: input, shape index: {}]
  %s12 = inlined_call_operand.vmem [shape: f32[1,784], index: 12, kind: input, shape index: {}]
  %s13 = inlined_call_operand.hbm [shape: bf16[8,784], index: 13, kind: output, shape index: {0}]
  %s14 = inlined_call_operand.hbm [shape: f32[8,40], index: 14, kind: output, shape index: {1}]
  %15 = xla_tuple %s13, %s14
  %s16 = sld [smem:[#allocation0]]
  $region70: #{tpu_custom_call.1} parent=0
    _
  %s18 = ssub.s32 1, %s16
  %s19 = scalar_select 0, %s18, %s16
  $region1: #{tpu_custom_call.1} parent=0
    #allocation2 [shape = 'u8[14336]{0}', space=vmem, size = 0x3800, scoped, tag = 'output window, operand 0, single buffered']
    #allocation3 [shape = 's32[1]{0}', space=sflag, size = 0x4, scoped, tag = 'scoped memory for tpu_custom_call.1']
    #allocation4 [shape = 'u8[4096]{0}', space=vmem, size = 0x1000, scoped, tag = 'output window, operand 1, single buffered']
    #allocation5 [shape = 's32[1]{0}', space=sflag, size = 0x4, scoped, tag = 'scoped memory for tpu_custom_call.1']
    %20 = vsyncpa [#allocation3], 0
    %21 = vsyncpa [#allocation5], 0
    // Predicated region
    $region2: #{tpu_custom_call.1} parent=1 // pred_check
      _
    $region3: #{tpu_custom_call.1} parent=1 // pred_check_branch
      %23 = sbr.rel (0) target = $region5
    $region4: #{tpu_custom_call.1} parent=1 // pred_region
      _
    $region5: #{tpu_custom_call.1} parent=1 // pred_fallthru
      _
    // Predicated region
    $region6: #{tpu_custom_call.1} parent=1 // pred_check
      _
    $region7: #{tpu_custom_call.1} parent=1 // pred_check_branch
      %25 = sbr.rel (0) target = $region9
    $region8: #{tpu_custom_call.1} parent=1 // pred_region
      _
    $region9: #{tpu_custom_call.1} parent=1 // pred_fallthru
      _
    // Predicated region
    $region10: #{tpu_custom_call.1} parent=1 // pred_check
      _
    $region11: #{tpu_custom_call.1} parent=1 // pred_check_branch
      %27 = sbr.rel (0) target = $region13
    $region12: #{tpu_custom_call.1} parent=1 // pred_region
      _
    $region13: #{tpu_custom_call.1} parent=1 // pred_fallthru
      _
    // Predicated region
    $region14: #{tpu_custom_call.1} parent=1 // pred_check
      _
    $region15: #{tpu_custom_call.1} parent=1 // pred_check_branch
      %29 = sbr.rel (0) target = $region17
    $region16: #{tpu_custom_call.1} parent=1 // pred_region
      _
    $region17: #{tpu_custom_call.1} parent=1 // pred_fallthru
      _
    // Predicated region
    $region18: #{tpu_custom_call.1} parent=1 // pred_check
      _
    $region19: #{tpu_custom_call.1} parent=1 // pred_check_branch
      %31 = sbr.rel (0) target = $region21
    $region20: #{tpu_custom_call.1} parent=1 // pred_region
      _
    $region21: #{tpu_custom_call.1} parent=1 // pred_fallthru
      _
    // Predicated region
    $region22: #{tpu_custom_call.1} parent=1 // pred_check
      _
    $region23: #{tpu_custom_call.1} parent=1 // pred_check_branch
      %33 = sbr.rel (0) target = $region25
    $region24: #{tpu_custom_call.1} parent=1 // pred_region
      _
    $region25: #{tpu_custom_call.1} parent=1 // pred_fallthru
      _
    // Predicated region
    $region26: #{tpu_custom_call.1} parent=1 // pred_check
      _
    $region27: #{tpu_custom_call.1} parent=1 // pred_check_branch
      %35 = sbr.rel (0) target = $region29
    $region28: #{tpu_custom_call.1} parent=1 // pred_region
      _
    $region29: #{tpu_custom_call.1} parent=1 // pred_fallthru
      _
    // Predicated region
    $region30: #{tpu_custom_call.1} parent=1 // pred_check
      _
    $region31: #{tpu_custom_call.1} parent=1 // pred_check_branch
      %37 = sbr.rel (0) target = $region33
    $region32: #{tpu_custom_call.1} parent=1 // pred_region
      _
    $region33: #{tpu_custom_call.1} parent=1 // pred_fallthru
      _
    // Predicated region
    $region34: #{tpu_custom_call.1} parent=1 // pred_check
      _
    $region35: #{tpu_custom_call.1} parent=1 // pred_check_branch
      %39 = sbr.rel (0) target = $region37
    $region36: #{tpu_custom_call.1} parent=1 // pred_region
      _
    $region37: #{tpu_custom_call.1} parent=1 // pred_fallthru
      _
    // Predicated region
    $region38: #{tpu_custom_call.1} parent=1 // pred_check
      _
    $region39: #{tpu_custom_call.1} parent=1 // pred_check_branch
      %41 = sbr.rel (0) target = $region41
    $region40: #{tpu_custom_call.1} parent=1 // pred_region
      _
    $region41: #{tpu_custom_call.1} parent=1 // pred_fallthru
      _
    // Predicated region
    $region42: #{tpu_custom_call.1} parent=1 // pred_check
      _
    $region43: #{tpu_custom_call.1} parent=1 // pred_check_branch
      %43 = sbr.rel (0) target = $region45
    $region44: #{tpu_custom_call.1} parent=1 // pred_region
      _
    $region45: #{tpu_custom_call.1} parent=1 // pred_fallthru
      _
    // Predicated region
    $region46: #{tpu_custom_call.1} parent=1 // pred_check
      _
    $region47: #{tpu_custom_call.1} parent=1 // pred_check_branch
      %45 = sbr.rel (0) target = $region49
    $region48: #{tpu_custom_call.1} parent=1 // pred_region
      _
    $region49: #{tpu_custom_call.1} parent=1 // pred_fallthru
      _
    // Predicated region
    $region50: #{tpu_custom_call.1} parent=1 // pred_check
      _
    $region51: #{tpu_custom_call.1} parent=1 // pred_check_branch
      %47 = sbr.rel (0) target = $region53
    $region52: #{tpu_custom_call.1} parent=1 // pred_region
      _
    $region53: #{tpu_custom_call.1} parent=1 // pred_fallthru
      _
    %v49 = vld [vmem:[%s0] sm:$0xff]
    %v50 = vld [vmem:[%s0 + $0x8] sm:$0xff]
    %v51 = vld [vmem:[%s0 + $0x10] sm:$0xff]
    %v52 = vld [vmem:[%s0 + $0x18] sm:$0xff]
    %v53 = vld [vmem:[%s0 + $0x20] sm:$0xff]
    %v54 = vld [vmem:[%s0 + $0x28] sm:$0xff]
    %v55 = vld [vmem:[%s0 + $0x30] sm:$0xff]
    %v56 = vld [vmem:[%s1] sm:$0xff]
    %v57 = vpack.c.bf16 %v56, %v56
    %v58 = vpack.c.bf16 %v49, %v49
    %v59 = vpack.c.bf16 %v50, %v50
    %v60 = vpack.c.bf16 %v51, %v51
    %v61 = vpack.c.bf16 %v52, %v52
    %v62 = vpack.c.bf16 %v53, %v53
    %v63 = vpack.c.bf16 %v54, %v54
    %v64 = vpack.c.bf16 %v55, %v55
    %v65 = vld [vmem:[%s3] sm:$0xff]
    %v66 = vld [vmem:[%s3 + $0x8] sm:$0xff]
    %v67 = vld [vmem:[%s3 + $0x10] sm:$0xff]
    %v68 = vld [vmem:[%s3 + $0x18] sm:$0xff]
    %v69 = vld [vmem:[%s3 + $0x20] sm:$0xff]
    %v70 = vld [vmem:[%s3 + $0x28] sm:$0xff]
    %v71 = vld [vmem:[%s3 + $0x30] sm:$0xff]
    %v72 = vld [vmem:[%s3 + $0x38] sm:$0xff]
    %v73 = vld [vmem:[%s3 + $0x40] sm:$0xff]
    %v74 = vld [vmem:[%s3 + $0x48] sm:$0xff]
    %v75 = vld [vmem:[%s3 + $0x50] sm:$0xff]
    %v76 = vld [vmem:[%s3 + $0x58] sm:$0xff]
    %v77 = vld [vmem:[%s3 + $0x60] sm:$0xff]
    %v78 = vld [vmem:[%s3 + $0x68] sm:$0xff]
    %v79 = vld [vmem:[%s3 + $0x70] sm:$0xff]
    %v80 = vld [vmem:[%s3 + $0x78] sm:$0xff]
    %v81 = vld [vmem:[%s3 + $0x80] sm:$0xff]
    %v82 = vld [vmem:[%s3 + $0x88] sm:$0xff]
    %v83 = vld [vmem:[%s3 + $0x90] sm:$0xff]
    %v84 = vld [vmem:[%s3 + $0x98] sm:$0xff]
    %v85 = vld [vmem:[%s3 + $0xa0] sm:$0xff]
    %v86 = vld [vmem:[%s3 + $0xa8] sm:$0xff]
    %v87 = vld [vmem:[%s3 + $0xb0] sm:$0xff]
    %v88 = vld [vmem:[%s3 + $0xb8] sm:$0xff]
    %v89 = vld [vmem:[%s3 + $0xc0] sm:$0xff]
    %v90 = vld [vmem:[%s3 + $0xc8] sm:$0xff]
    %v91 = vld [vmem:[%s3 + $0xd0] sm:$0xff]
    %v92 = vld [vmem:[%s3 + $0xd8] sm:$0xff]
    %v93 = vld [vmem:[%s3 + $0xe0] sm:$0xff]
    %v94 = vld [vmem:[%s3 + $0xe8] sm:$0xff]
    %v95 = vld [vmem:[%s3 + $0xf0] sm:$0xff]
    %v96 = vld [vmem:[%s3 + $0xf8] sm:$0xff]
    %v97 = vld [vmem:[%s3 + $0x100] sm:$0xff]
    %v98 = vld [vmem:[%s3 + $0x108] sm:$0xff]
    %v99 = vld [vmem:[%s3 + $0x110] sm:$0xff]
    %v100 = vld [vmem:[%s3 + $0x118] sm:$0xff]
    %v101 = vld [vmem:[%s3 + $0x120] sm:$0xff]
    %v102 = vld [vmem:[%s3 + $0x128] sm:$0xff]
    %v103 = vld [vmem:[%s3 + $0x130] sm:$0xff]
    %v104 = vld [vmem:[%s3 + $0x138] sm:$0xff]
    %v105 = vld [vmem:[%s3 + $0x140] sm:$0xff]
    %v106 = vld [vmem:[%s3 + $0x148] sm:$0xff]
    %v107 = vld [vmem:[%s3 + $0x150] sm:$0xff]
    %v108 = vld [vmem:[%s3 + $0x158] sm:$0xff]
    %v109 = vld [vmem:[%s3 + $0x160] sm:$0xff]
    %v110 = vld [vmem:[%s3 + $0x168] sm:$0xff]
    %v111 = vld [vmem:[%s3 + $0x170] sm:$0xff]
    %v112 = vld [vmem:[%s3 + $0x178] sm:$0xff]
    %v113 = vld [vmem:[%s3 + $0x180] sm:$0xff]
    %v114 = vld [vmem:[%s3 + $0x188] sm:$0xff]
    %v115 = vld [vmem:[%s3 + $0x190] sm:$0xff]
    %v116 = vld [vmem:[%s3 + $0x198] sm:$0xff]
    %v117 = vld [vmem:[%s3 + $0x1a0] sm:$0xff]
    %v118 = vld [vmem:[%s3 + $0x1a8] sm:$0xff]
    %v119 = vld [vmem:[%s3 + $0x1b0] sm:$0xff]
    %v120 = vld [vmem:[%s3 + $0x1b8] sm:$0xff]
    %v121 = vld [vmem:[%s3 + $0x1c0] sm:$0xff]
    %v122 = vld [vmem:[%s3 + $0x1c8] sm:$0xff]
    %v123 = vld [vmem:[%s3 + $0x1d0] sm:$0xff]
    %v124 = vld [vmem:[%s3 + $0x1d8] sm:$0xff]
    %v125 = vld [vmem:[%s3 + $0x1e0] sm:$0xff]
    %v126 = vld [vmem:[%s3 + $0x1e8] sm:$0xff]
    %v127 = vld [vmem:[%s3 + $0x1f0] sm:$0xff]
    %v128 = vld [vmem:[%s3 + $0x1f8] sm:$0xff]
    %v129 = vld [vmem:[%s3 + $0x200] sm:$0xff]
    %v130 = vld [vmem:[%s3 + $0x208] sm:$0xff]
    %v131 = vld [vmem:[%s3 + $0x210] sm:$0xff]
    %v132 = vld [vmem:[%s3 + $0x218] sm:$0xff]
    %v133 = vld [vmem:[%s3 + $0x220] sm:$0xff]
    %v134 = vld [vmem:[%s3 + $0x228] sm:$0xff]
    %v135 = vld [vmem:[%s3 + $0x230] sm:$0xff]
    %v136 = vld [vmem:[%s3 + $0x238] sm:$0xff]
    %v137 = vld [vmem:[%s3 + $0x240] sm:$0xff]
    %v138 = vld [vmem:[%s3 + $0x248] sm:$0xff]
    %v139 = vld [vmem:[%s3 + $0x250] sm:$0xff]
    %v140 = vld [vmem:[%s3 + $0x258] sm:$0xff]
    %v141 = vld [vmem:[%s3 + $0x260] sm:$0xff]
    %v142 = vld [vmem:[%s3 + $0x268] sm:$0xff]
    %v143 = vld [vmem:[%s3 + $0x270] sm:$0xff]
    %v144 = vld [vmem:[%s3 + $0x278] sm:$0xff]
    %v145 = vld [vmem:[%s3 + $0x280] sm:$0xff]
    %v146 = vld [vmem:[%s3 + $0x288] sm:$0xff]
    %v147 = vld [vmem:[%s3 + $0x290] sm:$0xff]
    %v148 = vld [vmem:[%s3 + $0x298] sm:$0xff]
    %v149 = vld [vmem:[%s3 + $0x2a0] sm:$0xff]
    %v150 = vld [vmem:[%s3 + $0x2a8] sm:$0xff]
    %v151 = vld [vmem:[%s3 + $0x2b0] sm:$0xff]
    %v152 = vld [vmem:[%s3 + $0x2b8] sm:$0xff]
    %v153 = vld [vmem:[%s3 + $0x2c0] sm:$0xff]
    %v154 = vld [vmem:[%s3 + $0x2c8] sm:$0xff]
    %v155 = vld [vmem:[%s3 + $0x2d0] sm:$0xff]
    %v156 = vld [vmem:[%s3 + $0x2d8] sm:$0xff]
    %v157 = vld [vmem:[%s3 + $0x2e0] sm:$0xff]
    %v158 = vld [vmem:[%s3 + $0x2e8] sm:$0xff]
    %v159 = vld [vmem:[%s3 + $0x2f0] sm:$0xff]
    %v160 = vld [vmem:[%s3 + $0x2f8] sm:$0xff]
    %v161 = vld [vmem:[%s3 + $0x300] sm:$0xff]
    %v162 = vld [vmem:[%s3 + $0x308] sm:$0xff]
    %v163 = vld [vmem:[%s3 + $0x310] sm:$0xff]
    %v164 = vld [vmem:[%s3 + $0x318] sm:$0xff]
    %v165 = vld [vmem:[%s3 + $0x320] sm:$0xff]
    %v166 = vld [vmem:[%s3 + $0x328] sm:$0xff]
    %v167 = vld [vmem:[%s3 + $0x330] sm:$0xff]
    %v168 = vld [vmem:[%s3 + $0x338] sm:$0xff]
    %v169 = vld [vmem:[%s3 + $0x340] sm:$0xff]
    %v170 = vld [vmem:[%s3 + $0x348] sm:$0xff]
    %v171 = vld [vmem:[%s3 + $0x350] sm:$0xff]
    %v172 = vld [vmem:[%s3 + $0x358] sm:$0xff]
    %v173 = vld [vmem:[%s3 + $0x360] sm:$0xff]
    %v174 = vld [vmem:[%s3 + $0x368] sm:$0xff]
    %v175 = vld [vmem:[%s3 + $0x370] sm:$0xff]
    %v176 = vld [vmem:[%s3 + $0x378] sm:$0xff]
    %v177 = vld [vmem:[%s3 + $0x380] sm:$0xff]
    %v178 = vld [vmem:[%s3 + $0x388] sm:$0xff]
    %v179 = vld [vmem:[%s3 + $0x390] sm:$0xff]
    %v180 = vld [vmem:[%s3 + $0x398] sm:$0xff]
    %v181 = vld [vmem:[%s3 + $0x3a0] sm:$0xff]
    %v182 = vld [vmem:[%s3 + $0x3a8] sm:$0xff]
    %v183 = vld [vmem:[%s3 + $0x3b0] sm:$0xff]
    %v184 = vld [vmem:[%s3 + $0x3b8] sm:$0xff]
    %v185 = vld [vmem:[%s3 + $0x3c0] sm:$0xff]
    %v186 = vld [vmem:[%s3 + $0x3c8] sm:$0xff]
    %v187 = vld [vmem:[%s3 + $0x3d0] sm:$0xff]
    %v188 = vld [vmem:[%s3 + $0x3d8] sm:$0xff]
    %v189 = vld [vmem:[%s3 + $0x3e0] sm:$0xff]
    %v190 = vld [vmem:[%s3 + $0x3e8] sm:$0xff]
    %v191 = vld [vmem:[%s3 + $0x3f0] sm:$0xff]
    %v192 = vld [vmem:[%s3 + $0x3f8] sm:$0xff]
    %v193 = vld [vmem:[%s3 + $0x400] sm:$0xff]
    %v194 = vld [vmem:[%s3 + $0x408] sm:$0xff]
    %v195 = vld [vmem:[%s3 + $0x410] sm:$0xff]
    %v196 = vld [vmem:[%s3 + $0x418] sm:$0xff]
    %v197 = vld [vmem:[%s3 + $0x420] sm:$0xff]
    %v198 = vld [vmem:[%s3 + $0x428] sm:$0xff]
    %v199 = vld [vmem:[%s3 + $0x430] sm:$0xff]
    %v200 = vld [vmem:[%s3 + $0x438] sm:$0xff]
    %v201 = vld [vmem:[%s3 + $0x440] sm:$0xff]
    %v202 = vld [vmem:[%s3 + $0x448] sm:$0xff]
    %v203 = vld [vmem:[%s3 + $0x450] sm:$0xff]
    %v204 = vld [vmem:[%s3 + $0x458] sm:$0xff]
    %v205 = vld [vmem:[%s3 + $0x460] sm:$0xff]
    %v206 = vld [vmem:[%s3 + $0x468] sm:$0xff]
    %v207 = vld [vmem:[%s3 + $0x470] sm:$0xff]
    %v208 = vld [vmem:[%s3 + $0x478] sm:$0xff]
    %v209 = vld [vmem:[%s3 + $0x480] sm:$0xff]
    %v210 = vld [vmem:[%s3 + $0x488] sm:$0xff]
    %v211 = vld [vmem:[%s3 + $0x490] sm:$0xff]
    %v212 = vld [vmem:[%s3 + $0x498] sm:$0xff]
    %v213 = vld [vmem:[%s3 + $0x4a0] sm:$0xff]
    %v214 = vld [vmem:[%s3 + $0x4a8] sm:$0xff]
    %v215 = vld [vmem:[%s3 + $0x4b0] sm:$0xff]
    %v216 = vld [vmem:[%s3 + $0x4b8] sm:$0xff]
    %v217 = vld [vmem:[%s3 + $0x4c0] sm:$0xff]
    %v218 = vld [vmem:[%s3 + $0x4c8] sm:$0xff]
    %v219 = vld [vmem:[%s3 + $0x4d0] sm:$0xff]
    %v220 = vld [vmem:[%s3 + $0x4d8] sm:$0xff]
    %v221 = vld [vmem:[%s3 + $0x4e0] sm:$0xff]
    %v222 = vld [vmem:[%s3 + $0x4e8] sm:$0xff]
    %v223 = vld [vmem:[%s3 + $0x4f0] sm:$0xff]
    %v224 = vld [vmem:[%s3 + $0x4f8] sm:$0xff]
    %v225 = vld [vmem:[%s3 + $0x500] sm:$0xff]
    %v226 = vld [vmem:[%s3 + $0x508] sm:$0xff]
    %v227 = vld [vmem:[%s3 + $0x510] sm:$0xff]
    %v228 = vld [vmem:[%s3 + $0x518] sm:$0xff]
    %v229 = vld [vmem:[%s3 + $0x520] sm:$0xff]
    %v230 = vld [vmem:[%s3 + $0x528] sm:$0xff]
    %v231 = vld [vmem:[%s3 + $0x530] sm:$0xff]
    %v232 = vld [vmem:[%s3 + $0x538] sm:$0xff]
    %v233 = vld [vmem:[%s3 + $0x540] sm:$0xff]
    %v234 = vld [vmem:[%s3 + $0x548] sm:$0xff]
    %v235 = vld [vmem:[%s3 + $0x550] sm:$0xff]
    %v236 = vld [vmem:[%s3 + $0x558] sm:$0xff]
    %v237 = vld [vmem:[%s3 + $0x560] sm:$0xff]
    %v238 = vld [vmem:[%s3 + $0x568] sm:$0xff]
    %v239 = vld [vmem:[%s3 + $0x570] sm:$0xff]
    %v240 = vld [vmem:[%s3 + $0x578] sm:$0xff]
    %v241 = vld [vmem:[%s3 + $0x580] sm:$0xff]
    %v242 = vld [vmem:[%s3 + $0x588] sm:$0xff]
    %v243 = vld [vmem:[%s3 + $0x590] sm:$0xff]
    %v244 = vld [vmem:[%s3 + $0x598] sm:$0xff]
    %v245 = vld [vmem:[%s3 + $0x5a0] sm:$0xff]
    %v246 = vld [vmem:[%s3 + $0x5a8] sm:$0xff]
    %v247 = vld [vmem:[%s3 + $0x5b0] sm:$0xff]
    %v248 = vld [vmem:[%s3 + $0x5b8] sm:$0xff]
    %v249 = vld [vmem:[%s3 + $0x5c0] sm:$0xff]
    %v250 = vld [vmem:[%s3 + $0x5c8] sm:$0xff]
    %v251 = vld [vmem:[%s3 + $0x5d0] sm:$0xff]
    %v252 = vld [vmem:[%s3 + $0x5d8] sm:$0xff]
    %v253 = vld [vmem:[%s3 + $0x5e0] sm:$0xff]
    %v254 = vld [vmem:[%s3 + $0x5e8] sm:$0xff]
    %v255 = vld [vmem:[%s3 + $0x5f0] sm:$0xff]
    %v256 = vld [vmem:[%s3 + $0x5f8] sm:$0xff]
    %v257 = vld [vmem:[%s3 + $0x600] sm:$0xff]
    %v258 = vld [vmem:[%s3 + $0x608] sm:$0xff]
    %v259 = vld [vmem:[%s3 + $0x610] sm:$0xff]
    %v260 = vld [vmem:[%s3 + $0x618] sm:$0xff]
    %v261 = vld [vmem:[%s4] sm:$0xff]
    %v262 = vld [vmem:[%s4 + $0x8] sm:$0xff]
    %v263 = vld [vmem:[%s4 + $0x10] sm:$0x11]
    %v264 = vld [vmem:[%s4 + $0x18] sm:$0x11]
    %v269 = vunpack.c.l.b16 %v261
    %v270 = vunpack.c.h.b16 %v261
    %v271 = vunpack.c.l.b16 %v262
    %v272 = vunpack.c.h.b16 %v262
    %v273 = vunpack.c.l.b16 %v263
    %v274 = vunpack.c.h.b16 %v263
    %v275 = vunpack.c.l.b16 %v264
    %v276 = vunpack.c.h.b16 %v264
    %v277 = vpack.c.b16 %v273, %v269
    %v278 = vpack.c.b16 %v274, %v270
    %v279 = vpack.c.b16 %v275, %v271
    %v280 = vpack.c.b16 %v276, %v272
    %vm281 = vcmask 80896
    %v283 = vsel %vm281, %v57, 0
    %vm285 = vcmask 1044480
    %v287 = vsel %vm285, %v277, 0
    %v290 = vsel %vm285, %v278, 0
    %v293 = vsel %vm285, %v279, 0
    %v296 = vsel %vm285, %v280, 0
    %298 = vmatpush.bf16.msra.mxu0 0
    %299 = vmatpush.bf16.msra.mxu0 0
    %300 = vmatpush.bf16.msra.mxu0 0
    %301 = vmatpush.bf16.msra.mxu0 0
    %302 = vmatpush.bf16.msra.mxu0 0
    %303 = vmatpush.bf16.msra.mxu0 0
    %304 = vmatpush.bf16.msra.mxu0 0
    %305 = vmatpush.bf16.msra.mxu0 %v287
    %306 = vmatmul.bf16.gmra.mxu0 %v283
    %v307 = vpop.f32.mrf.mxu0
    %v308 = vadd.f32 0.0, %v307
    %v309 = vpop.f32.mrf.mxu0
    %310 = vdwg.mxu0
    %311 = vmatpush.bf16.msra.mxu0 0
    %312 = vmatpush.bf16.msra.mxu0 0
    %313 = vmatpush.bf16.msra.mxu0 0
    %314 = vmatpush.bf16.msra.mxu0 0
    %315 = vmatpush.bf16.msra.mxu0 0
    %316 = vmatpush.bf16.msra.mxu0 0
    %317 = vmatpush.bf16.msra.mxu0 0
    %318 = vmatpush.bf16.msra.mxu0 %v290
    %319 = vmatmul.bf16.gmra.mxu0 %v283
    %v320 = vpop.f32.mrf.mxu0
    %v321 = vadd.f32 0.0, %v320
    %v322 = vpop.f32.mrf.mxu0
    %323 = vdwg.mxu0
    %324 = vmatpush.bf16.msra.mxu0 0
    %325 = vmatpush.bf16.msra.mxu0 0
    %326 = vmatpush.bf16.msra.mxu0 0
    %327 = vmatpush.bf16.msra.mxu0 0
    %328 = vmatpush.bf16.msra.mxu0 0
    %329 = vmatpush.bf16.msra.mxu0 0
    %330 = vmatpush.bf16.msra.mxu0 0
    %331 = vmatpush.bf16.msra.mxu0 %v293
    %332 = vmatmul.bf16.gmra.mxu0 %v283
    %v333 = vpop.f32.mrf.mxu0
    %v334 = vadd.f32 0.0, %v333
    %v335 = vpop.f32.mrf.mxu0
    %336 = vdwg.mxu0
    %337 = vmatpush.bf16.msra.mxu0 0
    %338 = vmatpush.bf16.msra.mxu0 0
    %339 = vmatpush.bf16.msra.mxu0 0
    %340 = vmatpush.bf16.msra.mxu0 0
    %341 = vmatpush.bf16.msra.mxu0 0
    %342 = vmatpush.bf16.msra.mxu0 0
    %343 = vmatpush.bf16.msra.mxu0 0
    %344 = vmatpush.bf16.msra.mxu0 %v296
    %345 = vmatmul.bf16.gmra.mxu0 %v283
    %v346 = vpop.f32.mrf.mxu0
    %v347 = vadd.f32 0.0, %v346
    %v348 = vpop.f32.mrf.mxu0
    %349 = vdwg.mxu0
    %v546 = vunpack.c.l.b16 %v65
    %v547 = vunpack.c.h.b16 %v65
    %v548 = vunpack.c.l.b16 %v66
    %v549 = vunpack.c.h.b16 %v66
    %v550 = vunpack.c.l.b16 %v67
    %v551 = vunpack.c.h.b16 %v67
    %v552 = vunpack.c.l.b16 %v68
    %v553 = vunpack.c.h.b16 %v68
    %v554 = vunpack.c.l.b16 %v69
    %v555 = vunpack.c.h.b16 %v69
    %v556 = vunpack.c.l.b16 %v70
    %v557 = vunpack.c.h.b16 %v70
    %v558 = vunpack.c.l.b16 %v71
    %v559 = vunpack.c.h.b16 %v71
    %v560 = vunpack.c.l.b16 %v72
    %v561 = vunpack.c.h.b16 %v72
    %v562 = vunpack.c.l.b16 %v73
    %v563 = vunpack.c.h.b16 %v73
    %v564 = vunpack.c.l.b16 %v74
    %v565 = vunpack.c.h.b16 %v74
    %v566 = vunpack.c.l.b16 %v75
    %v567 = vunpack.c.h.b16 %v75
    %v568 = vunpack.c.l.b16 %v76
    %v569 = vunpack.c.h.b16 %v76
    %v570 = vunpack.c.l.b16 %v77
    %v571 = vunpack.c.h.b16 %v77
    %v572 = vunpack.c.l.b16 %v78
    %v573 = vunpack.c.h.b16 %v78
    %v574 = vunpack.c.l.b16 %v79
    %v575 = vunpack.c.h.b16 %v79
    %v576 = vunpack.c.l.b16 %v80
    %v577 = vunpack.c.h.b16 %v80
    %v578 = vunpack.c.l.b16 %v81
    %v579 = vunpack.c.h.b16 %v81
    %v580 = vunpack.c.l.b16 %v82
    %v581 = vunpack.c.h.b16 %v82
    %v582 = vunpack.c.l.b16 %v83
    %v583 = vunpack.c.h.b16 %v83
    %v584 = vunpack.c.l.b16 %v84
    %v585 = vunpack.c.h.b16 %v84
    %v586 = vunpack.c.l.b16 %v85
    %v587 = vunpack.c.h.b16 %v85
    %v588 = vunpack.c.l.b16 %v86
    %v589 = vunpack.c.h.b16 %v86
    %v590 = vunpack.c.l.b16 %v87
    %v591 = vunpack.c.h.b16 %v87
    %v592 = vunpack.c.l.b16 %v88
    %v593 = vunpack.c.h.b16 %v88
    %v594 = vunpack.c.l.b16 %v89
    %v595 = vunpack.c.h.b16 %v89
    %v596 = vunpack.c.l.b16 %v90
    %v597 = vunpack.c.h.b16 %v90
    %v598 = vunpack.c.l.b16 %v91
    %v599 = vunpack.c.h.b16 %v91
    %v600 = vunpack.c.l.b16 %v92
    %v601 = vunpack.c.h.b16 %v92
    %v602 = vunpack.c.l.b16 %v93
    %v603 = vunpack.c.h.b16 %v93
    %v604 = vunpack.c.l.b16 %v94
    %v605 = vunpack.c.h.b16 %v94
    %v606 = vunpack.c.l.b16 %v95
    %v607 = vunpack.c.h.b16 %v95
    %v608 = vunpack.c.l.b16 %v96
    %v609 = vunpack.c.h.b16 %v96
    %v610 = vunpack.c.l.b16 %v97
    %v611 = vunpack.c.h.b16 %v97
    %v612 = vunpack.c.l.b16 %v98
    %v613 = vunpack.c.h.b16 %v98
    %v614 = vunpack.c.l.b16 %v99
    %v615 = vunpack.c.h.b16 %v99
    %v616 = vunpack.c.l.b16 %v100
    %v617 = vunpack.c.h.b16 %v100
    %v618 = vunpack.c.l.b16 %v101
    %v619 = vunpack.c.h.b16 %v101
    %v620 = vunpack.c.l.b16 %v102
    %v621 = vunpack.c.h.b16 %v102
    %v622 = vunpack.c.l.b16 %v103
    %v623 = vunpack.c.h.b16 %v103
    %v624 = vunpack.c.l.b16 %v104
    %v625 = vunpack.c.h.b16 %v104
    %v626 = vunpack.c.l.b16 %v105
    %v627 = vunpack.c.h.b16 %v105
    %v628 = vunpack.c.l.b16 %v106
    %v629 = vunpack.c.h.b16 %v106
    %v630 = vunpack.c.l.b16 %v107
    %v631 = vunpack.c.h.b16 %v107
    %v632 = vunpack.c.l.b16 %v108
    %v633 = vunpack.c.h.b16 %v108
    %v634 = vunpack.c.l.b16 %v109
    %v635 = vunpack.c.h.b16 %v109
    %v636 = vunpack.c.l.b16 %v110
    %v637 = vunpack.c.h.b16 %v110
    %v638 = vunpack.c.l.b16 %v111
    %v639 = vunpack.c.h.b16 %v111
    %v640 = vunpack.c.l.b16 %v112
    %v641 = vunpack.c.h.b16 %v112
    %v642 = vunpack.c.l.b16 %v113
    %v643 = vunpack.c.h.b16 %v113
    %v644 = vunpack.c.l.b16 %v114
    %v645 = vunpack.c.h.b16 %v114
    %v646 = vunpack.c.l.b16 %v115
    %v647 = vunpack.c.h.b16 %v115
    %v648 = vunpack.c.l.b16 %v116
    %v649 = vunpack.c.h.b16 %v116
    %v650 = vunpack.c.l.b16 %v117
    %v651 = vunpack.c.h.b16 %v117
    %v652 = vunpack.c.l.b16 %v118
    %v653 = vunpack.c.h.b16 %v118
    %v654 = vunpack.c.l.b16 %v119
    %v655 = vunpack.c.h.b16 %v119
    %v656 = vunpack.c.l.b16 %v120
    %v657 = vunpack.c.h.b16 %v120
    %v658 = vunpack.c.l.b16 %v121
    %v659 = vunpack.c.h.b16 %v121
    %v660 = vunpack.c.l.b16 %v122
    %v661 = vunpack.c.h.b16 %v122
    %v662 = vunpack.c.l.b16 %v123
    %v663 = vunpack.c.h.b16 %v123
    %v664 = vunpack.c.l.b16 %v124
    %v665 = vunpack.c.h.b16 %v124
    %v666 = vunpack.c.l.b16 %v125
    %v667 = vunpack.c.h.b16 %v125
    %v668 = vunpack.c.l.b16 %v126
    %v669 = vunpack.c.h.b16 %v126
    %v670 = vunpack.c.l.b16 %v127
    %v671 = vunpack.c.h.b16 %v127
    %v672 = vunpack.c.l.b16 %v128
    %v673 = vunpack.c.h.b16 %v128
    %v674 = vunpack.c.l.b16 %v129
    %v675 = vunpack.c.h.b16 %v129
    %v676 = vunpack.c.l.b16 %v130
    %v677 = vunpack.c.h.b16 %v130
    %v678 = vunpack.c.l.b16 %v131
    %v679 = vunpack.c.h.b16 %v131
    %v680 = vunpack.c.l.b16 %v132
    %v681 = vunpack.c.h.b16 %v132
    %v682 = vunpack.c.l.b16 %v133
    %v683 = vunpack.c.h.b16 %v133
    %v684 = vunpack.c.l.b16 %v134
    %v685 = vunpack.c.h.b16 %v134
    %v686 = vunpack.c.l.b16 %v135
    %v687 = vunpack.c.h.b16 %v135
    %v688 = vunpack.c.l.b16 %v136
    %v689 = vunpack.c.h.b16 %v136
    %v690 = vunpack.c.l.b16 %v137
    %v691 = vunpack.c.h.b16 %v137
    %v692 = vunpack.c.l.b16 %v138
    %v693 = vunpack.c.h.b16 %v138
    %v694 = vunpack.c.l.b16 %v139
    %v695 = vunpack.c.h.b16 %v139
    %v696 = vunpack.c.l.b16 %v140
    %v697 = vunpack.c.h.b16 %v140
    %v698 = vunpack.c.l.b16 %v141
    %v699 = vunpack.c.h.b16 %v141
    %v700 = vunpack.c.l.b16 %v142
    %v701 = vunpack.c.h.b16 %v142
    %v702 = vunpack.c.l.b16 %v143
    %v703 = vunpack.c.h.b16 %v143
    %v704 = vunpack.c.l.b16 %v144
    %v705 = vunpack.c.h.b16 %v144
    %v706 = vunpack.c.l.b16 %v145
    %v707 = vunpack.c.h.b16 %v145
    %v708 = vunpack.c.l.b16 %v146
    %v709 = vunpack.c.h.b16 %v146
    %v710 = vunpack.c.l.b16 %v147
    %v711 = vunpack.c.h.b16 %v147
    %v712 = vunpack.c.l.b16 %v148
    %v713 = vunpack.c.h.b16 %v148
    %v714 = vunpack.c.l.b16 %v149
    %v715 = vunpack.c.h.b16 %v149
    %v716 = vunpack.c.l.b16 %v150
    %v717 = vunpack.c.h.b16 %v150
    %v718 = vunpack.c.l.b16 %v151
    %v719 = vunpack.c.h.b16 %v151
    %v720 = vunpack.c.l.b16 %v152
    %v721 = vunpack.c.h.b16 %v152
    %v722 = vunpack.c.l.b16 %v153
    %v723 = vunpack.c.h.b16 %v153
    %v724 = vunpack.c.l.b16 %v154
    %v725 = vunpack.c.h.b16 %v154
    %v726 = vunpack.c.l.b16 %v155
    %v727 = vunpack.c.h.b16 %v155
    %v728 = vunpack.c.l.b16 %v156
    %v729 = vunpack.c.h.b16 %v156
    %v730 = vunpack.c.l.b16 %v157
    %v731 = vunpack.c.h.b16 %v157
    %v732 = vunpack.c.l.b16 %v158
    %v733 = vunpack.c.h.b16 %v158
    %v734 = vunpack.c.l.b16 %v159
    %v735 = vunpack.c.h.b16 %v159
    %v736 = vunpack.c.l.b16 %v160
    %v737 = vunpack.c.h.b16 %v160
    %v738 = vunpack.c.l.b16 %v161
    %v739 = vunpack.c.h.b16 %v161
    %v740 = vunpack.c.l.b16 %v162
    %v741 = vunpack.c.h.b16 %v162
    %v742 = vunpack.c.l.b16 %v163
    %v743 = vunpack.c.h.b16 %v163
    %v744 = vunpack.c.l.b16 %v164
    %v745 = vunpack.c.h.b16 %v164
    %v746 = vunpack.c.l.b16 %v165
    %v747 = vunpack.c.h.b16 %v165
    %v748 = vunpack.c.l.b16 %v166
    %v749 = vunpack.c.h.b16 %v166
    %v750 = vunpack.c.l.b16 %v167
    %v751 = vunpack.c.h.b16 %v167
    %v752 = vunpack.c.l.b16 %v168
    %v753 = vunpack.c.h.b16 %v168
    %v754 = vunpack.c.l.b16 %v169
    %v755 = vunpack.c.h.b16 %v169
    %v756 = vunpack.c.l.b16 %v170
    %v757 = vunpack.c.h.b16 %v170
    %v758 = vunpack.c.l.b16 %v171
    %v759 = vunpack.c.h.b16 %v171
    %v760 = vunpack.c.l.b16 %v172
    %v761 = vunpack.c.h.b16 %v172
    %v762 = vunpack.c.l.b16 %v173
    %v763 = vunpack.c.h.b16 %v173
    %v764 = vunpack.c.l.b16 %v174
    %v765 = vunpack.c.h.b16 %v174
    %v766 = vunpack.c.l.b16 %v175
    %v767 = vunpack.c.h.b16 %v175
    %v768 = vunpack.c.l.b16 %v176
    %v769 = vunpack.c.h.b16 %v176
    %v770 = vunpack.c.l.b16 %v177
    %v771 = vunpack.c.h.b16 %v177
    %v772 = vunpack.c.l.b16 %v178
    %v773 = vunpack.c.h.b16 %v178
    %v774 = vunpack.c.l.b16 %v179
    %v775 = vunpack.c.h.b16 %v179
    %v776 = vunpack.c.l.b16 %v180
    %v777 = vunpack.c.h.b16 %v180
    %v778 = vunpack.c.l.b16 %v181
    %v779 = vunpack.c.h.b16 %v181
    %v780 = vunpack.c.l.b16 %v182
    %v781 = vunpack.c.h.b16 %v182
    %v782 = vunpack.c.l.b16 %v183
    %v783 = vunpack.c.h.b16 %v183
    %v784 = vunpack.c.l.b16 %v184
    %v785 = vunpack.c.h.b16 %v184
    %v786 = vunpack.c.l.b16 %v185
    %v787 = vunpack.c.h.b16 %v185
    %v788 = vunpack.c.l.b16 %v186
    %v789 = vunpack.c.h.b16 %v186
    %v790 = vunpack.c.l.b16 %v187
    %v791 = vunpack.c.h.b16 %v187
    %v792 = vunpack.c.l.b16 %v188
    %v793 = vunpack.c.h.b16 %v188
    %v794 = vunpack.c.l.b16 %v189
    %v795 = vunpack.c.h.b16 %v189
    %v796 = vunpack.c.l.b16 %v190
    %v797 = vunpack.c.h.b16 %v190
    %v798 = vunpack.c.l.b16 %v191
    %v799 = vunpack.c.h.b16 %v191
    %v800 = vunpack.c.l.b16 %v192
    %v801 = vunpack.c.h.b16 %v192
    %v802 = vunpack.c.l.b16 %v193
    %v803 = vunpack.c.h.b16 %v193
    %v804 = vunpack.c.l.b16 %v194
    %v805 = vunpack.c.h.b16 %v194
    %v806 = vunpack.c.l.b16 %v195
    %v807 = vunpack.c.h.b16 %v195
    %v808 = vunpack.c.l.b16 %v196
    %v809 = vunpack.c.h.b16 %v196
    %v810 = vunpack.c.l.b16 %v197
    %v811 = vunpack.c.h.b16 %v197
    %v812 = vunpack.c.l.b16 %v198
    %v813 = vunpack.c.h.b16 %v198
    %v814 = vunpack.c.l.b16 %v199
    %v815 = vunpack.c.h.b16 %v199
    %v816 = vunpack.c.l.b16 %v200
    %v817 = vunpack.c.h.b16 %v200
    %v818 = vunpack.c.l.b16 %v201
    %v819 = vunpack.c.h.b16 %v201
    %v820 = vunpack.c.l.b16 %v202
    %v821 = vunpack.c.h.b16 %v202
    %v822 = vunpack.c.l.b16 %v203
    %v823 = vunpack.c.h.b16 %v203
    %v824 = vunpack.c.l.b16 %v204
    %v825 = vunpack.c.h.b16 %v204
    %v826 = vunpack.c.l.b16 %v205
    %v827 = vunpack.c.h.b16 %v205
    %v828 = vunpack.c.l.b16 %v206
    %v829 = vunpack.c.h.b16 %v206
    %v830 = vunpack.c.l.b16 %v207
    %v831 = vunpack.c.h.b16 %v207
    %v832 = vunpack.c.l.b16 %v208
    %v833 = vunpack.c.h.b16 %v208
    %v834 = vunpack.c.l.b16 %v209
    %v835 = vunpack.c.h.b16 %v209
    %v836 = vunpack.c.l.b16 %v210
    %v837 = vunpack.c.h.b16 %v210
    %v838 = vunpack.c.l.b16 %v211
    %v839 = vunpack.c.h.b16 %v211
    %v840 = vunpack.c.l.b16 %v212
    %v841 = vunpack.c.h.b16 %v212
    %v842 = vunpack.c.l.b16 %v213
    %v843 = vunpack.c.h.b16 %v213
    %v844 = vunpack.c.l.b16 %v214
    %v845 = vunpack.c.h.b16 %v214
    %v846 = vunpack.c.l.b16 %v215
    %v847 = vunpack.c.h.b16 %v215
    %v848 = vunpack.c.l.b16 %v216
    %v849 = vunpack.c.h.b16 %v216
    %v850 = vunpack.c.l.b16 %v217
    %v851 = vunpack.c.h.b16 %v217
    %v852 = vunpack.c.l.b16 %v218
    %v853 = vunpack.c.h.b16 %v218
    %v854 = vunpack.c.l.b16 %v219
    %v855 = vunpack.c.h.b16 %v219
    %v856 = vunpack.c.l.b16 %v220
    %v857 = vunpack.c.h.b16 %v220
    %v858 = vunpack.c.l.b16 %v221
    %v859 = vunpack.c.h.b16 %v221
    %v860 = vunpack.c.l.b16 %v222
    %v861 = vunpack.c.h.b16 %v222
    %v862 = vunpack.c.l.b16 %v223
    %v863 = vunpack.c.h.b16 %v223
    %v864 = vunpack.c.l.b16 %v224
    %v865 = vunpack.c.h.b16 %v224
    %v866 = vunpack.c.l.b16 %v225
    %v867 = vunpack.c.h.b16 %v225
    %v868 = vunpack.c.l.b16 %v226
    %v869 = vunpack.c.h.b16 %v226
    %v870 = vunpack.c.l.b16 %v227
    %v871 = vunpack.c.h.b16 %v227
    %v872 = vunpack.c.l.b16 %v228
    %v873 = vunpack.c.h.b16 %v228
    %v874 = vunpack.c.l.b16 %v229
    %v875 = vunpack.c.h.b16 %v229
    %v876 = vunpack.c.l.b16 %v230
    %v877 = vunpack.c.h.b16 %v230
    %v878 = vunpack.c.l.b16 %v231
    %v879 = vunpack.c.h.b16 %v231
    %v880 = vunpack.c.l.b16 %v232
    %v881 = vunpack.c.h.b16 %v232
    %v882 = vunpack.c.l.b16 %v233
    %v883 = vunpack.c.h.b16 %v233
    %v884 = vunpack.c.l.b16 %v234
    %v885 = vunpack.c.h.b16 %v234
    %v886 = vunpack.c.l.b16 %v235
    %v887 = vunpack.c.h.b16 %v235
    %v888 = vunpack.c.l.b16 %v236
    %v889 = vunpack.c.h.b16 %v236
    %v890 = vunpack.c.l.b16 %v237
    %v891 = vunpack.c.h.b16 %v237
    %v892 = vunpack.c.l.b16 %v238
    %v893 = vunpack.c.h.b16 %v238
    %v894 = vunpack.c.l.b16 %v239
    %v895 = vunpack.c.h.b16 %v239
    %v896 = vunpack.c.l.b16 %v240
    %v897 = vunpack.c.h.b16 %v240
    %v898 = vunpack.c.l.b16 %v241
    %v899 = vunpack.c.h.b16 %v241
    %v900 = vunpack.c.l.b16 %v242
    %v901 = vunpack.c.h.b16 %v242
    %v902 = vunpack.c.l.b16 %v243
    %v903 = vunpack.c.h.b16 %v243
    %v904 = vunpack.c.l.b16 %v244
    %v905 = vunpack.c.h.b16 %v244
    %v906 = vunpack.c.l.b16 %v245
    %v907 = vunpack.c.h.b16 %v245
    %v908 = vunpack.c.l.b16 %v246
    %v909 = vunpack.c.h.b16 %v246
    %v910 = vunpack.c.l.b16 %v247
    %v911 = vunpack.c.h.b16 %v247
    %v912 = vunpack.c.l.b16 %v248
    %v913 = vunpack.c.h.b16 %v248
    %v914 = vunpack.c.l.b16 %v249
    %v915 = vunpack.c.h.b16 %v249
    %v916 = vunpack.c.l.b16 %v250
    %v917 = vunpack.c.h.b16 %v250
    %v918 = vunpack.c.l.b16 %v251
    %v919 = vunpack.c.h.b16 %v251
    %v920 = vunpack.c.l.b16 %v252
    %v921 = vunpack.c.h.b16 %v252
    %v922 = vunpack.c.l.b16 %v253
    %v923 = vunpack.c.h.b16 %v253
    %v924 = vunpack.c.l.b16 %v254
    %v925 = vunpack.c.h.b16 %v254
    %v926 = vunpack.c.l.b16 %v255
    %v927 = vunpack.c.h.b16 %v255
    %v928 = vunpack.c.l.b16 %v256
    %v929 = vunpack.c.h.b16 %v256
    %v930 = vunpack.c.l.b16 %v257
    %v931 = vunpack.c.h.b16 %v257
    %v932 = vunpack.c.l.b16 %v258
    %v933 = vunpack.c.h.b16 %v258
    %v934 = vunpack.c.l.b16 %v259
    %v935 = vunpack.c.h.b16 %v259
    %v936 = vunpack.c.l.b16 %v260
    %v937 = vunpack.c.h.b16 %v260
    %v938 = vpack.c.b16 %v550, %v546
    %v939 = vpack.c.b16 %v551, %v547
    %v940 = vpack.c.b16 %v552, %v548
    %v941 = vpack.c.b16 %v553, %v549
    %v942 = vpack.c.b16 %v558, %v554
    %v943 = vpack.c.b16 %v559, %v555
    %v944 = vpack.c.b16 %v560, %v556
    %v945 = vpack.c.b16 %v561, %v557
    %v946 = vpack.c.b16 %v566, %v562
    %v947 = vpack.c.b16 %v567, %v563
    %v948 = vpack.c.b16 %v568, %v564
    %v949 = vpack.c.b16 %v569, %v565
    %v950 = vpack.c.b16 %v574, %v570
    %v951 = vpack.c.b16 %v575, %v571
    %v952 = vpack.c.b16 %v576, %v572
    %v953 = vpack.c.b16 %v577, %v573
    %v954 = vpack.c.b16 %v582, %v578
    %v955 = vpack.c.b16 %v583, %v579
    %v956 = vpack.c.b16 %v584, %v580
    %v957 = vpack.c.b16 %v585, %v581
    %v958 = vpack.c.b16 %v590, %v586
    %v959 = vpack.c.b16 %v591, %v587
    %v960 = vpack.c.b16 %v592, %v588
    %v961 = vpack.c.b16 %v593, %v589
    %v962 = vpack.c.b16 %v598, %v594
    %v963 = vpack.c.b16 %v599, %v595
    %v964 = vpack.c.b16 %v600, %v596
    %v965 = vpack.c.b16 %v601, %v597
    %v966 = vpack.c.b16 %v606, %v602
    %v967 = vpack.c.b16 %v607, %v603
    %v968 = vpack.c.b16 %v608, %v604
    %v969 = vpack.c.b16 %v609, %v605
    %v970 = vpack.c.b16 %v614, %v610
    %v971 = vpack.c.b16 %v615, %v611
    %v972 = vpack.c.b16 %v616, %v612
    %v973 = vpack.c.b16 %v617, %v613
    %v974 = vpack.c.b16 %v622, %v618
    %v975 = vpack.c.b16 %v623, %v619
    %v976 = vpack.c.b16 %v624, %v620
    %v977 = vpack.c.b16 %v625, %v621
    %v978 = vpack.c.b16 %v630, %v626
    %v979 = vpack.c.b16 %v631, %v627
    %v980 = vpack.c.b16 %v632, %v628
    %v981 = vpack.c.b16 %v633, %v629
    %v982 = vpack.c.b16 %v638, %v634
    %v983 = vpack.c.b16 %v639, %v635
    %v984 = vpack.c.b16 %v640, %v636
    %v985 = vpack.c.b16 %v641, %v637
    %v986 = vpack.c.b16 %v646, %v642
    %v987 = vpack.c.b16 %v647, %v643
    %v988 = vpack.c.b16 %v648, %v644
    %v989 = vpack.c.b16 %v649, %v645
    %v990 = vpack.c.b16 %v654, %v650
    %v991 = vpack.c.b16 %v655, %v651
    %v992 = vpack.c.b16 %v656, %v652
    %v993 = vpack.c.b16 %v657, %v653
    %v994 = vpack.c.b16 %v662, %v658
    %v995 = vpack.c.b16 %v663, %v659
    %v996 = vpack.c.b16 %v664, %v660
    %v997 = vpack.c.b16 %v665, %v661
    %v998 = vpack.c.b16 %v670, %v666
    %v999 = vpack.c.b16 %v671, %v667
    %v1000 = vpack.c.b16 %v672, %v668
    %v1001 = vpack.c.b16 %v673, %v669
    %v1002 = vpack.c.b16 %v678, %v674
    %v1003 = vpack.c.b16 %v679, %v675
    %v1004 = vpack.c.b16 %v680, %v676
    %v1005 = vpack.c.b16 %v681, %v677
    %v1006 = vpack.c.b16 %v686, %v682
    %v1007 = vpack.c.b16 %v687, %v683
    %v1008 = vpack.c.b16 %v688, %v684
    %v1009 = vpack.c.b16 %v689, %v685
    %v1010 = vpack.c.b16 %v694, %v690
    %v1011 = vpack.c.b16 %v695, %v691
    %v1012 = vpack.c.b16 %v696, %v692
    %v1013 = vpack.c.b16 %v697, %v693
    %v1014 = vpack.c.b16 %v702, %v698
    %v1015 = vpack.c.b16 %v703, %v699
    %v1016 = vpack.c.b16 %v704, %v700
    %v1017 = vpack.c.b16 %v705, %v701
    %v1018 = vpack.c.b16 %v710, %v706
    %v1019 = vpack.c.b16 %v711, %v707
    %v1020 = vpack.c.b16 %v712, %v708
    %v1021 = vpack.c.b16 %v713, %v709
    %v1022 = vpack.c.b16 %v718, %v714
    %v1023 = vpack.c.b16 %v719, %v715
    %v1024 = vpack.c.b16 %v720, %v716
    %v1025 = vpack.c.b16 %v721, %v717
    %v1026 = vpack.c.b16 %v726, %v722
    %v1027 = vpack.c.b16 %v727, %v723
    %v1028 = vpack.c.b16 %v728, %v724
    %v1029 = vpack.c.b16 %v729, %v725
    %v1030 = vpack.c.b16 %v734, %v730
    %v1031 = vpack.c.b16 %v735, %v731
    %v1032 = vpack.c.b16 %v736, %v732
    %v1033 = vpack.c.b16 %v737, %v733
    %v1034 = vpack.c.b16 %v742, %v738
    %v1035 = vpack.c.b16 %v743, %v739
    %v1036 = vpack.c.b16 %v744, %v740
    %v1037 = vpack.c.b16 %v745, %v741
    %v1038 = vpack.c.b16 %v750, %v746
    %v1039 = vpack.c.b16 %v751, %v747
    %v1040 = vpack.c.b16 %v752, %v748
    %v1041 = vpack.c.b16 %v753, %v749
    %v1042 = vpack.c.b16 %v758, %v754
    %v1043 = vpack.c.b16 %v759, %v755
    %v1044 = vpack.c.b16 %v760, %v756
    %v1045 = vpack.c.b16 %v761, %v757
    %v1046 = vpack.c.b16 %v766, %v762
    %v1047 = vpack.c.b16 %v767, %v763
    %v1048 = vpack.c.b16 %v768, %v764
    %v1049 = vpack.c.b16 %v769, %v765
    %v1050 = vpack.c.b16 %v774, %v770
    %v1051 = vpack.c.b16 %v775, %v771
    %v1052 = vpack.c.b16 %v776, %v772
    %v1053 = vpack.c.b16 %v777, %v773
    %v1054 = vpack.c.b16 %v782, %v778
    %v1055 = vpack.c.b16 %v783, %v779
    %v1056 = vpack.c.b16 %v784, %v780
    %v1057 = vpack.c.b16 %v785, %v781
    %v1058 = vpack.c.b16 %v790, %v786
    %v1059 = vpack.c.b16 %v791, %v787
    %v1060 = vpack.c.b16 %v792, %v788
    %v1061 = vpack.c.b16 %v793, %v789
    %v1062 = vpack.c.b16 %v798, %v794
    %v1063 = vpack.c.b16 %v799, %v795
    %v1064 = vpack.c.b16 %v800, %v796
    %v1065 = vpack.c.b16 %v801, %v797
    %v1066 = vpack.c.b16 %v806, %v802
    %v1067 = vpack.c.b16 %v807, %v803
    %v1068 = vpack.c.b16 %v808, %v804
    %v1069 = vpack.c.b16 %v809, %v805
    %v1070 = vpack.c.b16 %v814, %v810
    %v1071 = vpack.c.b16 %v815, %v811
    %v1072 = vpack.c.b16 %v816, %v812
    %v1073 = vpack.c.b16 %v817, %v813
    %v1074 = vpack.c.b16 %v822, %v818
    %v1075 = vpack.c.b16 %v823, %v819
    %v1076 = vpack.c.b16 %v824, %v820
    %v1077 = vpack.c.b16 %v825, %v821
    %v1078 = vpack.c.b16 %v830, %v826
    %v1079 = vpack.c.b16 %v831, %v827
    %v1080 = vpack.c.b16 %v832, %v828
    %v1081 = vpack.c.b16 %v833, %v829
    %v1082 = vpack.c.b16 %v838, %v834
    %v1083 = vpack.c.b16 %v839, %v835
    %v1084 = vpack.c.b16 %v840, %v836
    %v1085 = vpack.c.b16 %v841, %v837
    %v1086 = vpack.c.b16 %v846, %v842
    %v1087 = vpack.c.b16 %v847, %v843
    %v1088 = vpack.c.b16 %v848, %v844
    %v1089 = vpack.c.b16 %v849, %v845
    %v1090 = vpack.c.b16 %v854, %v850
    %v1091 = vpack.c.b16 %v855, %v851
    %v1092 = vpack.c.b16 %v856, %v852
    %v1093 = vpack.c.b16 %v857, %v853
    %v1094 = vpack.c.b16 %v862, %v858
    %v1095 = vpack.c.b16 %v863, %v859
    %v1096 = vpack.c.b16 %v864, %v860
    %v1097 = vpack.c.b16 %v865, %v861
    %v1098 = vpack.c.b16 %v870, %v866
    %v1099 = vpack.c.b16 %v871, %v867
    %v1100 = vpack.c.b16 %v872, %v868
    %v1101 = vpack.c.b16 %v873, %v869
    %v1102 = vpack.c.b16 %v878, %v874
    %v1103 = vpack.c.b16 %v879, %v875
    %v1104 = vpack.c.b16 %v880, %v876
    %v1105 = vpack.c.b16 %v881, %v877
    %v1106 = vpack.c.b16 %v886, %v882
    %v1107 = vpack.c.b16 %v887, %v883
    %v1108 = vpack.c.b16 %v888, %v884
    %v1109 = vpack.c.b16 %v889, %v885
    %v1110 = vpack.c.b16 %v894, %v890
    %v1111 = vpack.c.b16 %v895, %v891
    %v1112 = vpack.c.b16 %v896, %v892
    %v1113 = vpack.c.b16 %v897, %v893
    %v1114 = vpack.c.b16 %v902, %v898
    %v1115 = vpack.c.b16 %v903, %v899
    %v1116 = vpack.c.b16 %v904, %v900
    %v1117 = vpack.c.b16 %v905, %v901
    %v1118 = vpack.c.b16 %v910, %v906
    %v1119 = vpack.c.b16 %v911, %v907
    %v1120 = vpack.c.b16 %v912, %v908
    %v1121 = vpack.c.b16 %v913, %v909
    %v1122 = vpack.c.b16 %v918, %v914
    %v1123 = vpack.c.b16 %v919, %v915
    %v1124 = vpack.c.b16 %v920, %v916
    %v1125 = vpack.c.b16 %v921, %v917
    %v1126 = vpack.c.b16 %v926, %v922
    %v1127 = vpack.c.b16 %v927, %v923
    %v1128 = vpack.c.b16 %v928, %v924
    %v1129 = vpack.c.b16 %v929, %v925
    %v1130 = vpack.c.b16 %v934, %v930
    %v1131 = vpack.c.b16 %v935, %v931
    %v1132 = vpack.c.b16 %v936, %v932
    %v1133 = vpack.c.b16 %v937, %v933
    %vm1330 = vcmask 130048
    %v1332 = vsel %vm1330, %v64, 0
    %1334 = vmatpush.bf16.msra.mxu0 %v966
    %1335 = vmatpush.bf16.msra.mxu0 %v962
    %1336 = vmatpush.bf16.msra.mxu0 %v958
    %1337 = vmatpush.bf16.msra.mxu0 %v954
    %1338 = vmatpush.bf16.msra.mxu0 %v950
    %1339 = vmatpush.bf16.msra.mxu0 %v946
    %1340 = vmatpush.bf16.msra.mxu0 %v942
    %1341 = vmatpush.bf16.msra.mxu0 %v938
    %1342 = vmatmul.bf16.gmra.mxu0 %v58
    %v1343 = vpop.f32.mrf.mxu0
    %v1344 = vadd.f32 %v308, %v1343
    %v1345 = vpop.f32.mrf.mxu0
    %1346 = vdwg.mxu0
    %1347 = vmatpush.bf16.msra.mxu0 %v998
    %1348 = vmatpush.bf16.msra.mxu0 %v994
    %1349 = vmatpush.bf16.msra.mxu0 %v990
    %1350 = vmatpush.bf16.msra.mxu0 %v986
    %1351 = vmatpush.bf16.msra.mxu0 %v982
    %1352 = vmatpush.bf16.msra.mxu0 %v978
    %1353 = vmatpush.bf16.msra.mxu0 %v974
    %1354 = vmatpush.bf16.msra.mxu0 %v970
    %1355 = vmatmul.bf16.gmra.mxu0 %v59
    %v1356 = vpop.f32.mrf.mxu0
    %v1357 = vadd.f32 %v1344, %v1356
    %v1358 = vpop.f32.mrf.mxu0
    %1359 = vdwg.mxu0
    %1360 = vmatpush.bf16.msra.mxu0 %v1030
    %1361 = vmatpush.bf16.msra.mxu0 %v1026
    %1362 = vmatpush.bf16.msra.mxu0 %v1022
    %1363 = vmatpush.bf16.msra.mxu0 %v1018
    %1364 = vmatpush.bf16.msra.mxu0 %v1014
    %1365 = vmatpush.bf16.msra.mxu0 %v1010
    %1366 = vmatpush.bf16.msra.mxu0 %v1006
    %1367 = vmatpush.bf16.msra.mxu0 %v1002
    %1368 = vmatmul.bf16.gmra.mxu0 %v60
    %v1369 = vpop.f32.mrf.mxu0
    %v1370 = vadd.f32 %v1357, %v1369
    %v1371 = vpop.f32.mrf.mxu0
    %1372 = vdwg.mxu0
    %1373 = vmatpush.bf16.msra.mxu0 %v1062
    %1374 = vmatpush.bf16.msra.mxu0 %v1058
    %1375 = vmatpush.bf16.msra.mxu0 %v1054
    %1376 = vmatpush.bf16.msra.mxu0 %v1050
    %1377 = vmatpush.bf16.msra.mxu0 %v1046
    %1378 = vmatpush.bf16.msra.mxu0 %v1042
    %1379 = vmatpush.bf16.msra.mxu0 %v1038
    %1380 = vmatpush.bf16.msra.mxu0 %v1034
    %1381 = vmatmul.bf16.gmra.mxu0 %v61
    %v1382 = vpop.f32.mrf.mxu0
    %v1383 = vadd.f32 %v1370, %v1382
    %v1384 = vpop.f32.mrf.mxu0
    %1385 = vdwg.mxu0
    %1386 = vmatpush.bf16.msra.mxu0 %v1094
    %1387 = vmatpush.bf16.msra.mxu0 %v1090
    %1388 = vmatpush.bf16.msra.mxu0 %v1086
    %1389 = vmatpush.bf16.msra.mxu0 %v1082
    %1390 = vmatpush.bf16.msra.mxu0 %v1078
    %1391 = vmatpush.bf16.msra.mxu0 %v1074
    %1392 = vmatpush.bf16.msra.mxu0 %v1070
    %1393 = vmatpush.bf16.msra.mxu0 %v1066
    %1394 = vmatmul.bf16.gmra.mxu0 %v62
    %v1395 = vpop.f32.mrf.mxu0
    %v1396 = vadd.f32 %v1383, %v1395
    %v1397 = vpop.f32.mrf.mxu0
    %1398 = vdwg.mxu0
    %1399 = vmatpush.bf16.msra.mxu0 %v1126
    %1400 = vmatpush.bf16.msra.mxu0 %v1122
    %1401 = vmatpush.bf16.msra.mxu0 %v1118
    %1402 = vmatpush.bf16.msra.mxu0 %v1114
    %1403 = vmatpush.bf16.msra.mxu0 %v1110
    %1404 = vmatpush.bf16.msra.mxu0 %v1106
    %1405 = vmatpush.bf16.msra.mxu0 %v1102
    %1406 = vmatpush.bf16.msra.mxu0 %v1098
    %1407 = vmatmul.bf16.gmra.mxu0 %v63
    %v1408 = vpop.f32.mrf.mxu0
    %v1409 = vadd.f32 %v1396, %v1408
    %v1410 = vpop.f32.mrf.mxu0
    %1411 = vdwg.mxu0
    %1412 = vmatpush.bf16.msra.mxu0 0
    %1413 = vmatpush.bf16.msra.mxu0 0
    %1414 = vmatpush.bf16.msra.mxu0 0
    %1415 = vmatpush.bf16.msra.mxu0 0
    %1416 = vmatpush.bf16.msra.mxu0 0
    %1417 = vmatpush.bf16.msra.mxu0 0
    %1418 = vmatpush.bf16.msra.mxu0 0
    %1419 = vmatpush.bf16.msra.mxu0 %v1130
    %1420 = vmatmul.bf16.gmra.mxu0 %v1332
    %v1421 = vpop.f32.mrf.mxu0
    %v1422 = vadd.f32 %v1409, %v1421
    %v1423 = vpop.f32.mrf.mxu0
    %1424 = vdwg.mxu0
    %1425 = vmatpush.bf16.msra.mxu0 %v967
    %1426 = vmatpush.bf16.msra.mxu0 %v963
    %1427 = vmatpush.bf16.msra.mxu0 %v959
    %1428 = vmatpush.bf16.msra.mxu0 %v955
    %1429 = vmatpush.bf16.msra.mxu0 %v951
    %1430 = vmatpush.bf16.msra.mxu0 %v947
    %1431 = vmatpush.bf16.msra.mxu0 %v943
    %1432 = vmatpush.bf16.msra.mxu0 %v939
    %1433 = vmatmul.bf16.gmra.mxu0 %v58
    %v1434 = vpop.f32.mrf.mxu0
    %v1435 = vadd.f32 %v321, %v1434
    %v1436 = vpop.f32.mrf.mxu0
    %1437 = vdwg.mxu0
    %1438 = vmatpush.bf16.msra.mxu0 %v999
    %1439 = vmatpush.bf16.msra.mxu0 %v995
    %1440 = vmatpush.bf16.msra.mxu0 %v991
    %1441 = vmatpush.bf16.msra.mxu0 %v987
    %1442 = vmatpush.bf16.msra.mxu0 %v983
    %1443 = vmatpush.bf16.msra.mxu0 %v979
    %1444 = vmatpush.bf16.msra.mxu0 %v975
    %1445 = vmatpush.bf16.msra.mxu0 %v971
    %1446 = vmatmul.bf16.gmra.mxu0 %v59
    %v1447 = vpop.f32.mrf.mxu0
    %v1448 = vadd.f32 %v1435, %v1447
    %v1449 = vpop.f32.mrf.mxu0
    %1450 = vdwg.mxu0
    %1451 = vmatpush.bf16.msra.mxu0 %v1031
    %1452 = vmatpush.bf16.msra.mxu0 %v1027
    %1453 = vmatpush.bf16.msra.mxu0 %v1023
    %1454 = vmatpush.bf16.msra.mxu0 %v1019
    %1455 = vmatpush.bf16.msra.mxu0 %v1015
    %1456 = vmatpush.bf16.msra.mxu0 %v1011
    %1457 = vmatpush.bf16.msra.mxu0 %v1007
    %1458 = vmatpush.bf16.msra.mxu0 %v1003
    %1459 = vmatmul.bf16.gmra.mxu0 %v60
    %v1460 = vpop.f32.mrf.mxu0
    %v1461 = vadd.f32 %v1448, %v1460
    %v1462 = vpop.f32.mrf.mxu0
    %1463 = vdwg.mxu0
    %1464 = vmatpush.bf16.msra.mxu0 %v1063
    %1465 = vmatpush.bf16.msra.mxu0 %v1059
    %1466 = vmatpush.bf16.msra.mxu0 %v1055
    %1467 = vmatpush.bf16.msra.mxu0 %v1051
    %1468 = vmatpush.bf16.msra.mxu0 %v1047
    %1469 = vmatpush.bf16.msra.mxu0 %v1043
    %1470 = vmatpush.bf16.msra.mxu0 %v1039
    %1471 = vmatpush.bf16.msra.mxu0 %v1035
    %1472 = vmatmul.bf16.gmra.mxu0 %v61
    %v1473 = vpop.f32.mrf.mxu0
    %v1474 = vadd.f32 %v1461, %v1473
    %v1475 = vpop.f32.mrf.mxu0
    %1476 = vdwg.mxu0
    %1477 = vmatpush.bf16.msra.mxu0 %v1095
    %1478 = vmatpush.bf16.msra.mxu0 %v1091
    %1479 = vmatpush.bf16.msra.mxu0 %v1087
    %1480 = vmatpush.bf16.msra.mxu0 %v1083
    %1481 = vmatpush.bf16.msra.mxu0 %v1079
    %1482 = vmatpush.bf16.msra.mxu0 %v1075
    %1483 = vmatpush.bf16.msra.mxu0 %v1071
    %1484 = vmatpush.bf16.msra.mxu0 %v1067
    %1485 = vmatmul.bf16.gmra.mxu0 %v62
    %v1486 = vpop.f32.mrf.mxu0
    %v1487 = vadd.f32 %v1474, %v1486
    %v1488 = vpop.f32.mrf.mxu0
    %1489 = vdwg.mxu0
    %1490 = vmatpush.bf16.msra.mxu0 %v1127
    %1491 = vmatpush.bf16.msra.mxu0 %v1123
    %1492 = vmatpush.bf16.msra.mxu0 %v1119
    %1493 = vmatpush.bf16.msra.mxu0 %v1115
    %1494 = vmatpush.bf16.msra.mxu0 %v1111
    %1495 = vmatpush.bf16.msra.mxu0 %v1107
    %1496 = vmatpush.bf16.msra.mxu0 %v1103
    %1497 = vmatpush.bf16.msra.mxu0 %v1099
    %1498 = vmatmul.bf16.gmra.mxu0 %v63
    %v1499 = vpop.f32.mrf.mxu0
    %v1500 = vadd.f32 %v1487, %v1499
    %v1501 = vpop.f32.mrf.mxu0
    %1502 = vdwg.mxu0
    %1503 = vmatpush.bf16.msra.mxu0 0
    %1504 = vmatpush.bf16.msra.mxu0 0
    %1505 = vmatpush.bf16.msra.mxu0 0
    %1506 = vmatpush.bf16.msra.mxu0 0
    %1507 = vmatpush.bf16.msra.mxu0 0
    %1508 = vmatpush.bf16.msra.mxu0 0
    %1509 = vmatpush.bf16.msra.mxu0 0
    %1510 = vmatpush.bf16.msra.mxu0 %v1131
    %1511 = vmatmul.bf16.gmra.mxu0 %v1332
    %v1512 = vpop.f32.mrf.mxu0
    %v1513 = vadd.f32 %v1500, %v1512
    %v1514 = vpop.f32.mrf.mxu0
    %1515 = vdwg.mxu0
    %1516 = vmatpush.bf16.msra.mxu0 %v968
    %1517 = vmatpush.bf16.msra.mxu0 %v964
    %1518 = vmatpush.bf16.msra.mxu0 %v960
    %1519 = vmatpush.bf16.msra.mxu0 %v956
    %1520 = vmatpush.bf16.msra.mxu0 %v952
    %1521 = vmatpush.bf16.msra.mxu0 %v948
    %1522 = vmatpush.bf16.msra.mxu0 %v944
    %1523 = vmatpush.bf16.msra.mxu0 %v940
    %1524 = vmatmul.bf16.gmra.mxu0 %v58
    %v1525 = vpop.f32.mrf.mxu0
    %v1526 = vadd.f32 %v334, %v1525
    %v1527 = vpop.f32.mrf.mxu0
    %1528 = vdwg.mxu0
    %1529 = vmatpush.bf16.msra.mxu0 %v1000
    %1530 = vmatpush.bf16.msra.mxu0 %v996
    %1531 = vmatpush.bf16.msra.mxu0 %v992
    %1532 = vmatpush.bf16.msra.mxu0 %v988
    %1533 = vmatpush.bf16.msra.mxu0 %v984
    %1534 = vmatpush.bf16.msra.mxu0 %v980
    %1535 = vmatpush.bf16.msra.mxu0 %v976
    %1536 = vmatpush.bf16.msra.mxu0 %v972
    %1537 = vmatmul.bf16.gmra.mxu0 %v59
    %v1538 = vpop.f32.mrf.mxu0
    %v1539 = vadd.f32 %v1526, %v1538
    %v1540 = vpop.f32.mrf.mxu0
    %1541 = vdwg.mxu0
    %1542 = vmatpush.bf16.msra.mxu0 %v1032
    %1543 = vmatpush.bf16.msra.mxu0 %v1028
    %1544 = vmatpush.bf16.msra.mxu0 %v1024
    %1545 = vmatpush.bf16.msra.mxu0 %v1020
    %1546 = vmatpush.bf16.msra.mxu0 %v1016
    %1547 = vmatpush.bf16.msra.mxu0 %v1012
    %1548 = vmatpush.bf16.msra.mxu0 %v1008
    %1549 = vmatpush.bf16.msra.mxu0 %v1004
    %1550 = vmatmul.bf16.gmra.mxu0 %v60
    %v1551 = vpop.f32.mrf.mxu0
    %v1552 = vadd.f32 %v1539, %v1551
    %v1553 = vpop.f32.mrf.mxu0
    %1554 = vdwg.mxu0
    %1555 = vmatpush.bf16.msra.mxu0 %v1064
    %1556 = vmatpush.bf16.msra.mxu0 %v1060
    %1557 = vmatpush.bf16.msra.mxu0 %v1056
    %1558 = vmatpush.bf16.msra.mxu0 %v1052
    %1559 = vmatpush.bf16.msra.mxu0 %v1048
    %1560 = vmatpush.bf16.msra.mxu0 %v1044
    %1561 = vmatpush.bf16.msra.mxu0 %v1040
    %1562 = vmatpush.bf16.msra.mxu0 %v1036
    %1563 = vmatmul.bf16.gmra.mxu0 %v61
    %v1564 = vpop.f32.mrf.mxu0
    %v1565 = vadd.f32 %v1552, %v1564
    %v1566 = vpop.f32.mrf.mxu0
    %1567 = vdwg.mxu0
    %1568 = vmatpush.bf16.msra.mxu0 %v1096
    %1569 = vmatpush.bf16.msra.mxu0 %v1092
    %1570 = vmatpush.bf16.msra.mxu0 %v1088
    %1571 = vmatpush.bf16.msra.mxu0 %v1084
    %1572 = vmatpush.bf16.msra.mxu0 %v1080
    %1573 = vmatpush.bf16.msra.mxu0 %v1076
    %1574 = vmatpush.bf16.msra.mxu0 %v1072
    %1575 = vmatpush.bf16.msra.mxu0 %v1068
    %1576 = vmatmul.bf16.gmra.mxu0 %v62
    %v1577 = vpop.f32.mrf.mxu0
    %v1578 = vadd.f32 %v1565, %v1577
    %v1579 = vpop.f32.mrf.mxu0
    %1580 = vdwg.mxu0
    %1581 = vmatpush.bf16.msra.mxu0 %v1128
    %1582 = vmatpush.bf16.msra.mxu0 %v1124
    %1583 = vmatpush.bf16.msra.mxu0 %v1120
    %1584 = vmatpush.bf16.msra.mxu0 %v1116
    %1585 = vmatpush.bf16.msra.mxu0 %v1112
    %1586 = vmatpush.bf16.msra.mxu0 %v1108
    %1587 = vmatpush.bf16.msra.mxu0 %v1104
    %1588 = vmatpush.bf16.msra.mxu0 %v1100
    %1589 = vmatmul.bf16.gmra.mxu0 %v63
    %v1590 = vpop.f32.mrf.mxu0
    %v1591 = vadd.f32 %v1578, %v1590
    %v1592 = vpop.f32.mrf.mxu0
    %1593 = vdwg.mxu0
    %1594 = vmatpush.bf16.msra.mxu0 0
    %1595 = vmatpush.bf16.msra.mxu0 0
    %1596 = vmatpush.bf16.msra.mxu0 0
    %1597 = vmatpush.bf16.msra.mxu0 0
    %1598 = vmatpush.bf16.msra.mxu0 0
    %1599 = vmatpush.bf16.msra.mxu0 0
    %1600 = vmatpush.bf16.msra.mxu0 0
    %1601 = vmatpush.bf16.msra.mxu0 %v1132
    %1602 = vmatmul.bf16.gmra.mxu0 %v1332
    %v1603 = vpop.f32.mrf.mxu0
    %v1604 = vadd.f32 %v1591, %v1603
    %v1605 = vpop.f32.mrf.mxu0
    %1606 = vdwg.mxu0
    %1607 = vmatpush.bf16.msra.mxu0 %v969
    %1608 = vmatpush.bf16.msra.mxu0 %v965
    %1609 = vmatpush.bf16.msra.mxu0 %v961
    %1610 = vmatpush.bf16.msra.mxu0 %v957
    %1611 = vmatpush.bf16.msra.mxu0 %v953
    %1612 = vmatpush.bf16.msra.mxu0 %v949
    %1613 = vmatpush.bf16.msra.mxu0 %v945
    %1614 = vmatpush.bf16.msra.mxu0 %v941
    %1615 = vmatmul.bf16.gmra.mxu0 %v58
    %v1616 = vpop.f32.mrf.mxu0
    %v1617 = vadd.f32 %v347, %v1616
    %v1618 = vpop.f32.mrf.mxu0
    %1619 = vdwg.mxu0
    %1620 = vmatpush.bf16.msra.mxu0 %v1001
    %1621 = vmatpush.bf16.msra.mxu0 %v997
    %1622 = vmatpush.bf16.msra.mxu0 %v993
    %1623 = vmatpush.bf16.msra.mxu0 %v989
    %1624 = vmatpush.bf16.msra.mxu0 %v985
    %1625 = vmatpush.bf16.msra.mxu0 %v981
    %1626 = vmatpush.bf16.msra.mxu0 %v977
    %1627 = vmatpush.bf16.msra.mxu0 %v973
    %1628 = vmatmul.bf16.gmra.mxu0 %v59
    %v1629 = vpop.f32.mrf.mxu0
    %v1630 = vadd.f32 %v1617, %v1629
    %v1631 = vpop.f32.mrf.mxu0
    %1632 = vdwg.mxu0
    %1633 = vmatpush.bf16.msra.mxu0 %v1033
    %1634 = vmatpush.bf16.msra.mxu0 %v1029
    %1635 = vmatpush.bf16.msra.mxu0 %v1025
    %1636 = vmatpush.bf16.msra.mxu0 %v1021
    %1637 = vmatpush.bf16.msra.mxu0 %v1017
    %1638 = vmatpush.bf16.msra.mxu0 %v1013
    %1639 = vmatpush.bf16.msra.mxu0 %v1009
    %1640 = vmatpush.bf16.msra.mxu0 %v1005
    %1641 = vmatmul.bf16.gmra.mxu0 %v60
    %v1642 = vpop.f32.mrf.mxu0
    %v1643 = vadd.f32 %v1630, %v1642
    %v1644 = vpop.f32.mrf.mxu0
    %1645 = vdwg.mxu0
    %1646 = vmatpush.bf16.msra.mxu0 %v1065
    %1647 = vmatpush.bf16.msra.mxu0 %v1061
    %1648 = vmatpush.bf16.msra.mxu0 %v1057
    %1649 = vmatpush.bf16.msra.mxu0 %v1053
    %1650 = vmatpush.bf16.msra.mxu0 %v1049
    %1651 = vmatpush.bf16.msra.mxu0 %v1045
    %1652 = vmatpush.bf16.msra.mxu0 %v1041
    %1653 = vmatpush.bf16.msra.mxu0 %v1037
    %1654 = vmatmul.bf16.gmra.mxu0 %v61
    %v1655 = vpop.f32.mrf.mxu0
    %v1656 = vadd.f32 %v1643, %v1655
    %v1657 = vpop.f32.mrf.mxu0
    %1658 = vdwg.mxu0
    %1659 = vmatpush.bf16.msra.mxu0 %v1097
    %1660 = vmatpush.bf16.msra.mxu0 %v1093
    %1661 = vmatpush.bf16.msra.mxu0 %v1089
    %1662 = vmatpush.bf16.msra.mxu0 %v1085
    %1663 = vmatpush.bf16.msra.mxu0 %v1081
    %1664 = vmatpush.bf16.msra.mxu0 %v1077
    %1665 = vmatpush.bf16.msra.mxu0 %v1073
    %1666 = vmatpush.bf16.msra.mxu0 %v1069
    %1667 = vmatmul.bf16.gmra.mxu0 %v62
    %v1668 = vpop.f32.mrf.mxu0
    %v1669 = vadd.f32 %v1656, %v1668
    %v1670 = vpop.f32.mrf.mxu0
    %1671 = vdwg.mxu0
    %1672 = vmatpush.bf16.msra.mxu0 %v1129
    %1673 = vmatpush.bf16.msra.mxu0 %v1125
    %1674 = vmatpush.bf16.msra.mxu0 %v1121
    %1675 = vmatpush.bf16.msra.mxu0 %v1117
    %1676 = vmatpush.bf16.msra.mxu0 %v1113
    %1677 = vmatpush.bf16.msra.mxu0 %v1109
    %1678 = vmatpush.bf16.msra.mxu0 %v1105
    %1679 = vmatpush.bf16.msra.mxu0 %v1101
    %1680 = vmatmul.bf16.gmra.mxu0 %v63
    %v1681 = vpop.f32.mrf.mxu0
    %v1682 = vadd.f32 %v1669, %v1681
    %v1683 = vpop.f32.mrf.mxu0
    %1684 = vdwg.mxu0
    %1685 = vmatpush.bf16.msra.mxu0 0
    %1686 = vmatpush.bf16.msra.mxu0 0
    %1687 = vmatpush.bf16.msra.mxu0 0
    %1688 = vmatpush.bf16.msra.mxu0 0
    %1689 = vmatpush.bf16.msra.mxu0 0
    %1690 = vmatpush.bf16.msra.mxu0 0
    %1691 = vmatpush.bf16.msra.mxu0 0
    %1692 = vmatpush.bf16.msra.mxu0 %v1133
    %1693 = vmatmul.bf16.gmra.mxu0 %v1332
    %v1694 = vpop.f32.mrf.mxu0
    %v1695 = vadd.f32 %v1682, %v1694
    %v1696 = vpop.f32.mrf.mxu0
    %1697 = vdwg.mxu0
    %v1698 = vld [vmem:[%s5] sm:$0xf]
    %v1700 = vperm.slane %v1698, 0
    %v1701 = vperm.slane %v1698, 1
    %v1702 = vperm.slane %v1698, 2
    %v1703 = vperm.slane %v1698, 3
    %v1708 = vadd.f32 %v1422, %v1700
    %v1709 = vadd.f32 %v1513, %v1701
    %v1710 = vadd.f32 %v1604, %v1702
    %v1711 = vadd.f32 %v1695, %v1703
    %vm1712 = vcmp.gt.f32.partialorder %v1708, 0.0
    %vm1713 = vcmp.gt.f32.partialorder %v1709, 0.0
    %vm1714 = vcmp.gt.f32.partialorder %v1710, 0.0
    %vm1715 = vcmp.gt.f32.partialorder %v1711, 0.0
    %v1716 = vmul.f32 %v1708, 0.2
    %v1717 = vmul.f32 %v1709, 0.2
    %v1718 = vmul.f32 %v1710, 0.2
    %v1719 = vmul.f32 %v1711, 0.2
    %v1720 = vsel %vm1712, %v1708, %v1716
    %v1721 = vsel %vm1713, %v1709, %v1717
    %v1722 = vsel %vm1714, %v1710, %v1718
    %v1723 = vsel %vm1715, %v1711, %v1719
    %v1724 = vpack.c.bf16 %v1720, %v1720
    %v1725 = vpack.c.bf16 %v1721, %v1721
    %v1726 = vpack.c.bf16 %v1722, %v1722
    %v1727 = vpack.c.bf16 %v1723, %v1723
    %v1728 = vld [vmem:[%s6] sm:$0xf]
    %v1729 = vld [vmem:[%s6 + $0x4] sm:$0xf]
    %v1730 = vld [vmem:[%s6 + $0x8] sm:$0xf]
    %v1731 = vld [vmem:[%s6 + $0xc] sm:$0xf]
    %v1732 = vld [vmem:[%s6 + $0x10] sm:$0xf]
    %v1733 = vld [vmem:[%s6 + $0x14] sm:$0xf]
    %v1734 = vld [vmem:[%s6 + $0x18] sm:$0xf]
    %v1735 = vld [vmem:[%s6 + $0x1c] sm:$0xf]
    %v1736 = vld [vmem:[%s6 + $0x20] sm:$0xf]
    %v1737 = vld [vmem:[%s6 + $0x24] sm:$0xf]
    %v1738 = vld [vmem:[%s6 + $0x28] sm:$0xf]
    %v1739 = vld [vmem:[%s6 + $0x2c] sm:$0xf]
    %v1740 = vld [vmem:[%s6 + $0x30] sm:$0xf]
    %v1741 = vld [vmem:[%s6 + $0x34] sm:$0xf]
    %v1742 = vld [vmem:[%s6 + $0x38] sm:$0xf]
    %v1743 = vld [vmem:[%s6 + $0x3c] sm:$0xf]
    %v1744 = vld [vmem:[%s6 + $0x40] sm:$0xf]
    %v1745 = vld [vmem:[%s6 + $0x44] sm:$0xf]
    %v1746 = vld [vmem:[%s6 + $0x48] sm:$0xf]
    %v1747 = vld [vmem:[%s6 + $0x4c] sm:$0xf]
    %v1748 = vld [vmem:[%s6 + $0x50] sm:$0xf]
    %v1749 = vld [vmem:[%s6 + $0x54] sm:$0xf]
    %v1750 = vld [vmem:[%s6 + $0x58] sm:$0xf]
    %v1751 = vld [vmem:[%s6 + $0x5c] sm:$0xf]
    %v1752 = vld [vmem:[%s6 + $0x60] sm:$0xf]
    %v1753 = vld [vmem:[%s6 + $0x64] sm:$0xf]
    %v1754 = vld [vmem:[%s6 + $0x68] sm:$0xf]
    %v1755 = vld [vmem:[%s6 + $0x6c] sm:$0xf]
    %v1756 = vld [vmem:[%s6 + $0x70] sm:$0xf]
    %v1757 = vld [vmem:[%s6 + $0x74] sm:$0xf]
    %v1758 = vld [vmem:[%s6 + $0x78] sm:$0xf]
    %v1759 = vld [vmem:[%s6 + $0x7c] sm:$0xf]
    %v1760 = vld [vmem:[%s6 + $0x80] sm:$0xf]
    %v1761 = vld [vmem:[%s6 + $0x84] sm:$0xf]
    %v1762 = vld [vmem:[%s6 + $0x88] sm:$0xf]
    %v1763 = vld [vmem:[%s6 + $0x8c] sm:$0xf]
    %v1764 = vld [vmem:[%s6 + $0x90] sm:$0xf]
    %v1765 = vld [vmem:[%s6 + $0x94] sm:$0xf]
    %v1766 = vld [vmem:[%s6 + $0x98] sm:$0xf]
    %v1767 = vld [vmem:[%s6 + $0x9c] sm:$0xf]
    %v1768 = vld [vmem:[%s6 + $0xa0] sm:$0xf]
    %v1769 = vld [vmem:[%s6 + $0xa4] sm:$0xf]
    %v1770 = vld [vmem:[%s6 + $0xa8] sm:$0xf]
    %v1771 = vld [vmem:[%s6 + $0xac] sm:$0xf]
    %v1772 = vld [vmem:[%s6 + $0xb0] sm:$0xf]
    %v1773 = vld [vmem:[%s6 + $0xb4] sm:$0xf]
    %v1774 = vld [vmem:[%s6 + $0xb8] sm:$0xf]
    %v1775 = vld [vmem:[%s6 + $0xbc] sm:$0xf]
    %v1776 = vld [vmem:[%s6 + $0xc0] sm:$0xf]
    %v1777 = vld [vmem:[%s6 + $0xc4] sm:$0xf]
    %v1778 = vld [vmem:[%s7] sm:$0x1]
    %v1780 = vperm.slane %v1778, 0
    %v1832 = vunpack.c.l.b16 %v1728
    %v1833 = vunpack.c.l.b16 %v1729
    %v1834 = vunpack.c.l.b16 %v1730
    %v1835 = vunpack.c.l.b16 %v1731
    %v1836 = vunpack.c.l.b16 %v1732
    %v1837 = vunpack.c.l.b16 %v1733
    %v1838 = vunpack.c.l.b16 %v1734
    %v1839 = vunpack.c.l.b16 %v1735
    %v1840 = vunpack.c.l.b16 %v1736
    %v1841 = vunpack.c.l.b16 %v1737
    %v1842 = vunpack.c.l.b16 %v1738
    %v1843 = vunpack.c.l.b16 %v1739
    %v1844 = vunpack.c.l.b16 %v1740
    %v1845 = vunpack.c.l.b16 %v1741
    %v1846 = vunpack.c.l.b16 %v1742
    %v1847 = vunpack.c.l.b16 %v1743
    %v1848 = vunpack.c.l.b16 %v1744
    %v1849 = vunpack.c.l.b16 %v1745
    %v1850 = vunpack.c.l.b16 %v1746
    %v1851 = vunpack.c.l.b16 %v1747
    %v1852 = vunpack.c.l.b16 %v1748
    %v1853 = vunpack.c.l.b16 %v1749
    %v1854 = vunpack.c.l.b16 %v1750
    %v1855 = vunpack.c.l.b16 %v1751
    %v1856 = vunpack.c.l.b16 %v1752
    %v1857 = vunpack.c.l.b16 %v1753
    %v1858 = vunpack.c.l.b16 %v1754
    %v1859 = vunpack.c.l.b16 %v1755
    %v1860 = vunpack.c.l.b16 %v1756
    %v1861 = vunpack.c.l.b16 %v1757
    %v1862 = vunpack.c.l.b16 %v1758
    %v1863 = vunpack.c.l.b16 %v1759
    %v1864 = vunpack.c.l.b16 %v1760
    %v1865 = vunpack.c.l.b16 %v1761
    %v1866 = vunpack.c.l.b16 %v1762
    %v1867 = vunpack.c.l.b16 %v1763
    %v1868 = vunpack.c.l.b16 %v1764
    %v1869 = vunpack.c.l.b16 %v1765
    %v1870 = vunpack.c.l.b16 %v1766
    %v1871 = vunpack.c.l.b16 %v1767
    %v1872 = vunpack.c.l.b16 %v1768
    %v1873 = vunpack.c.l.b16 %v1769
    %v1874 = vunpack.c.l.b16 %v1770
    %v1875 = vunpack.c.l.b16 %v1771
    %v1876 = vunpack.c.l.b16 %v1772
    %v1877 = vunpack.c.l.b16 %v1773
    %v1878 = vunpack.c.l.b16 %v1774
    %v1879 = vunpack.c.l.b16 %v1775
    %v1880 = vunpack.c.l.b16 %v1776
    %v1881 = vunpack.c.l.b16 %v1777
    %v1882 = vpack.c.b16 %v1833, %v1832
    %v1883 = vpack.c.b16 %v1835, %v1834
    %v1884 = vpack.c.b16 %v1837, %v1836
    %v1885 = vpack.c.b16 %v1839, %v1838
    %v1886 = vpack.c.b16 %v1841, %v1840
    %v1887 = vpack.c.b16 %v1843, %v1842
    %v1888 = vpack.c.b16 %v1845, %v1844
    %v1889 = vpack.c.b16 %v1847, %v1846
    %v1890 = vpack.c.b16 %v1849, %v1848
    %v1891 = vpack.c.b16 %v1851, %v1850
    %v1892 = vpack.c.b16 %v1853, %v1852
    %v1893 = vpack.c.b16 %v1855, %v1854
    %v1894 = vpack.c.b16 %v1857, %v1856
    %v1895 = vpack.c.b16 %v1859, %v1858
    %v1896 = vpack.c.b16 %v1861, %v1860
    %v1897 = vpack.c.b16 %v1863, %v1862
    %v1898 = vpack.c.b16 %v1865, %v1864
    %v1899 = vpack.c.b16 %v1867, %v1866
    %v1900 = vpack.c.b16 %v1869, %v1868
    %v1901 = vpack.c.b16 %v1871, %v1870
    %v1902 = vpack.c.b16 %v1873, %v1872
    %v1903 = vpack.c.b16 %v1875, %v1874
    %v1904 = vpack.c.b16 %v1877, %v1876
    %v1905 = vpack.c.b16 %v1879, %v1878
    %v1906 = vpack.c.b16 %v1881, %v1880
    %v1933 = vsel %vm1330, %v1727, 0
    %1935 = vmatpush.bf16.msra.mxu0 %v1889
    %1936 = vmatpush.bf16.msra.mxu0 %v1888
    %1937 = vmatpush.bf16.msra.mxu0 %v1887
    %1938 = vmatpush.bf16.msra.mxu0 %v1886
    %1939 = vmatpush.bf16.msra.mxu0 %v1885
    %1940 = vmatpush.bf16.msra.mxu0 %v1884
    %1941 = vmatpush.bf16.msra.mxu0 %v1883
    %1942 = vmatpush.bf16.msra.mxu0 %v1882
    %1943 = vmatmul.bf16.gmra.mxu0 %v1724
    %v1944 = vpop.f32.mrf.mxu0
    %v1945 = vadd.f32 %v1780, %v1944
    %v1946 = vpop.f32.mrf.mxu0
    %1947 = vdwg.mxu0
    %1948 = vmatpush.bf16.msra.mxu0 %v1897
    %1949 = vmatpush.bf16.msra.mxu0 %v1896
    %1950 = vmatpush.bf16.msra.mxu0 %v1895
    %1951 = vmatpush.bf16.msra.mxu0 %v1894
    %1952 = vmatpush.bf16.msra.mxu0 %v1893
    %1953 = vmatpush.bf16.msra.mxu0 %v1892
    %1954 = vmatpush.bf16.msra.mxu0 %v1891
    %1955 = vmatpush.bf16.msra.mxu0 %v1890
    %1956 = vmatmul.bf16.gmra.mxu0 %v1725
    %v1957 = vpop.f32.mrf.mxu0
    %v1958 = vadd.f32 %v1945, %v1957
    %v1959 = vpop.f32.mrf.mxu0
    %1960 = vdwg.mxu0
    %1961 = vmatpush.bf16.msra.mxu0 %v1905
    %1962 = vmatpush.bf16.msra.mxu0 %v1904
    %1963 = vmatpush.bf16.msra.mxu0 %v1903
    %1964 = vmatpush.bf16.msra.mxu0 %v1902
    %1965 = vmatpush.bf16.msra.mxu0 %v1901
    %1966 = vmatpush.bf16.msra.mxu0 %v1900
    %1967 = vmatpush.bf16.msra.mxu0 %v1899
    %1968 = vmatpush.bf16.msra.mxu0 %v1898
    %1969 = vmatmul.bf16.gmra.mxu0 %v1726
    %v1970 = vpop.f32.mrf.mxu0
    %v1971 = vadd.f32 %v1958, %v1970
    %v1972 = vpop.f32.mrf.mxu0
    %1973 = vdwg.mxu0
    %1974 = vmatpush.bf16.msra.mxu0 0
    %1975 = vmatpush.bf16.msra.mxu0 0
    %1976 = vmatpush.bf16.msra.mxu0 0
    %1977 = vmatpush.bf16.msra.mxu0 0
    %1978 = vmatpush.bf16.msra.mxu0 0
    %1979 = vmatpush.bf16.msra.mxu0 0
    %1980 = vmatpush.bf16.msra.mxu0 0
    %1981 = vmatpush.bf16.msra.mxu0 %v1906
    %1982 = vmatmul.bf16.gmra.mxu0 %v1933
    %v1983 = vpop.f32.mrf.mxu0
    %v1984 = vadd.f32 %v1971, %v1983
    %v1985 = vpop.f32.mrf.mxu0
    %1986 = vdwg.mxu0
    %vm1987 = vcmask 326656
    %1988 = vst.msk [vmem:[#allocation4] sm:$0xff] %vm1987, %v1984
    %v1989 = vld [vmem:[%s2] sm:$0xff]
    %v1990 = vmul.f32 %v1984, 0.5
    %v1991 = vmul.f32 %v1990, 1.442695
    %v1992 = vpow.pop %v1991
    %1994 = vrot.lane.b32.xlu0 %v1992, 108
    %v1995 = vpop.permute.xlu0 %1994
    %v1997 = vmul.f32 %v1989, %v1995
    %v1998 = vadd.f32 %v1984, %v1997
    %v1999 = vpack.c.bf16 %v1998, %v1998
    %v2000 = vld [vmem:[%s8] sm:$0xff]
    %v2001 = vld [vmem:[%s8 + $0x8] sm:$0xff]
    %v2002 = vld [vmem:[%s8 + $0x10] sm:$0xff]
    %v2003 = vld [vmem:[%s8 + $0x18] sm:$0xff]
    %v2004 = vld [vmem:[%s8 + $0x20] sm:$0x33]
    %v2005 = vld [vmem:[%s8 + $0x28] sm:$0x33]
    %v2006 = vld [vmem:[%s9] sm:$0xff]
    %v2007 = vld [vmem:[%s9 + $0x8] sm:$0xff]
    %v2008 = vld [vmem:[%s9 + $0x10] sm:$0x11]
    %v2009 = vld [vmem:[%s9 + $0x18] sm:$0x11]
    %v2014 = vunpack.c.l.b16 %v2006
    %v2015 = vunpack.c.h.b16 %v2006
    %v2016 = vunpack.c.l.b16 %v2007
    %v2017 = vunpack.c.h.b16 %v2007
    %v2018 = vunpack.c.l.b16 %v2008
    %v2019 = vunpack.c.h.b16 %v2008
    %v2020 = vunpack.c.l.b16 %v2009
    %v2021 = vunpack.c.h.b16 %v2009
    %v2022 = vpack.c.b16 %v2018, %v2014
    %v2023 = vpack.c.b16 %v2019, %v2015
    %v2024 = vpack.c.b16 %v2020, %v2016
    %v2025 = vpack.c.b16 %v2021, %v2017
    %v2027 = vsel %vm285, %v2022, 0
    %v2030 = vsel %vm285, %v2023, 0
    %v2033 = vsel %vm285, %v2024, 0
    %v2036 = vsel %vm285, %v2025, 0
    %2038 = vmatpush.bf16.msra.mxu0 0
    %2039 = vmatpush.bf16.msra.mxu0 0
    %2040 = vmatpush.bf16.msra.mxu0 0
    %2041 = vmatpush.bf16.msra.mxu0 0
    %2042 = vmatpush.bf16.msra.mxu0 0
    %2043 = vmatpush.bf16.msra.mxu0 0
    %2044 = vmatpush.bf16.msra.mxu0 0
    %2045 = vmatpush.bf16.msra.mxu0 %v2027
    %2046 = vmatmul.bf16.gmra.mxu0 %v283
    %v2047 = vpop.f32.mrf.mxu0
    %v2048 = vadd.f32 0.0, %v2047
    %v2049 = vpop.f32.mrf.mxu0
    %2050 = vdwg.mxu0
    %2051 = vmatpush.bf16.msra.mxu0 0
    %2052 = vmatpush.bf16.msra.mxu0 0
    %2053 = vmatpush.bf16.msra.mxu0 0
    %2054 = vmatpush.bf16.msra.mxu0 0
    %2055 = vmatpush.bf16.msra.mxu0 0
    %2056 = vmatpush.bf16.msra.mxu0 0
    %2057 = vmatpush.bf16.msra.mxu0 0
    %2058 = vmatpush.bf16.msra.mxu0 %v2030
    %2059 = vmatmul.bf16.gmra.mxu0 %v283
    %v2060 = vpop.f32.mrf.mxu0
    %v2061 = vadd.f32 0.0, %v2060
    %v2062 = vpop.f32.mrf.mxu0
    %2063 = vdwg.mxu0
    %2064 = vmatpush.bf16.msra.mxu0 0
    %2065 = vmatpush.bf16.msra.mxu0 0
    %2066 = vmatpush.bf16.msra.mxu0 0
    %2067 = vmatpush.bf16.msra.mxu0 0
    %2068 = vmatpush.bf16.msra.mxu0 0
    %2069 = vmatpush.bf16.msra.mxu0 0
    %2070 = vmatpush.bf16.msra.mxu0 0
    %2071 = vmatpush.bf16.msra.mxu0 %v2033
    %2072 = vmatmul.bf16.gmra.mxu0 %v283
    %v2073 = vpop.f32.mrf.mxu0
    %v2074 = vadd.f32 0.0, %v2073
    %v2075 = vpop.f32.mrf.mxu0
    %2076 = vdwg.mxu0
    %2077 = vmatpush.bf16.msra.mxu0 0
    %2078 = vmatpush.bf16.msra.mxu0 0
    %2079 = vmatpush.bf16.msra.mxu0 0
    %2080 = vmatpush.bf16.msra.mxu0 0
    %2081 = vmatpush.bf16.msra.mxu0 0
    %2082 = vmatpush.bf16.msra.mxu0 0
    %2083 = vmatpush.bf16.msra.mxu0 0
    %2084 = vmatpush.bf16.msra.mxu0 %v2036
    %2085 = vmatmul.bf16.gmra.mxu0 %v283
    %v2086 = vpop.f32.mrf.mxu0
    %v2087 = vadd.f32 0.0, %v2086
    %v2088 = vpop.f32.mrf.mxu0
    %2089 = vdwg.mxu0
    %v2096 = vunpack.c.l.b16 %v2000
    %v2097 = vunpack.c.h.b16 %v2000
    %v2098 = vunpack.c.l.b16 %v2001
    %v2099 = vunpack.c.h.b16 %v2001
    %v2100 = vunpack.c.l.b16 %v2002
    %v2101 = vunpack.c.h.b16 %v2002
    %v2102 = vunpack.c.l.b16 %v2003
    %v2103 = vunpack.c.h.b16 %v2003
    %v2104 = vunpack.c.l.b16 %v2004
    %v2105 = vunpack.c.h.b16 %v2004
    %v2106 = vunpack.c.l.b16 %v2005
    %v2107 = vunpack.c.h.b16 %v2005
    %v2108 = vpack.c.b16 %v2100, %v2096
    %v2109 = vpack.c.b16 %v2101, %v2097
    %v2110 = vpack.c.b16 %v2102, %v2098
    %v2111 = vpack.c.b16 %v2103, %v2099
    %v2112 = vpack.c.b16 %v2104, %v2104
    %v2113 = vpack.c.b16 %v2105, %v2105
    %v2114 = vpack.c.b16 %v2106, %v2106
    %v2115 = vpack.c.b16 %v2107, %v2107
    %vm2120 = vcmask 162816
    %v2122 = vsel %vm2120, %v1999, 0
    %vm2124 = vcmask 1041408
    %v2126 = vsel %vm2124, %v2112, 0
    %v2129 = vsel %vm2124, %v2113, 0
    %v2132 = vsel %vm2124, %v2114, 0
    %v2135 = vsel %vm2124, %v2115, 0
    %2137 = vmatpush.bf16.msra.mxu0 0
    %2138 = vmatpush.bf16.msra.mxu0 0
    %2139 = vmatpush.bf16.msra.mxu0 0
    %2140 = vmatpush.bf16.msra.mxu0 0
    %2141 = vmatpush.bf16.msra.mxu0 0
    %2142 = vmatpush.bf16.msra.mxu0 0
    %2143 = vmatpush.bf16.msra.mxu0 %v2126
    %2144 = vmatpush.bf16.msra.mxu0 %v2108
    %2145 = vmatmul.bf16.gmra.mxu0 %v2122
    %v2146 = vpop.f32.mrf.mxu0
    %v2147 = vadd.f32 %v2048, %v2146
    %v2148 = vpop.f32.mrf.mxu0
    %2149 = vdwg.mxu0
    %2150 = vmatpush.bf16.msra.mxu0 0
    %2151 = vmatpush.bf16.msra.mxu0 0
    %2152 = vmatpush.bf16.msra.mxu0 0
    %2153 = vmatpush.bf16.msra.mxu0 0
    %2154 = vmatpush.bf16.msra.mxu0 0
    %2155 = vmatpush.bf16.msra.mxu0 0
    %2156 = vmatpush.bf16.msra.mxu0 %v2129
    %2157 = vmatpush.bf16.msra.mxu0 %v2109
    %2158 = vmatmul.bf16.gmra.mxu0 %v2122
    %v2159 = vpop.f32.mrf.mxu0
    %v2160 = vadd.f32 %v2061, %v2159
    %v2161 = vpop.f32.mrf.mxu0
    %2162 = vdwg.mxu0
    %2163 = vmatpush.bf16.msra.mxu0 0
    %2164 = vmatpush.bf16.msra.mxu0 0
    %2165 = vmatpush.bf16.msra.mxu0 0
    %2166 = vmatpush.bf16.msra.mxu0 0
    %2167 = vmatpush.bf16.msra.mxu0 0
    %2168 = vmatpush.bf16.msra.mxu0 0
    %2169 = vmatpush.bf16.msra.mxu0 %v2132
    %2170 = vmatpush.bf16.msra.mxu0 %v2110
    %2171 = vmatmul.bf16.gmra.mxu0 %v2122
    %v2172 = vpop.f32.mrf.mxu0
    %v2173 = vadd.f32 %v2074, %v2172
    %v2174 = vpop.f32.mrf.mxu0
    %2175 = vdwg.mxu0
    %2176 = vmatpush.bf16.msra.mxu0 0
    %2177 = vmatpush.bf16.msra.mxu0 0
    %2178 = vmatpush.bf16.msra.mxu0 0
    %2179 = vmatpush.bf16.msra.mxu0 0
    %2180 = vmatpush.bf16.msra.mxu0 0
    %2181 = vmatpush.bf16.msra.mxu0 0
    %2182 = vmatpush.bf16.msra.mxu0 %v2135
    %2183 = vmatpush.bf16.msra.mxu0 %v2111
    %2184 = vmatmul.bf16.gmra.mxu0 %v2122
    %v2185 = vpop.f32.mrf.mxu0
    %v2186 = vadd.f32 %v2087, %v2185
    %v2187 = vpop.f32.mrf.mxu0
    %2188 = vdwg.mxu0
    %v2189 = vld [vmem:[%s10] sm:$0xf]
    %v2191 = vperm.slane %v2189, 0
    %v2192 = vperm.slane %v2189, 1
    %v2193 = vperm.slane %v2189, 2
    %v2194 = vperm.slane %v2189, 3
    %v2199 = vadd.f32 %v2147, %v2191
    %v2200 = vadd.f32 %v2160, %v2192
    %v2201 = vadd.f32 %v2173, %v2193
    %v2202 = vadd.f32 %v2186, %v2194
    %vm2203 = vcmp.gt.f32.partialorder %v2199, 0.0
    %vm2204 = vcmp.gt.f32.partialorder %v2200, 0.0
    %vm2205 = vcmp.gt.f32.partialorder %v2201, 0.0
    %vm2206 = vcmp.gt.f32.partialorder %v2202, 0.0
    %v2207 = vmul.f32 %v2199, 0.2
    %v2208 = vmul.f32 %v2200, 0.2
    %v2209 = vmul.f32 %v2201, 0.2
    %v2210 = vmul.f32 %v2202, 0.2
    %v2211 = vsel %vm2203, %v2199, %v2207
    %v2212 = vsel %vm2204, %v2200, %v2208
    %v2213 = vsel %vm2205, %v2201, %v2209
    %v2214 = vsel %vm2206, %v2202, %v2210
    %v2215 = vpack.c.bf16 %v2211, %v2211
    %v2216 = vpack.c.bf16 %v2212, %v2212
    %v2217 = vpack.c.bf16 %v2213, %v2213
    %v2218 = vpack.c.bf16 %v2214, %v2214
    %v2219 = vld [vmem:[%s11] sm:$0xff]
    %v2220 = vld [vmem:[%s11 + $0x8] sm:$0xff]
    %v2221 = vld [vmem:[%s11 + $0x10] sm:$0xff]
    %v2222 = vld [vmem:[%s11 + $0x18] sm:$0xf]
    %v2223 = vld [vmem:[%s11 + $0x1c] sm:$0xff]
    %v2224 = vld [vmem:[%s11 + $0x24] sm:$0xff]
    %v2225 = vld [vmem:[%s11 + $0x2c] sm:$0xff]
    %v2226 = vld [vmem:[%s11 + $0x34] sm:$0xf]
    %v2227 = vld [vmem:[%s11 + $0x38] sm:$0xff]
    %v2228 = vld [vmem:[%s11 + $0x40] sm:$0xff]
    %v2229 = vld [vmem:[%s11 + $0x48] sm:$0xff]
    %v2230 = vld [vmem:[%s11 + $0x50] sm:$0xf]
    %v2231 = vld [vmem:[%s11 + $0x54] sm:$0xff]
    %v2232 = vld [vmem:[%s11 + $0x5c] sm:$0xff]
    %v2233 = vld [vmem:[%s11 + $0x64] sm:$0xff]
    %v2234 = vld [vmem:[%s11 + $0x6c] sm:$0xf]
    %v2235 = vld [vmem:[%s11 + $0x70] sm:$0xff]
    %v2236 = vld [vmem:[%s11 + $0x78] sm:$0xff]
    %v2237 = vld [vmem:[%s11 + $0x80] sm:$0xff]
    %v2238 = vld [vmem:[%s11 + $0x88] sm:$0xf]
    %v2239 = vld [vmem:[%s11 + $0x8c] sm:$0xff]
    %v2240 = vld [vmem:[%s11 + $0x94] sm:$0xff]
    %v2241 = vld [vmem:[%s11 + $0x9c] sm:$0xff]
    %v2242 = vld [vmem:[%s11 + $0xa4] sm:$0xf]
    %v2243 = vld [vmem:[%s11 + $0xa8] sm:$0xff]
    %v2244 = vld [vmem:[%s11 + $0xb0] sm:$0xff]
    %v2245 = vld [vmem:[%s11 + $0xb8] sm:$0xff]
    %v2246 = vld [vmem:[%s11 + $0xc0] sm:$0xf]
    %v2247 = vld [vmem:[%s11 + $0xc4] sm:$0xff]
    %v2248 = vld [vmem:[%s11 + $0xcc] sm:$0xff]
    %v2249 = vld [vmem:[%s11 + $0xd4] sm:$0xff]
    %v2250 = vld [vmem:[%s11 + $0xdc] sm:$0xf]
    %v2251 = vld [vmem:[%s11 + $0xe0] sm:$0xff]
    %v2252 = vld [vmem:[%s11 + $0xe8] sm:$0xff]
    %v2253 = vld [vmem:[%s11 + $0xf0] sm:$0xff]
    %v2254 = vld [vmem:[%s11 + $0xf8] sm:$0xf]
    %v2255 = vld [vmem:[%s11 + $0xfc] sm:$0xff]
    %v2256 = vld [vmem:[%s11 + $0x104] sm:$0xff]
    %v2257 = vld [vmem:[%s11 + $0x10c] sm:$0xff]
    %v2258 = vld [vmem:[%s11 + $0x114] sm:$0xf]
    %v2259 = vld [vmem:[%s11 + $0x118] sm:$0xff]
    %v2260 = vld [vmem:[%s11 + $0x120] sm:$0xff]
    %v2261 = vld [vmem:[%s11 + $0x128] sm:$0xff]
    %v2262 = vld [vmem:[%s11 + $0x130] sm:$0xf]
    %v2263 = vld [vmem:[%s11 + $0x134] sm:$0xff]
    %v2264 = vld [vmem:[%s11 + $0x13c] sm:$0xff]
    %v2265 = vld [vmem:[%s11 + $0x144] sm:$0xff]
    %v2266 = vld [vmem:[%s11 + $0x14c] sm:$0xf]
    %v2267 = vld [vmem:[%s11 + $0x150] sm:$0xff]
    %v2268 = vld [vmem:[%s11 + $0x158] sm:$0xff]
    %v2269 = vld [vmem:[%s11 + $0x160] sm:$0xff]
    %v2270 = vld [vmem:[%s11 + $0x168] sm:$0xf]
    %v2271 = vld [vmem:[%s11 + $0x16c] sm:$0xff]
    %v2272 = vld [vmem:[%s11 + $0x174] sm:$0xff]
    %v2273 = vld [vmem:[%s11 + $0x17c] sm:$0xff]
    %v2274 = vld [vmem:[%s11 + $0x184] sm:$0xf]
    %v2275 = vld [vmem:[%s11 + $0x188] sm:$0xff]
    %v2276 = vld [vmem:[%s11 + $0x190] sm:$0xff]
    %v2277 = vld [vmem:[%s11 + $0x198] sm:$0xff]
    %v2278 = vld [vmem:[%s11 + $0x1a0] sm:$0xf]
    %v2279 = vld [vmem:[%s11 + $0x1a4] sm:$0xff]
    %v2280 = vld [vmem:[%s11 + $0x1ac] sm:$0xff]
    %v2281 = vld [vmem:[%s11 + $0x1b4] sm:$0xff]
    %v2282 = vld [vmem:[%s11 + $0x1bc] sm:$0xf]
    %v2283 = vld [vmem:[%s11 + $0x1c0] sm:$0xff]
    %v2284 = vld [vmem:[%s11 + $0x1c8] sm:$0xff]
    %v2285 = vld [vmem:[%s11 + $0x1d0] sm:$0xff]
    %v2286 = vld [vmem:[%s11 + $0x1d8] sm:$0xf]
    %v2287 = vld [vmem:[%s11 + $0x1dc] sm:$0xff]
    %v2288 = vld [vmem:[%s11 + $0x1e4] sm:$0xff]
    %v2289 = vld [vmem:[%s11 + $0x1ec] sm:$0xff]
    %v2290 = vld [vmem:[%s11 + $0x1f4] sm:$0xf]
    %v2291 = vld [vmem:[%s11 + $0x1f8] sm:$0xff]
    %v2292 = vld [vmem:[%s11 + $0x200] sm:$0xff]
    %v2293 = vld [vmem:[%s11 + $0x208] sm:$0xff]
    %v2294 = vld [vmem:[%s11 + $0x210] sm:$0xf]
    %v2295 = vld [vmem:[%s11 + $0x214] sm:$0xff]
    %v2296 = vld [vmem:[%s11 + $0x21c] sm:$0xff]
    %v2297 = vld [vmem:[%s11 + $0x224] sm:$0xff]
    %v2298 = vld [vmem:[%s11 + $0x22c] sm:$0xf]
    %v2299 = vld [vmem:[%s11 + $0x230] sm:$0xff]
    %v2300 = vld [vmem:[%s11 + $0x238] sm:$0xff]
    %v2301 = vld [vmem:[%s11 + $0x240] sm:$0xff]
    %v2302 = vld [vmem:[%s11 + $0x248] sm:$0xf]
    %v2303 = vld [vmem:[%s11 + $0x24c] sm:$0xff]
    %v2304 = vld [vmem:[%s11 + $0x254] sm:$0xff]
    %v2305 = vld [vmem:[%s11 + $0x25c] sm:$0xff]
    %v2306 = vld [vmem:[%s11 + $0x264] sm:$0xf]
    %v2307 = vld [vmem:[%s11 + $0x268] sm:$0xff]
    %v2308 = vld [vmem:[%s11 + $0x270] sm:$0xff]
    %v2309 = vld [vmem:[%s11 + $0x278] sm:$0xff]
    %v2310 = vld [vmem:[%s11 + $0x280] sm:$0xf]
    %v2311 = vld [vmem:[%s11 + $0x284] sm:$0xff]
    %v2312 = vld [vmem:[%s11 + $0x28c] sm:$0xff]
    %v2313 = vld [vmem:[%s11 + $0x294] sm:$0xff]
    %v2314 = vld [vmem:[%s11 + $0x29c] sm:$0xf]
    %v2315 = vld [vmem:[%s11 + $0x2a0] sm:$0xff]
    %v2316 = vld [vmem:[%s11 + $0x2a8] sm:$0xff]
    %v2317 = vld [vmem:[%s11 + $0x2b0] sm:$0xff]
    %v2318 = vld [vmem:[%s11 + $0x2b8] sm:$0xf]
    %v2319 = vld [vmem:[%s11 + $0x2bc] sm:$0xff]
    %v2320 = vld [vmem:[%s11 + $0x2c4] sm:$0xff]
    %v2321 = vld [vmem:[%s11 + $0x2cc] sm:$0xff]
    %v2322 = vld [vmem:[%s11 + $0x2d4] sm:$0xf]
    %v2323 = vld [vmem:[%s11 + $0x2d8] sm:$0xff]
    %v2324 = vld [vmem:[%s11 + $0x2e0] sm:$0xff]
    %v2325 = vld [vmem:[%s11 + $0x2e8] sm:$0xff]
    %v2326 = vld [vmem:[%s11 + $0x2f0] sm:$0xf]
    %v2327 = vld [vmem:[%s11 + $0x2f4] sm:$0xff]
    %v2328 = vld [vmem:[%s11 + $0x2fc] sm:$0xff]
    %v2329 = vld [vmem:[%s11 + $0x304] sm:$0xff]
    %v2330 = vld [vmem:[%s11 + $0x30c] sm:$0xf]
    %v2331 = vld [vmem:[%s11 + $0x310] sm:$0xff]
    %v2332 = vld [vmem:[%s11 + $0x318] sm:$0xff]
    %v2333 = vld [vmem:[%s11 + $0x320] sm:$0xff]
    %v2334 = vld [vmem:[%s11 + $0x328] sm:$0xf]
    %v2335 = vld [vmem:[%s11 + $0x32c] sm:$0xff]
    %v2336 = vld [vmem:[%s11 + $0x334] sm:$0xff]
    %v2337 = vld [vmem:[%s11 + $0x33c] sm:$0xff]
    %v2338 = vld [vmem:[%s11 + $0x344] sm:$0xf]
    %v2339 = vld [vmem:[%s11 + $0x348] sm:$0xff]
    %v2340 = vld [vmem:[%s11 + $0x350] sm:$0xff]
    %v2341 = vld [vmem:[%s11 + $0x358] sm:$0xff]
    %v2342 = vld [vmem:[%s11 + $0x360] sm:$0xf]
    %v2343 = vld [vmem:[%s11 + $0x364] sm:$0xff]
    %v2344 = vld [vmem:[%s11 + $0x36c] sm:$0xff]
    %v2345 = vld [vmem:[%s11 + $0x374] sm:$0xff]
    %v2346 = vld [vmem:[%s11 + $0x37c] sm:$0xf]
    %v2347 = vld [vmem:[%s11 + $0x380] sm:$0xff]
    %v2348 = vld [vmem:[%s11 + $0x388] sm:$0xff]
    %v2349 = vld [vmem:[%s11 + $0x390] sm:$0xff]
    %v2350 = vld [vmem:[%s11 + $0x398] sm:$0xf]
    %v2351 = vld [vmem:[%s11 + $0x39c] sm:$0xff]
    %v2352 = vld [vmem:[%s11 + $0x3a4] sm:$0xff]
    %v2353 = vld [vmem:[%s11 + $0x3ac] sm:$0xff]
    %v2354 = vld [vmem:[%s11 + $0x3b4] sm:$0xf]
    %v2355 = vld [vmem:[%s11 + $0x3b8] sm:$0xff]
    %v2356 = vld [vmem:[%s11 + $0x3c0] sm:$0xff]
    %v2357 = vld [vmem:[%s11 + $0x3c8] sm:$0xff]
    %v2358 = vld [vmem:[%s11 + $0x3d0] sm:$0xf]
    %v2359 = vld [vmem:[%s11 + $0x3d4] sm:$0xff]
    %v2360 = vld [vmem:[%s11 + $0x3dc] sm:$0xff]
    %v2361 = vld [vmem:[%s11 + $0x3e4] sm:$0xff]
    %v2362 = vld [vmem:[%s11 + $0x3ec] sm:$0xf]
    %v2363 = vld [vmem:[%s11 + $0x3f0] sm:$0xff]
    %v2364 = vld [vmem:[%s11 + $0x3f8] sm:$0xff]
    %v2365 = vld [vmem:[%s11 + $0x400] sm:$0xff]
    %v2366 = vld [vmem:[%s11 + $0x408] sm:$0xf]
    %v2367 = vld [vmem:[%s11 + $0x40c] sm:$0xff]
    %v2368 = vld [vmem:[%s11 + $0x414] sm:$0xff]
    %v2369 = vld [vmem:[%s11 + $0x41c] sm:$0xff]
    %v2370 = vld [vmem:[%s11 + $0x424] sm:$0xf]
    %v2371 = vld [vmem:[%s11 + $0x428] sm:$0xff]
    %v2372 = vld [vmem:[%s11 + $0x430] sm:$0xff]
    %v2373 = vld [vmem:[%s11 + $0x438] sm:$0xff]
    %v2374 = vld [vmem:[%s11 + $0x440] sm:$0xf]
    %v2375 = vld [vmem:[%s11 + $0x444] sm:$0xff]
    %v2376 = vld [vmem:[%s11 + $0x44c] sm:$0xff]
    %v2377 = vld [vmem:[%s11 + $0x454] sm:$0xff]
    %v2378 = vld [vmem:[%s11 + $0x45c] sm:$0xf]
    %v2379 = vld [vmem:[%s11 + $0x460] sm:$0xff]
    %v2380 = vld [vmem:[%s11 + $0x468] sm:$0xff]
    %v2381 = vld [vmem:[%s11 + $0x470] sm:$0xff]
    %v2382 = vld [vmem:[%s11 + $0x478] sm:$0xf]
    %v2383 = vld [vmem:[%s11 + $0x47c] sm:$0xff]
    %v2384 = vld [vmem:[%s11 + $0x484] sm:$0xff]
    %v2385 = vld [vmem:[%s11 + $0x48c] sm:$0xff]
    %v2386 = vld [vmem:[%s11 + $0x494] sm:$0xf]
    %v2387 = vld [vmem:[%s11 + $0x498] sm:$0xff]
    %v2388 = vld [vmem:[%s11 + $0x4a0] sm:$0xff]
    %v2389 = vld [vmem:[%s11 + $0x4a8] sm:$0xff]
    %v2390 = vld [vmem:[%s11 + $0x4b0] sm:$0xf]
    %v2391 = vld [vmem:[%s11 + $0x4b4] sm:$0xff]
    %v2392 = vld [vmem:[%s11 + $0x4bc] sm:$0xff]
    %v2393 = vld [vmem:[%s11 + $0x4c4] sm:$0xff]
    %v2394 = vld [vmem:[%s11 + $0x4cc] sm:$0xf]
    %v2395 = vld [vmem:[%s11 + $0x4d0] sm:$0xff]
    %v2396 = vld [vmem:[%s11 + $0x4d8] sm:$0xff]
    %v2397 = vld [vmem:[%s11 + $0x4e0] sm:$0xff]
    %v2398 = vld [vmem:[%s11 + $0x4e8] sm:$0xf]
    %v2399 = vld [vmem:[%s11 + $0x4ec] sm:$0xff]
    %v2400 = vld [vmem:[%s11 + $0x4f4] sm:$0xff]
    %v2401 = vld [vmem:[%s11 + $0x4fc] sm:$0xff]
    %v2402 = vld [vmem:[%s11 + $0x504] sm:$0xf]
    %v2403 = vld [vmem:[%s11 + $0x508] sm:$0xff]
    %v2404 = vld [vmem:[%s11 + $0x510] sm:$0xff]
    %v2405 = vld [vmem:[%s11 + $0x518] sm:$0xff]
    %v2406 = vld [vmem:[%s11 + $0x520] sm:$0xf]
    %v2407 = vld [vmem:[%s11 + $0x524] sm:$0xff]
    %v2408 = vld [vmem:[%s11 + $0x52c] sm:$0xff]
    %v2409 = vld [vmem:[%s11 + $0x534] sm:$0xff]
    %v2410 = vld [vmem:[%s11 + $0x53c] sm:$0xf]
    %v2411 = vld [vmem:[%s11 + $0x540] sm:$0xff]
    %v2412 = vld [vmem:[%s11 + $0x548] sm:$0xff]
    %v2413 = vld [vmem:[%s11 + $0x550] sm:$0xff]
    %v2414 = vld [vmem:[%s11 + $0x558] sm:$0xf]
    %v2415 = vld [vmem:[%s11 + $0x55c] sm:$0xff]
    %v2416 = vld [vmem:[%s11 + $0x564] sm:$0xff]
    %v2417 = vld [vmem:[%s11 + $0x56c] sm:$0xff]
    %v2418 = vld [vmem:[%s11 + $0x574] sm:$0xf]
    %v2419 = vld [vmem:[%s12] sm:$0x7f]
    %v2421 = vperm.slane %v2419, 0
    %v2422 = vperm.slane %v2419, 1
    %v2423 = vperm.slane %v2419, 2
    %v2424 = vperm.slane %v2419, 3
    %v2425 = vperm.slane %v2419, 4
    %v2426 = vperm.slane %v2419, 5
    %v2427 = vperm.slane %v2419, 6
    %v2635 = vunpack.c.l.b16 %v2219
    %v2636 = vunpack.c.h.b16 %v2219
    %v2637 = vunpack.c.l.b16 %v2220
    %v2638 = vunpack.c.h.b16 %v2220
    %v2639 = vunpack.c.l.b16 %v2221
    %v2640 = vunpack.c.h.b16 %v2221
    %v2641 = vunpack.c.l.b16 %v2222
    %v2642 = vunpack.c.l.b16 %v2223
    %v2643 = vunpack.c.h.b16 %v2223
    %v2644 = vunpack.c.l.b16 %v2224
    %v2645 = vunpack.c.h.b16 %v2224
    %v2646 = vunpack.c.l.b16 %v2225
    %v2647 = vunpack.c.h.b16 %v2225
    %v2648 = vunpack.c.l.b16 %v2226
    %v2649 = vunpack.c.l.b16 %v2227
    %v2650 = vunpack.c.h.b16 %v2227
    %v2651 = vunpack.c.l.b16 %v2228
    %v2652 = vunpack.c.h.b16 %v2228
    %v2653 = vunpack.c.l.b16 %v2229
    %v2654 = vunpack.c.h.b16 %v2229
    %v2655 = vunpack.c.l.b16 %v2230
    %v2656 = vunpack.c.l.b16 %v2231
    %v2657 = vunpack.c.h.b16 %v2231
    %v2658 = vunpack.c.l.b16 %v2232
    %v2659 = vunpack.c.h.b16 %v2232
    %v2660 = vunpack.c.l.b16 %v2233
    %v2661 = vunpack.c.h.b16 %v2233
    %v2662 = vunpack.c.l.b16 %v2234
    %v2663 = vunpack.c.l.b16 %v2235
    %v2664 = vunpack.c.h.b16 %v2235
    %v2665 = vunpack.c.l.b16 %v2236
    %v2666 = vunpack.c.h.b16 %v2236
    %v2667 = vunpack.c.l.b16 %v2237
    %v2668 = vunpack.c.h.b16 %v2237
    %v2669 = vunpack.c.l.b16 %v2238
    %v2670 = vunpack.c.l.b16 %v2239
    %v2671 = vunpack.c.h.b16 %v2239
    %v2672 = vunpack.c.l.b16 %v2240
    %v2673 = vunpack.c.h.b16 %v2240
    %v2674 = vunpack.c.l.b16 %v2241
    %v2675 = vunpack.c.h.b16 %v2241
    %v2676 = vunpack.c.l.b16 %v2242
    %v2677 = vunpack.c.l.b16 %v2243
    %v2678 = vunpack.c.h.b16 %v2243
    %v2679 = vunpack.c.l.b16 %v2244
    %v2680 = vunpack.c.h.b16 %v2244
    %v2681 = vunpack.c.l.b16 %v2245
    %v2682 = vunpack.c.h.b16 %v2245
    %v2683 = vunpack.c.l.b16 %v2246
    %v2684 = vunpack.c.l.b16 %v2247
    %v2685 = vunpack.c.h.b16 %v2247
    %v2686 = vunpack.c.l.b16 %v2248
    %v2687 = vunpack.c.h.b16 %v2248
    %v2688 = vunpack.c.l.b16 %v2249
    %v2689 = vunpack.c.h.b16 %v2249
    %v2690 = vunpack.c.l.b16 %v2250
    %v2691 = vunpack.c.l.b16 %v2251
    %v2692 = vunpack.c.h.b16 %v2251
    %v2693 = vunpack.c.l.b16 %v2252
    %v2694 = vunpack.c.h.b16 %v2252
    %v2695 = vunpack.c.l.b16 %v2253
    %v2696 = vunpack.c.h.b16 %v2253
    %v2697 = vunpack.c.l.b16 %v2254
    %v2698 = vunpack.c.l.b16 %v2255
    %v2699 = vunpack.c.h.b16 %v2255
    %v2700 = vunpack.c.l.b16 %v2256
    %v2701 = vunpack.c.h.b16 %v2256
    %v2702 = vunpack.c.l.b16 %v2257
    %v2703 = vunpack.c.h.b16 %v2257
    %v2704 = vunpack.c.l.b16 %v2258
    %v2705 = vunpack.c.l.b16 %v2259
    %v2706 = vunpack.c.h.b16 %v2259
    %v2707 = vunpack.c.l.b16 %v2260
    %v2708 = vunpack.c.h.b16 %v2260
    %v2709 = vunpack.c.l.b16 %v2261
    %v2710 = vunpack.c.h.b16 %v2261
    %v2711 = vunpack.c.l.b16 %v2262
    %v2712 = vunpack.c.l.b16 %v2263
    %v2713 = vunpack.c.h.b16 %v2263
    %v2714 = vunpack.c.l.b16 %v2264
    %v2715 = vunpack.c.h.b16 %v2264
    %v2716 = vunpack.c.l.b16 %v2265
    %v2717 = vunpack.c.h.b16 %v2265
    %v2718 = vunpack.c.l.b16 %v2266
    %v2719 = vunpack.c.l.b16 %v2267
    %v2720 = vunpack.c.h.b16 %v2267
    %v2721 = vunpack.c.l.b16 %v2268
    %v2722 = vunpack.c.h.b16 %v2268
    %v2723 = vunpack.c.l.b16 %v2269
    %v2724 = vunpack.c.h.b16 %v2269
    %v2725 = vunpack.c.l.b16 %v2270
    %v2726 = vunpack.c.l.b16 %v2271
    %v2727 = vunpack.c.h.b16 %v2271
    %v2728 = vunpack.c.l.b16 %v2272
    %v2729 = vunpack.c.h.b16 %v2272
    %v2730 = vunpack.c.l.b16 %v2273
    %v2731 = vunpack.c.h.b16 %v2273
    %v2732 = vunpack.c.l.b16 %v2274
    %v2733 = vunpack.c.l.b16 %v2275
    %v2734 = vunpack.c.h.b16 %v2275
    %v2735 = vunpack.c.l.b16 %v2276
    %v2736 = vunpack.c.h.b16 %v2276
    %v2737 = vunpack.c.l.b16 %v2277
    %v2738 = vunpack.c.h.b16 %v2277
    %v2739 = vunpack.c.l.b16 %v2278
    %v2740 = vunpack.c.l.b16 %v2279
    %v2741 = vunpack.c.h.b16 %v2279
    %v2742 = vunpack.c.l.b16 %v2280
    %v2743 = vunpack.c.h.b16 %v2280
    %v2744 = vunpack.c.l.b16 %v2281
    %v2745 = vunpack.c.h.b16 %v2281
    %v2746 = vunpack.c.l.b16 %v2282
    %v2747 = vunpack.c.l.b16 %v2283
    %v2748 = vunpack.c.h.b16 %v2283
    %v2749 = vunpack.c.l.b16 %v2284
    %v2750 = vunpack.c.h.b16 %v2284
    %v2751 = vunpack.c.l.b16 %v2285
    %v2752 = vunpack.c.h.b16 %v2285
    %v2753 = vunpack.c.l.b16 %v2286
    %v2754 = vunpack.c.l.b16 %v2287
    %v2755 = vunpack.c.h.b16 %v2287
    %v2756 = vunpack.c.l.b16 %v2288
    %v2757 = vunpack.c.h.b16 %v2288
    %v2758 = vunpack.c.l.b16 %v2289
    %v2759 = vunpack.c.h.b16 %v2289
    %v2760 = vunpack.c.l.b16 %v2290
    %v2761 = vunpack.c.l.b16 %v2291
    %v2762 = vunpack.c.h.b16 %v2291
    %v2763 = vunpack.c.l.b16 %v2292
    %v2764 = vunpack.c.h.b16 %v2292
    %v2765 = vunpack.c.l.b16 %v2293
    %v2766 = vunpack.c.h.b16 %v2293
    %v2767 = vunpack.c.l.b16 %v2294
    %v2768 = vunpack.c.l.b16 %v2295
    %v2769 = vunpack.c.h.b16 %v2295
    %v2770 = vunpack.c.l.b16 %v2296
    %v2771 = vunpack.c.h.b16 %v2296
    %v2772 = vunpack.c.l.b16 %v2297
    %v2773 = vunpack.c.h.b16 %v2297
    %v2774 = vunpack.c.l.b16 %v2298
    %v2775 = vunpack.c.l.b16 %v2299
    %v2776 = vunpack.c.h.b16 %v2299
    %v2777 = vunpack.c.l.b16 %v2300
    %v2778 = vunpack.c.h.b16 %v2300
    %v2779 = vunpack.c.l.b16 %v2301
    %v2780 = vunpack.c.h.b16 %v2301
    %v2781 = vunpack.c.l.b16 %v2302
    %v2782 = vunpack.c.l.b16 %v2303
    %v2783 = vunpack.c.h.b16 %v2303
    %v2784 = vunpack.c.l.b16 %v2304
    %v2785 = vunpack.c.h.b16 %v2304
    %v2786 = vunpack.c.l.b16 %v2305
    %v2787 = vunpack.c.h.b16 %v2305
    %v2788 = vunpack.c.l.b16 %v2306
    %v2789 = vunpack.c.l.b16 %v2307
    %v2790 = vunpack.c.h.b16 %v2307
    %v2791 = vunpack.c.l.b16 %v2308
    %v2792 = vunpack.c.h.b16 %v2308
    %v2793 = vunpack.c.l.b16 %v2309
    %v2794 = vunpack.c.h.b16 %v2309
    %v2795 = vunpack.c.l.b16 %v2310
    %v2796 = vunpack.c.l.b16 %v2311
    %v2797 = vunpack.c.h.b16 %v2311
    %v2798 = vunpack.c.l.b16 %v2312
    %v2799 = vunpack.c.h.b16 %v2312
    %v2800 = vunpack.c.l.b16 %v2313
    %v2801 = vunpack.c.h.b16 %v2313
    %v2802 = vunpack.c.l.b16 %v2314
    %v2803 = vunpack.c.l.b16 %v2315
    %v2804 = vunpack.c.h.b16 %v2315
    %v2805 = vunpack.c.l.b16 %v2316
    %v2806 = vunpack.c.h.b16 %v2316
    %v2807 = vunpack.c.l.b16 %v2317
    %v2808 = vunpack.c.h.b16 %v2317
    %v2809 = vunpack.c.l.b16 %v2318
    %v2810 = vunpack.c.l.b16 %v2319
    %v2811 = vunpack.c.h.b16 %v2319
    %v2812 = vunpack.c.l.b16 %v2320
    %v2813 = vunpack.c.h.b16 %v2320
    %v2814 = vunpack.c.l.b16 %v2321
    %v2815 = vunpack.c.h.b16 %v2321
    %v2816 = vunpack.c.l.b16 %v2322
    %v2817 = vunpack.c.l.b16 %v2323
    %v2818 = vunpack.c.h.b16 %v2323
    %v2819 = vunpack.c.l.b16 %v2324
    %v2820 = vunpack.c.h.b16 %v2324
    %v2821 = vunpack.c.l.b16 %v2325
    %v2822 = vunpack.c.h.b16 %v2325
    %v2823 = vunpack.c.l.b16 %v2326
    %v2824 = vunpack.c.l.b16 %v2327
    %v2825 = vunpack.c.h.b16 %v2327
    %v2826 = vunpack.c.l.b16 %v2328
    %v2827 = vunpack.c.h.b16 %v2328
    %v2828 = vunpack.c.l.b16 %v2329
    %v2829 = vunpack.c.h.b16 %v2329
    %v2830 = vunpack.c.l.b16 %v2330
    %v2831 = vunpack.c.l.b16 %v2331
    %v2832 = vunpack.c.h.b16 %v2331
    %v2833 = vunpack.c.l.b16 %v2332
    %v2834 = vunpack.c.h.b16 %v2332
    %v2835 = vunpack.c.l.b16 %v2333
    %v2836 = vunpack.c.h.b16 %v2333
    %v2837 = vunpack.c.l.b16 %v2334
    %v2838 = vunpack.c.l.b16 %v2335
    %v2839 = vunpack.c.h.b16 %v2335
    %v2840 = vunpack.c.l.b16 %v2336
    %v2841 = vunpack.c.h.b16 %v2336
    %v2842 = vunpack.c.l.b16 %v2337
    %v2843 = vunpack.c.h.b16 %v2337
    %v2844 = vunpack.c.l.b16 %v2338
    %v2845 = vunpack.c.l.b16 %v2339
    %v2846 = vunpack.c.h.b16 %v2339
    %v2847 = vunpack.c.l.b16 %v2340
    %v2848 = vunpack.c.h.b16 %v2340
    %v2849 = vunpack.c.l.b16 %v2341
    %v2850 = vunpack.c.h.b16 %v2341
    %v2851 = vunpack.c.l.b16 %v2342
    %v2852 = vunpack.c.l.b16 %v2343
    %v2853 = vunpack.c.h.b16 %v2343
    %v2854 = vunpack.c.l.b16 %v2344
    %v2855 = vunpack.c.h.b16 %v2344
    %v2856 = vunpack.c.l.b16 %v2345
    %v2857 = vunpack.c.h.b16 %v2345
    %v2858 = vunpack.c.l.b16 %v2346
    %v2859 = vunpack.c.l.b16 %v2347
    %v2860 = vunpack.c.h.b16 %v2347
    %v2861 = vunpack.c.l.b16 %v2348
    %v2862 = vunpack.c.h.b16 %v2348
    %v2863 = vunpack.c.l.b16 %v2349
    %v2864 = vunpack.c.h.b16 %v2349
    %v2865 = vunpack.c.l.b16 %v2350
    %v2866 = vunpack.c.l.b16 %v2351
    %v2867 = vunpack.c.h.b16 %v2351
    %v2868 = vunpack.c.l.b16 %v2352
    %v2869 = vunpack.c.h.b16 %v2352
    %v2870 = vunpack.c.l.b16 %v2353
    %v2871 = vunpack.c.h.b16 %v2353
    %v2872 = vunpack.c.l.b16 %v2354
    %v2873 = vunpack.c.l.b16 %v2355
    %v2874 = vunpack.c.h.b16 %v2355
    %v2875 = vunpack.c.l.b16 %v2356
    %v2876 = vunpack.c.h.b16 %v2356
    %v2877 = vunpack.c.l.b16 %v2357
    %v2878 = vunpack.c.h.b16 %v2357
    %v2879 = vunpack.c.l.b16 %v2358
    %v2880 = vunpack.c.l.b16 %v2359
    %v2881 = vunpack.c.h.b16 %v2359
    %v2882 = vunpack.c.l.b16 %v2360
    %v2883 = vunpack.c.h.b16 %v2360
    %v2884 = vunpack.c.l.b16 %v2361
    %v2885 = vunpack.c.h.b16 %v2361
    %v2886 = vunpack.c.l.b16 %v2362
    %v2887 = vunpack.c.l.b16 %v2363
    %v2888 = vunpack.c.h.b16 %v2363
    %v2889 = vunpack.c.l.b16 %v2364
    %v2890 = vunpack.c.h.b16 %v2364
    %v2891 = vunpack.c.l.b16 %v2365
    %v2892 = vunpack.c.h.b16 %v2365
    %v2893 = vunpack.c.l.b16 %v2366
    %v2894 = vunpack.c.l.b16 %v2367
    %v2895 = vunpack.c.h.b16 %v2367
    %v2896 = vunpack.c.l.b16 %v2368
    %v2897 = vunpack.c.h.b16 %v2368
    %v2898 = vunpack.c.l.b16 %v2369
    %v2899 = vunpack.c.h.b16 %v2369
    %v2900 = vunpack.c.l.b16 %v2370
    %v2901 = vunpack.c.l.b16 %v2371
    %v2902 = vunpack.c.h.b16 %v2371
    %v2903 = vunpack.c.l.b16 %v2372
    %v2904 = vunpack.c.h.b16 %v2372
    %v2905 = vunpack.c.l.b16 %v2373
    %v2906 = vunpack.c.h.b16 %v2373
    %v2907 = vunpack.c.l.b16 %v2374
    %v2908 = vunpack.c.l.b16 %v2375
    %v2909 = vunpack.c.h.b16 %v2375
    %v2910 = vunpack.c.l.b16 %v2376
    %v2911 = vunpack.c.h.b16 %v2376
    %v2912 = vunpack.c.l.b16 %v2377
    %v2913 = vunpack.c.h.b16 %v2377
    %v2914 = vunpack.c.l.b16 %v2378
    %v2915 = vunpack.c.l.b16 %v2379
    %v2916 = vunpack.c.h.b16 %v2379
    %v2917 = vunpack.c.l.b16 %v2380
    %v2918 = vunpack.c.h.b16 %v2380
    %v2919 = vunpack.c.l.b16 %v2381
    %v2920 = vunpack.c.h.b16 %v2381
    %v2921 = vunpack.c.l.b16 %v2382
    %v2922 = vunpack.c.l.b16 %v2383
    %v2923 = vunpack.c.h.b16 %v2383
    %v2924 = vunpack.c.l.b16 %v2384
    %v2925 = vunpack.c.h.b16 %v2384
    %v2926 = vunpack.c.l.b16 %v2385
    %v2927 = vunpack.c.h.b16 %v2385
    %v2928 = vunpack.c.l.b16 %v2386
    %v2929 = vunpack.c.l.b16 %v2387
    %v2930 = vunpack.c.h.b16 %v2387
    %v2931 = vunpack.c.l.b16 %v2388
    %v2932 = vunpack.c.h.b16 %v2388
    %v2933 = vunpack.c.l.b16 %v2389
    %v2934 = vunpack.c.h.b16 %v2389
    %v2935 = vunpack.c.l.b16 %v2390
    %v2936 = vunpack.c.l.b16 %v2391
    %v2937 = vunpack.c.h.b16 %v2391
    %v2938 = vunpack.c.l.b16 %v2392
    %v2939 = vunpack.c.h.b16 %v2392
    %v2940 = vunpack.c.l.b16 %v2393
    %v2941 = vunpack.c.h.b16 %v2393
    %v2942 = vunpack.c.l.b16 %v2394
    %v2943 = vunpack.c.l.b16 %v2395
    %v2944 = vunpack.c.h.b16 %v2395
    %v2945 = vunpack.c.l.b16 %v2396
    %v2946 = vunpack.c.h.b16 %v2396
    %v2947 = vunpack.c.l.b16 %v2397
    %v2948 = vunpack.c.h.b16 %v2397
    %v2949 = vunpack.c.l.b16 %v2398
    %v2950 = vunpack.c.l.b16 %v2399
    %v2951 = vunpack.c.h.b16 %v2399
    %v2952 = vunpack.c.l.b16 %v2400
    %v2953 = vunpack.c.h.b16 %v2400
    %v2954 = vunpack.c.l.b16 %v2401
    %v2955 = vunpack.c.h.b16 %v2401
    %v2956 = vunpack.c.l.b16 %v2402
    %v2957 = vunpack.c.l.b16 %v2403
    %v2958 = vunpack.c.h.b16 %v2403
    %v2959 = vunpack.c.l.b16 %v2404
    %v2960 = vunpack.c.h.b16 %v2404
    %v2961 = vunpack.c.l.b16 %v2405
    %v2962 = vunpack.c.h.b16 %v2405
    %v2963 = vunpack.c.l.b16 %v2406
    %v2964 = vunpack.c.l.b16 %v2407
    %v2965 = vunpack.c.h.b16 %v2407
    %v2966 = vunpack.c.l.b16 %v2408
    %v2967 = vunpack.c.h.b16 %v2408
    %v2968 = vunpack.c.l.b16 %v2409
    %v2969 = vunpack.c.h.b16 %v2409
    %v2970 = vunpack.c.l.b16 %v2410
    %v2971 = vunpack.c.l.b16 %v2411
    %v2972 = vunpack.c.h.b16 %v2411
    %v2973 = vunpack.c.l.b16 %v2412
    %v2974 = vunpack.c.h.b16 %v2412
    %v2975 = vunpack.c.l.b16 %v2413
    %v2976 = vunpack.c.h.b16 %v2413
    %v2977 = vunpack.c.l.b16 %v2414
    %v2978 = vunpack.c.l.b16 %v2415
    %v2979 = vunpack.c.h.b16 %v2415
    %v2980 = vunpack.c.l.b16 %v2416
    %v2981 = vunpack.c.h.b16 %v2416
    %v2982 = vunpack.c.l.b16 %v2417
    %v2983 = vunpack.c.h.b16 %v2417
    %v2984 = vunpack.c.l.b16 %v2418
    %v2985 = vpack.c.b16 %v2642, %v2635
    %v2986 = vpack.c.b16 %v2643, %v2636
    %v2987 = vpack.c.b16 %v2644, %v2637
    %v2988 = vpack.c.b16 %v2645, %v2638
    %v2989 = vpack.c.b16 %v2646, %v2639
    %v2990 = vpack.c.b16 %v2647, %v2640
    %v2991 = vpack.c.b16 %v2648, %v2641
    %v2992 = vpack.c.b16 %v2656, %v2649
    %v2993 = vpack.c.b16 %v2657, %v2650
    %v2994 = vpack.c.b16 %v2658, %v2651
    %v2995 = vpack.c.b16 %v2659, %v2652
    %v2996 = vpack.c.b16 %v2660, %v2653
    %v2997 = vpack.c.b16 %v2661, %v2654
    %v2998 = vpack.c.b16 %v2662, %v2655
    %v2999 = vpack.c.b16 %v2670, %v2663
    %v3000 = vpack.c.b16 %v2671, %v2664
    %v3001 = vpack.c.b16 %v2672, %v2665
    %v3002 = vpack.c.b16 %v2673, %v2666
    %v3003 = vpack.c.b16 %v2674, %v2667
    %v3004 = vpack.c.b16 %v2675, %v2668
    %v3005 = vpack.c.b16 %v2676, %v2669
    %v3006 = vpack.c.b16 %v2684, %v2677
    %v3007 = vpack.c.b16 %v2685, %v2678
    %v3008 = vpack.c.b16 %v2686, %v2679
    %v3009 = vpack.c.b16 %v2687, %v2680
    %v3010 = vpack.c.b16 %v2688, %v2681
    %v3011 = vpack.c.b16 %v2689, %v2682
    %v3012 = vpack.c.b16 %v2690, %v2683
    %v3013 = vpack.c.b16 %v2698, %v2691
    %v3014 = vpack.c.b16 %v2699, %v2692
    %v3015 = vpack.c.b16 %v2700, %v2693
    %v3016 = vpack.c.b16 %v2701, %v2694
    %v3017 = vpack.c.b16 %v2702, %v2695
    %v3018 = vpack.c.b16 %v2703, %v2696
    %v3019 = vpack.c.b16 %v2704, %v2697
    %v3020 = vpack.c.b16 %v2712, %v2705
    %v3021 = vpack.c.b16 %v2713, %v2706
    %v3022 = vpack.c.b16 %v2714, %v2707
    %v3023 = vpack.c.b16 %v2715, %v2708
    %v3024 = vpack.c.b16 %v2716, %v2709
    %v3025 = vpack.c.b16 %v2717, %v2710
    %v3026 = vpack.c.b16 %v2718, %v2711
    %v3027 = vpack.c.b16 %v2726, %v2719
    %v3028 = vpack.c.b16 %v2727, %v2720
    %v3029 = vpack.c.b16 %v2728, %v2721
    %v3030 = vpack.c.b16 %v2729, %v2722
    %v3031 = vpack.c.b16 %v2730, %v2723
    %v3032 = vpack.c.b16 %v2731, %v2724
    %v3033 = vpack.c.b16 %v2732, %v2725
    %v3034 = vpack.c.b16 %v2740, %v2733
    %v3035 = vpack.c.b16 %v2741, %v2734
    %v3036 = vpack.c.b16 %v2742, %v2735
    %v3037 = vpack.c.b16 %v2743, %v2736
    %v3038 = vpack.c.b16 %v2744, %v2737
    %v3039 = vpack.c.b16 %v2745, %v2738
    %v3040 = vpack.c.b16 %v2746, %v2739
    %v3041 = vpack.c.b16 %v2754, %v2747
    %v3042 = vpack.c.b16 %v2755, %v2748
    %v3043 = vpack.c.b16 %v2756, %v2749
    %v3044 = vpack.c.b16 %v2757, %v2750
    %v3045 = vpack.c.b16 %v2758, %v2751
    %v3046 = vpack.c.b16 %v2759, %v2752
    %v3047 = vpack.c.b16 %v2760, %v2753
    %v3048 = vpack.c.b16 %v2768, %v2761
    %v3049 = vpack.c.b16 %v2769, %v2762
    %v3050 = vpack.c.b16 %v2770, %v2763
    %v3051 = vpack.c.b16 %v2771, %v2764
    %v3052 = vpack.c.b16 %v2772, %v2765
    %v3053 = vpack.c.b16 %v2773, %v2766
    %v3054 = vpack.c.b16 %v2774, %v2767
    %v3055 = vpack.c.b16 %v2782, %v2775
    %v3056 = vpack.c.b16 %v2783, %v2776
    %v3057 = vpack.c.b16 %v2784, %v2777
    %v3058 = vpack.c.b16 %v2785, %v2778
    %v3059 = vpack.c.b16 %v2786, %v2779
    %v3060 = vpack.c.b16 %v2787, %v2780
    %v3061 = vpack.c.b16 %v2788, %v2781
    %v3062 = vpack.c.b16 %v2796, %v2789
    %v3063 = vpack.c.b16 %v2797, %v2790
    %v3064 = vpack.c.b16 %v2798, %v2791
    %v3065 = vpack.c.b16 %v2799, %v2792
    %v3066 = vpack.c.b16 %v2800, %v2793
    %v3067 = vpack.c.b16 %v2801, %v2794
    %v3068 = vpack.c.b16 %v2802, %v2795
    %v3069 = vpack.c.b16 %v2810, %v2803
    %v3070 = vpack.c.b16 %v2811, %v2804
    %v3071 = vpack.c.b16 %v2812, %v2805
    %v3072 = vpack.c.b16 %v2813, %v2806
    %v3073 = vpack.c.b16 %v2814, %v2807
    %v3074 = vpack.c.b16 %v2815, %v2808
    %v3075 = vpack.c.b16 %v2816, %v2809
    %v3076 = vpack.c.b16 %v2824, %v2817
    %v3077 = vpack.c.b16 %v2825, %v2818
    %v3078 = vpack.c.b16 %v2826, %v2819
    %v3079 = vpack.c.b16 %v2827, %v2820
    %v3080 = vpack.c.b16 %v2828, %v2821
    %v3081 = vpack.c.b16 %v2829, %v2822
    %v3082 = vpack.c.b16 %v2830, %v2823
    %v3083 = vpack.c.b16 %v2838, %v2831
    %v3084 = vpack.c.b16 %v2839, %v2832
    %v3085 = vpack.c.b16 %v2840, %v2833
    %v3086 = vpack.c.b16 %v2841, %v2834
    %v3087 = vpack.c.b16 %v2842, %v2835
    %v3088 = vpack.c.b16 %v2843, %v2836
    %v3089 = vpack.c.b16 %v2844, %v2837
    %v3090 = vpack.c.b16 %v2852, %v2845
    %v3091 = vpack.c.b16 %v2853, %v2846
    %v3092 = vpack.c.b16 %v2854, %v2847
    %v3093 = vpack.c.b16 %v2855, %v2848
    %v3094 = vpack.c.b16 %v2856, %v2849
    %v3095 = vpack.c.b16 %v2857, %v2850
    %v3096 = vpack.c.b16 %v2858, %v2851
    %v3097 = vpack.c.b16 %v2866, %v2859
    %v3098 = vpack.c.b16 %v2867, %v2860
    %v3099 = vpack.c.b16 %v2868, %v2861
    %v3100 = vpack.c.b16 %v2869, %v2862
    %v3101 = vpack.c.b16 %v2870, %v2863
    %v3102 = vpack.c.b16 %v2871, %v2864
    %v3103 = vpack.c.b16 %v2872, %v2865
    %v3104 = vpack.c.b16 %v2880, %v2873
    %v3105 = vpack.c.b16 %v2881, %v2874
    %v3106 = vpack.c.b16 %v2882, %v2875
    %v3107 = vpack.c.b16 %v2883, %v2876
    %v3108 = vpack.c.b16 %v2884, %v2877
    %v3109 = vpack.c.b16 %v2885, %v2878
    %v3110 = vpack.c.b16 %v2886, %v2879
    %v3111 = vpack.c.b16 %v2894, %v2887
    %v3112 = vpack.c.b16 %v2895, %v2888
    %v3113 = vpack.c.b16 %v2896, %v2889
    %v3114 = vpack.c.b16 %v2897, %v2890
    %v3115 = vpack.c.b16 %v2898, %v2891
    %v3116 = vpack.c.b16 %v2899, %v2892
    %v3117 = vpack.c.b16 %v2900, %v2893
    %v3118 = vpack.c.b16 %v2908, %v2901
    %v3119 = vpack.c.b16 %v2909, %v2902
    %v3120 = vpack.c.b16 %v2910, %v2903
    %v3121 = vpack.c.b16 %v2911, %v2904
    %v3122 = vpack.c.b16 %v2912, %v2905
    %v3123 = vpack.c.b16 %v2913, %v2906
    %v3124 = vpack.c.b16 %v2914, %v2907
    %v3125 = vpack.c.b16 %v2922, %v2915
    %v3126 = vpack.c.b16 %v2923, %v2916
    %v3127 = vpack.c.b16 %v2924, %v2917
    %v3128 = vpack.c.b16 %v2925, %v2918
    %v3129 = vpack.c.b16 %v2926, %v2919
    %v3130 = vpack.c.b16 %v2927, %v2920
    %v3131 = vpack.c.b16 %v2928, %v2921
    %v3132 = vpack.c.b16 %v2936, %v2929
    %v3133 = vpack.c.b16 %v2937, %v2930
    %v3134 = vpack.c.b16 %v2938, %v2931
    %v3135 = vpack.c.b16 %v2939, %v2932
    %v3136 = vpack.c.b16 %v2940, %v2933
    %v3137 = vpack.c.b16 %v2941, %v2934
    %v3138 = vpack.c.b16 %v2942, %v2935
    %v3139 = vpack.c.b16 %v2950, %v2943
    %v3140 = vpack.c.b16 %v2951, %v2944
    %v3141 = vpack.c.b16 %v2952, %v2945
    %v3142 = vpack.c.b16 %v2953, %v2946
    %v3143 = vpack.c.b16 %v2954, %v2947
    %v3144 = vpack.c.b16 %v2955, %v2948
    %v3145 = vpack.c.b16 %v2956, %v2949
    %v3146 = vpack.c.b16 %v2964, %v2957
    %v3147 = vpack.c.b16 %v2965, %v2958
    %v3148 = vpack.c.b16 %v2966, %v2959
    %v3149 = vpack.c.b16 %v2967, %v2960
    %v3150 = vpack.c.b16 %v2968, %v2961
    %v3151 = vpack.c.b16 %v2969, %v2962
    %v3152 = vpack.c.b16 %v2970, %v2963
    %v3153 = vpack.c.b16 %v2978, %v2971
    %v3154 = vpack.c.b16 %v2979, %v2972
    %v3155 = vpack.c.b16 %v2980, %v2973
    %v3156 = vpack.c.b16 %v2981, %v2974
    %v3157 = vpack.c.b16 %v2982, %v2975
    %v3158 = vpack.c.b16 %v2983, %v2976
    %v3159 = vpack.c.b16 %v2984, %v2977
    %v3336 = vsel %vm1330, %v2218, 0
    %3338 = vmatpush.bf16.msra.mxu0 %v3034
    %3339 = vmatpush.bf16.msra.mxu0 %v3027
    %3340 = vmatpush.bf16.msra.mxu0 %v3020
    %3341 = vmatpush.bf16.msra.mxu0 %v3013
    %3342 = vmatpush.bf16.msra.mxu0 %v3006
    %3343 = vmatpush.bf16.msra.mxu0 %v2999
    %3344 = vmatpush.bf16.msra.mxu0 %v2992
    %3345 = vmatpush.bf16.msra.mxu0 %v2985
    %3346 = vmatmul.bf16.gmra.mxu0 %v2215
    %v3347 = vpop.f32.mrf.mxu0
    %v3348 = vadd.f32 %v2421, %v3347
    %v3349 = vpop.f32.mrf.mxu0
    %3350 = vdwg.mxu0
    %3351 = vmatpush.bf16.msra.mxu0 %v3090
    %3352 = vmatpush.bf16.msra.mxu0 %v3083
    %3353 = vmatpush.bf16.msra.mxu0 %v3076
    %3354 = vmatpush.bf16.msra.mxu0 %v3069
    %3355 = vmatpush.bf16.msra.mxu0 %v3062
    %3356 = vmatpush.bf16.msra.mxu0 %v3055
    %3357 = vmatpush.bf16.msra.mxu0 %v3048
    %3358 = vmatpush.bf16.msra.mxu0 %v3041
    %3359 = vmatmul.bf16.gmra.mxu0 %v2216
    %v3360 = vpop.f32.mrf.mxu0
    %v3361 = vadd.f32 %v3348, %v3360
    %v3362 = vpop.f32.mrf.mxu0
    %3363 = vdwg.mxu0
    %3364 = vmatpush.bf16.msra.mxu0 %v3146
    %3365 = vmatpush.bf16.msra.mxu0 %v3139
    %3366 = vmatpush.bf16.msra.mxu0 %v3132
    %3367 = vmatpush.bf16.msra.mxu0 %v3125
    %3368 = vmatpush.bf16.msra.mxu0 %v3118
    %3369 = vmatpush.bf16.msra.mxu0 %v3111
    %3370 = vmatpush.bf16.msra.mxu0 %v3104
    %3371 = vmatpush.bf16.msra.mxu0 %v3097
    %3372 = vmatmul.bf16.gmra.mxu0 %v2217
    %v3373 = vpop.f32.mrf.mxu0
    %v3374 = vadd.f32 %v3361, %v3373
    %v3375 = vpop.f32.mrf.mxu0
    %3376 = vdwg.mxu0
    %3377 = vmatpush.bf16.msra.mxu0 0
    %3378 = vmatpush.bf16.msra.mxu0 0
    %3379 = vmatpush.bf16.msra.mxu0 0
    %3380 = vmatpush.bf16.msra.mxu0 0
    %3381 = vmatpush.bf16.msra.mxu0 0
    %3382 = vmatpush.bf16.msra.mxu0 0
    %3383 = vmatpush.bf16.msra.mxu0 0
    %3384 = vmatpush.bf16.msra.mxu0 %v3153
    %3385 = vmatmul.bf16.gmra.mxu0 %v3336
    %v3386 = vpop.f32.mrf.mxu0
    %v3387 = vadd.f32 %v3374, %v3386
    %v3388 = vpop.f32.mrf.mxu0
    %3389 = vdwg.mxu0
    %3390 = vmatpush.bf16.msra.mxu0 %v3035
    %3391 = vmatpush.bf16.msra.mxu0 %v3028
    %3392 = vmatpush.bf16.msra.mxu0 %v3021
    %3393 = vmatpush.bf16.msra.mxu0 %v3014
    %3394 = vmatpush.bf16.msra.mxu0 %v3007
    %3395 = vmatpush.bf16.msra.mxu0 %v3000
    %3396 = vmatpush.bf16.msra.mxu0 %v2993
    %3397 = vmatpush.bf16.msra.mxu0 %v2986
    %3398 = vmatmul.bf16.gmra.mxu0 %v2215
    %v3399 = vpop.f32.mrf.mxu0
    %v3400 = vadd.f32 %v2422, %v3399
    %v3401 = vpop.f32.mrf.mxu0
    %3402 = vdwg.mxu0
    %3403 = vmatpush.bf16.msra.mxu0 %v3091
    %3404 = vmatpush.bf16.msra.mxu0 %v3084
    %3405 = vmatpush.bf16.msra.mxu0 %v3077
    %3406 = vmatpush.bf16.msra.mxu0 %v3070
    %3407 = vmatpush.bf16.msra.mxu0 %v3063
    %3408 = vmatpush.bf16.msra.mxu0 %v3056
    %3409 = vmatpush.bf16.msra.mxu0 %v3049
    %3410 = vmatpush.bf16.msra.mxu0 %v3042
    %3411 = vmatmul.bf16.gmra.mxu0 %v2216
    %v3412 = vpop.f32.mrf.mxu0
    %v3413 = vadd.f32 %v3400, %v3412
    %v3414 = vpop.f32.mrf.mxu0
    %3415 = vdwg.mxu0
    %3416 = vmatpush.bf16.msra.mxu0 %v3147
    %3417 = vmatpush.bf16.msra.mxu0 %v3140
    %3418 = vmatpush.bf16.msra.mxu0 %v3133
    %3419 = vmatpush.bf16.msra.mxu0 %v3126
    %3420 = vmatpush.bf16.msra.mxu0 %v3119
    %3421 = vmatpush.bf16.msra.mxu0 %v3112
    %3422 = vmatpush.bf16.msra.mxu0 %v3105
    %3423 = vmatpush.bf16.msra.mxu0 %v3098
    %3424 = vmatmul.bf16.gmra.mxu0 %v2217
    %v3425 = vpop.f32.mrf.mxu0
    %v3426 = vadd.f32 %v3413, %v3425
    %v3427 = vpop.f32.mrf.mxu0
    %3428 = vdwg.mxu0
    %3429 = vmatpush.bf16.msra.mxu0 0
    %3430 = vmatpush.bf16.msra.mxu0 0
    %3431 = vmatpush.bf16.msra.mxu0 0
    %3432 = vmatpush.bf16.msra.mxu0 0
    %3433 = vmatpush.bf16.msra.mxu0 0
    %3434 = vmatpush.bf16.msra.mxu0 0
    %3435 = vmatpush.bf16.msra.mxu0 0
    %3436 = vmatpush.bf16.msra.mxu0 %v3154
    %3437 = vmatmul.bf16.gmra.mxu0 %v3336
    %v3438 = vpop.f32.mrf.mxu0
    %v3439 = vadd.f32 %v3426, %v3438
    %v3440 = vpop.f32.mrf.mxu0
    %3441 = vdwg.mxu0
    %3442 = vmatpush.bf16.msra.mxu0 %v3036
    %3443 = vmatpush.bf16.msra.mxu0 %v3029
    %3444 = vmatpush.bf16.msra.mxu0 %v3022
    %3445 = vmatpush.bf16.msra.mxu0 %v3015
    %3446 = vmatpush.bf16.msra.mxu0 %v3008
    %3447 = vmatpush.bf16.msra.mxu0 %v3001
    %3448 = vmatpush.bf16.msra.mxu0 %v2994
    %3449 = vmatpush.bf16.msra.mxu0 %v2987
    %3450 = vmatmul.bf16.gmra.mxu0 %v2215
    %v3451 = vpop.f32.mrf.mxu0
    %v3452 = vadd.f32 %v2423, %v3451
    %v3453 = vpop.f32.mrf.mxu0
    %3454 = vdwg.mxu0
    %3455 = vmatpush.bf16.msra.mxu0 %v3092
    %3456 = vmatpush.bf16.msra.mxu0 %v3085
    %3457 = vmatpush.bf16.msra.mxu0 %v3078
    %3458 = vmatpush.bf16.msra.mxu0 %v3071
    %3459 = vmatpush.bf16.msra.mxu0 %v3064
    %3460 = vmatpush.bf16.msra.mxu0 %v3057
    %3461 = vmatpush.bf16.msra.mxu0 %v3050
    %3462 = vmatpush.bf16.msra.mxu0 %v3043
    %3463 = vmatmul.bf16.gmra.mxu0 %v2216
    %v3464 = vpop.f32.mrf.mxu0
    %v3465 = vadd.f32 %v3452, %v3464
    %v3466 = vpop.f32.mrf.mxu0
    %3467 = vdwg.mxu0
    %3468 = vmatpush.bf16.msra.mxu0 %v3148
    %3469 = vmatpush.bf16.msra.mxu0 %v3141
    %3470 = vmatpush.bf16.msra.mxu0 %v3134
    %3471 = vmatpush.bf16.msra.mxu0 %v3127
    %3472 = vmatpush.bf16.msra.mxu0 %v3120
    %3473 = vmatpush.bf16.msra.mxu0 %v3113
    %3474 = vmatpush.bf16.msra.mxu0 %v3106
    %3475 = vmatpush.bf16.msra.mxu0 %v3099
    %3476 = vmatmul.bf16.gmra.mxu0 %v2217
    %v3477 = vpop.f32.mrf.mxu0
    %v3478 = vadd.f32 %v3465, %v3477
    %v3479 = vpop.f32.mrf.mxu0
    %3480 = vdwg.mxu0
    %3481 = vmatpush.bf16.msra.mxu0 0
    %3482 = vmatpush.bf16.msra.mxu0 0
    %3483 = vmatpush.bf16.msra.mxu0 0
    %3484 = vmatpush.bf16.msra.mxu0 0
    %3485 = vmatpush.bf16.msra.mxu0 0
    %3486 = vmatpush.bf16.msra.mxu0 0
    %3487 = vmatpush.bf16.msra.mxu0 0
    %3488 = vmatpush.bf16.msra.mxu0 %v3155
    %3489 = vmatmul.bf16.gmra.mxu0 %v3336
    %v3490 = vpop.f32.mrf.mxu0
    %v3491 = vadd.f32 %v3478, %v3490
    %v3492 = vpop.f32.mrf.mxu0
    %3493 = vdwg.mxu0
    %3494 = vmatpush.bf16.msra.mxu0 %v3037
    %3495 = vmatpush.bf16.msra.mxu0 %v3030
    %3496 = vmatpush.bf16.msra.mxu0 %v3023
    %3497 = vmatpush.bf16.msra.mxu0 %v3016
    %3498 = vmatpush.bf16.msra.mxu0 %v3009
    %3499 = vmatpush.bf16.msra.mxu0 %v3002
    %3500 = vmatpush.bf16.msra.mxu0 %v2995
    %3501 = vmatpush.bf16.msra.mxu0 %v2988
    %3502 = vmatmul.bf16.gmra.mxu0 %v2215
    %v3503 = vpop.f32.mrf.mxu0
    %v3504 = vadd.f32 %v2424, %v3503
    %v3505 = vpop.f32.mrf.mxu0
    %3506 = vdwg.mxu0
    %3507 = vmatpush.bf16.msra.mxu0 %v3093
    %3508 = vmatpush.bf16.msra.mxu0 %v3086
    %3509 = vmatpush.bf16.msra.mxu0 %v3079
    %3510 = vmatpush.bf16.msra.mxu0 %v3072
    %3511 = vmatpush.bf16.msra.mxu0 %v3065
    %3512 = vmatpush.bf16.msra.mxu0 %v3058
    %3513 = vmatpush.bf16.msra.mxu0 %v3051
    %3514 = vmatpush.bf16.msra.mxu0 %v3044
    %3515 = vmatmul.bf16.gmra.mxu0 %v2216
    %v3516 = vpop.f32.mrf.mxu0
    %v3517 = vadd.f32 %v3504, %v3516
    %v3518 = vpop.f32.mrf.mxu0
    %3519 = vdwg.mxu0
    %3520 = vmatpush.bf16.msra.mxu0 %v3149
    %3521 = vmatpush.bf16.msra.mxu0 %v3142
    %3522 = vmatpush.bf16.msra.mxu0 %v3135
    %3523 = vmatpush.bf16.msra.mxu0 %v3128
    %3524 = vmatpush.bf16.msra.mxu0 %v3121
    %3525 = vmatpush.bf16.msra.mxu0 %v3114
    %3526 = vmatpush.bf16.msra.mxu0 %v3107
    %3527 = vmatpush.bf16.msra.mxu0 %v3100
    %3528 = vmatmul.bf16.gmra.mxu0 %v2217
    %v3529 = vpop.f32.mrf.mxu0
    %v3530 = vadd.f32 %v3517, %v3529
    %v3531 = vpop.f32.mrf.mxu0
    %3532 = vdwg.mxu0
    %3533 = vmatpush.bf16.msra.mxu0 0
    %3534 = vmatpush.bf16.msra.mxu0 0
    %3535 = vmatpush.bf16.msra.mxu0 0
    %3536 = vmatpush.bf16.msra.mxu0 0
    %3537 = vmatpush.bf16.msra.mxu0 0
    %3538 = vmatpush.bf16.msra.mxu0 0
    %3539 = vmatpush.bf16.msra.mxu0 0
    %3540 = vmatpush.bf16.msra.mxu0 %v3156
    %3541 = vmatmul.bf16.gmra.mxu0 %v3336
    %v3542 = vpop.f32.mrf.mxu0
    %v3543 = vadd.f32 %v3530, %v3542
    %v3544 = vpop.f32.mrf.mxu0
    %3545 = vdwg.mxu0
    %3546 = vmatpush.bf16.msra.mxu0 %v3038
    %3547 = vmatpush.bf16.msra.mxu0 %v3031
    %3548 = vmatpush.bf16.msra.mxu0 %v3024
    %3549 = vmatpush.bf16.msra.mxu0 %v3017
    %3550 = vmatpush.bf16.msra.mxu0 %v3010
    %3551 = vmatpush.bf16.msra.mxu0 %v3003
    %3552 = vmatpush.bf16.msra.mxu0 %v2996
    %3553 = vmatpush.bf16.msra.mxu0 %v2989
    %3554 = vmatmul.bf16.gmra.mxu0 %v2215
    %v3555 = vpop.f32.mrf.mxu0
    %v3556 = vadd.f32 %v2425, %v3555
    %v3557 = vpop.f32.mrf.mxu0
    %3558 = vdwg.mxu0
    %3559 = vmatpush.bf16.msra.mxu0 %v3094
    %3560 = vmatpush.bf16.msra.mxu0 %v3087
    %3561 = vmatpush.bf16.msra.mxu0 %v3080
    %3562 = vmatpush.bf16.msra.mxu0 %v3073
    %3563 = vmatpush.bf16.msra.mxu0 %v3066
    %3564 = vmatpush.bf16.msra.mxu0 %v3059
    %3565 = vmatpush.bf16.msra.mxu0 %v3052
    %3566 = vmatpush.bf16.msra.mxu0 %v3045
    %3567 = vmatmul.bf16.gmra.mxu0 %v2216
    %v3568 = vpop.f32.mrf.mxu0
    %v3569 = vadd.f32 %v3556, %v3568
    %v3570 = vpop.f32.mrf.mxu0
    %3571 = vdwg.mxu0
    %3572 = vmatpush.bf16.msra.mxu0 %v3150
    %3573 = vmatpush.bf16.msra.mxu0 %v3143
    %3574 = vmatpush.bf16.msra.mxu0 %v3136
    %3575 = vmatpush.bf16.msra.mxu0 %v3129
    %3576 = vmatpush.bf16.msra.mxu0 %v3122
    %3577 = vmatpush.bf16.msra.mxu0 %v3115
    %3578 = vmatpush.bf16.msra.mxu0 %v3108
    %3579 = vmatpush.bf16.msra.mxu0 %v3101
    %3580 = vmatmul.bf16.gmra.mxu0 %v2217
    %v3581 = vpop.f32.mrf.mxu0
    %v3582 = vadd.f32 %v3569, %v3581
    %v3583 = vpop.f32.mrf.mxu0
    %3584 = vdwg.mxu0
    %3585 = vmatpush.bf16.msra.mxu0 0
    %3586 = vmatpush.bf16.msra.mxu0 0
    %3587 = vmatpush.bf16.msra.mxu0 0
    %3588 = vmatpush.bf16.msra.mxu0 0
    %3589 = vmatpush.bf16.msra.mxu0 0
    %3590 = vmatpush.bf16.msra.mxu0 0
    %3591 = vmatpush.bf16.msra.mxu0 0
    %3592 = vmatpush.bf16.msra.mxu0 %v3157
    %3593 = vmatmul.bf16.gmra.mxu0 %v3336
    %v3594 = vpop.f32.mrf.mxu0
    %v3595 = vadd.f32 %v3582, %v3594
    %v3596 = vpop.f32.mrf.mxu0
    %3597 = vdwg.mxu0
    %3598 = vmatpush.bf16.msra.mxu0 %v3039
    %3599 = vmatpush.bf16.msra.mxu0 %v3032
    %3600 = vmatpush.bf16.msra.mxu0 %v3025
    %3601 = vmatpush.bf16.msra.mxu0 %v3018
    %3602 = vmatpush.bf16.msra.mxu0 %v3011
    %3603 = vmatpush.bf16.msra.mxu0 %v3004
    %3604 = vmatpush.bf16.msra.mxu0 %v2997
    %3605 = vmatpush.bf16.msra.mxu0 %v2990
    %3606 = vmatmul.bf16.gmra.mxu0 %v2215
    %v3607 = vpop.f32.mrf.mxu0
    %v3608 = vadd.f32 %v2426, %v3607
    %v3609 = vpop.f32.mrf.mxu0
    %3610 = vdwg.mxu0
    %3611 = vmatpush.bf16.msra.mxu0 %v3095
    %3612 = vmatpush.bf16.msra.mxu0 %v3088
    %3613 = vmatpush.bf16.msra.mxu0 %v3081
    %3614 = vmatpush.bf16.msra.mxu0 %v3074
    %3615 = vmatpush.bf16.msra.mxu0 %v3067
    %3616 = vmatpush.bf16.msra.mxu0 %v3060
    %3617 = vmatpush.bf16.msra.mxu0 %v3053
    %3618 = vmatpush.bf16.msra.mxu0 %v3046
    %3619 = vmatmul.bf16.gmra.mxu0 %v2216
    %v3620 = vpop.f32.mrf.mxu0
    %v3621 = vadd.f32 %v3608, %v3620
    %v3622 = vpop.f32.mrf.mxu0
    %3623 = vdwg.mxu0
    %3624 = vmatpush.bf16.msra.mxu0 %v3151
    %3625 = vmatpush.bf16.msra.mxu0 %v3144
    %3626 = vmatpush.bf16.msra.mxu0 %v3137
    %3627 = vmatpush.bf16.msra.mxu0 %v3130
    %3628 = vmatpush.bf16.msra.mxu0 %v3123
    %3629 = vmatpush.bf16.msra.mxu0 %v3116
    %3630 = vmatpush.bf16.msra.mxu0 %v3109
    %3631 = vmatpush.bf16.msra.mxu0 %v3102
    %3632 = vmatmul.bf16.gmra.mxu0 %v2217
    %v3633 = vpop.f32.mrf.mxu0
    %v3634 = vadd.f32 %v3621, %v3633
    %v3635 = vpop.f32.mrf.mxu0
    %3636 = vdwg.mxu0
    %3637 = vmatpush.bf16.msra.mxu0 0
    %3638 = vmatpush.bf16.msra.mxu0 0
    %3639 = vmatpush.bf16.msra.mxu0 0
    %3640 = vmatpush.bf16.msra.mxu0 0
    %3641 = vmatpush.bf16.msra.mxu0 0
    %3642 = vmatpush.bf16.msra.mxu0 0
    %3643 = vmatpush.bf16.msra.mxu0 0
    %3644 = vmatpush.bf16.msra.mxu0 %v3158
    %3645 = vmatmul.bf16.gmra.mxu0 %v3336
    %v3646 = vpop.f32.mrf.mxu0
    %v3647 = vadd.f32 %v3634, %v3646
    %v3648 = vpop.f32.mrf.mxu0
    %3649 = vdwg.mxu0
    %3650 = vmatpush.bf16.msra.mxu0 %v3040
    %3651 = vmatpush.bf16.msra.mxu0 %v3033
    %3652 = vmatpush.bf16.msra.mxu0 %v3026
    %3653 = vmatpush.bf16.msra.mxu0 %v3019
    %3654 = vmatpush.bf16.msra.mxu0 %v3012
    %3655 = vmatpush.bf16.msra.mxu0 %v3005
    %3656 = vmatpush.bf16.msra.mxu0 %v2998
    %3657 = vmatpush.bf16.msra.mxu0 %v2991
    %3658 = vmatmul.bf16.gmra.mxu0 %v2215
    %v3659 = vpop.f32.mrf.mxu0
    %v3660 = vadd.f32 %v2427, %v3659
    %v3661 = vpop.f32.mrf.mxu0
    %3662 = vdwg.mxu0
    %3663 = vmatpush.bf16.msra.mxu0 %v3096
    %3664 = vmatpush.bf16.msra.mxu0 %v3089
    %3665 = vmatpush.bf16.msra.mxu0 %v3082
    %3666 = vmatpush.bf16.msra.mxu0 %v3075
    %3667 = vmatpush.bf16.msra.mxu0 %v3068
    %3668 = vmatpush.bf16.msra.mxu0 %v3061
    %3669 = vmatpush.bf16.msra.mxu0 %v3054
    %3670 = vmatpush.bf16.msra.mxu0 %v3047
    %3671 = vmatmul.bf16.gmra.mxu0 %v2216
    %v3672 = vpop.f32.mrf.mxu0
    %v3673 = vadd.f32 %v3660, %v3672
    %v3674 = vpop.f32.mrf.mxu0
    %3675 = vdwg.mxu0
    %3676 = vmatpush.bf16.msra.mxu0 %v3152
    %3677 = vmatpush.bf16.msra.mxu0 %v3145
    %3678 = vmatpush.bf16.msra.mxu0 %v3138
    %3679 = vmatpush.bf16.msra.mxu0 %v3131
    %3680 = vmatpush.bf16.msra.mxu0 %v3124
    %3681 = vmatpush.bf16.msra.mxu0 %v3117
    %3682 = vmatpush.bf16.msra.mxu0 %v3110
    %3683 = vmatpush.bf16.msra.mxu0 %v3103
    %3684 = vmatmul.bf16.gmra.mxu0 %v2217
    %v3685 = vpop.f32.mrf.mxu0
    %v3686 = vadd.f32 %v3673, %v3685
    %v3687 = vpop.f32.mrf.mxu0
    %3688 = vdwg.mxu0
    %3689 = vmatpush.bf16.msra.mxu0 0
    %3690 = vmatpush.bf16.msra.mxu0 0
    %3691 = vmatpush.bf16.msra.mxu0 0
    %3692 = vmatpush.bf16.msra.mxu0 0
    %3693 = vmatpush.bf16.msra.mxu0 0
    %3694 = vmatpush.bf16.msra.mxu0 0
    %3695 = vmatpush.bf16.msra.mxu0 0
    %3696 = vmatpush.bf16.msra.mxu0 %v3159
    %3697 = vmatmul.bf16.gmra.mxu0 %v3336
    %v3698 = vpop.f32.mrf.mxu0
    %v3699 = vadd.f32 %v3686, %v3698
    %v3700 = vpop.f32.mrf.mxu0
    %3701 = vdwg.mxu0
    %v3702 = vsub.f32 0.0, %v3387
    %v3703 = vsub.f32 0.0, %v3439
    %v3704 = vsub.f32 0.0, %v3491
    %v3705 = vsub.f32 0.0, %v3543
    %v3706 = vsub.f32 0.0, %v3595
    %v3707 = vsub.f32 0.0, %v3647
    %v3708 = vsub.f32 0.0, %v3699
    %v3709 = vmul.f32 %v3702, 1.442695
    %v3710 = vpow.pop %v3709
    %v3711 = vmul.f32 %v3703, 1.442695
    %v3712 = vpow.pop %v3711
    %v3713 = vmul.f32 %v3704, 1.442695
    %v3714 = vpow.pop %v3713
    %v3715 = vmul.f32 %v3705, 1.442695
    %v3716 = vpow.pop %v3715
    %v3717 = vmul.f32 %v3706, 1.442695
    %v3718 = vpow.pop %v3717
    %v3719 = vmul.f32 %v3707, 1.442695
    %v3720 = vpow.pop %v3719
    %v3721 = vmul.f32 %v3708, 1.442695
    %v3722 = vpow.pop %v3721
    %v3723 = vadd.f32 %v3710, 1.0
    %v3724 = vadd.f32 %v3712, 1.0
    %v3725 = vadd.f32 %v3714, 1.0
    %v3726 = vadd.f32 %v3716, 1.0
    %v3727 = vadd.f32 %v3718, 1.0
    %v3728 = vadd.f32 %v3720, 1.0
    %v3729 = vadd.f32 %v3722, 1.0
    %v3730 = vrcp.pop %v3723
    %v3731 = vrcp.pop %v3724
    %v3732 = vrcp.pop %v3725
    %v3733 = vrcp.pop %v3726
    %v3734 = vrcp.pop %v3727
    %v3735 = vrcp.pop %v3728
    %v3736 = vrcp.pop %v3729
    %v3737 = vpack.c.bf16 %v3731, %v3730
    %v3738 = vpack.c.bf16 %v3733, %v3732
    %v3739 = vpack.c.bf16 %v3735, %v3734
    %v3740 = vpack.c.bf16 %v3736, %v3736
    %3741 = vst [vmem:[#allocation2] sm:$0xff] %v3737
    %3742 = vst [vmem:[#allocation2 + $0x8] sm:$0xff] %v3738
    %3743 = vst [vmem:[#allocation2 + $0x10] sm:$0xff] %v3739
    %vm3744 = vcmask 125952
    %3745 = vst.msk [vmem:[#allocation2 + $0x18] sm:$0xf] %vm3744, %v3740
    // Predicated region
    $region54: #{tpu_custom_call.1} parent=1 // pred_check
      _
    $region55: #{tpu_custom_call.1} parent=1 // pred_check_branch
      %3747 = sbr.rel (0) target = $region57
    $region56: #{tpu_custom_call.1} parent=1 // pred_region
      %3749 = vsyncadd [#allocation3], 0
      %s3751 = sshll.u32 [#allocation2], 4
      %s3752 = int_to_ptr.vmem [resolvable:$true] %s3751
      %s3753 = sshll.u32 %s13, 4
      %s3754 = int_to_ptr.hbm [resolvable:$true] %s3753
      %3756 = dma.vmem_to_hbm [thread:$0]  %s3752, 448, %s3754, [#allocation3]
    $region57: #{tpu_custom_call.1} parent=1 // pred_fallthru
      _
    // Predicated region
    $region58: #{tpu_custom_call.1} parent=1 // pred_check
      _
    $region59: #{tpu_custom_call.1} parent=1 // pred_check_branch
      %3758 = sbr.rel (0) target = $region61
    $region60: #{tpu_custom_call.1} parent=1 // pred_region
      %3760 = vsyncadd [#allocation5], 0
      %s3762 = sshll.u32 [#allocation4], 4
      %s3763 = int_to_ptr.vmem [resolvable:$true] %s3762
      %s3764 = sshll.u32 %s14, 4
      %s3765 = int_to_ptr.hbm [resolvable:$true] %s3764
      %3767 = dma.vmem_to_hbm [thread:$0]  %s3763, 128, %s3765, [#allocation5]
    $region61: #{tpu_custom_call.1} parent=1 // pred_fallthru
      _
    // Predicated region
    $region62: #{tpu_custom_call.1} parent=1 // pred_check
      _
    $region63: #{tpu_custom_call.1} parent=1 // pred_check_branch
      %3769 = sbr.rel (0) target = $region65
    $region64: #{tpu_custom_call.1} parent=1 // pred_region
      %3771 = dma.done [#allocation3], 448
    $region65: #{tpu_custom_call.1} parent=1 // pred_fallthru
      _
    // Predicated region
    $region66: #{tpu_custom_call.1} parent=1 // pred_check
      _
    $region67: #{tpu_custom_call.1} parent=1 // pred_check_branch
      %3773 = sbr.rel (0) target = $region69
    $region68: #{tpu_custom_call.1} parent=1 // pred_region
      %3775 = dma.done [#allocation5], 128
    $region69: #{tpu_custom_call.1} parent=1 // pred_fallthru
      _
    %3776 = vsyncpa [#allocation3], 1
    %3777 = vsyncpa [#allocation5], 1

</llo_original>
